<compile_context>
chip_gen: v5e
topology: v5e:2x2
jax: 0.10.0
libtpu: 0.0.40
codegen_flags: <defaults>
</compile_context>

<pallas_src>
import math
import functools

import jax
import jax.numpy as jnp
from jax import lax
from jax.experimental import pallas as pl
from jax.experimental.pallas import tpu as pltpu

QDIM = 16  # quantum_dimension used inside QuantumAttentionLayer


# ---------------------------------------------------------------------------
# Single fused kernel: fusion (step 0) + one attention layer per grid step +
# prediction heads (last step).  Grid = (batch, num_layers).
# ---------------------------------------------------------------------------
def _fused_forward_kernel(d_model, nhead, qdim,
                          # constant inputs
                          text_ref, vis_ref, wv_enc_ref, bv_enc_ref,
                          tmp_ref, wt_enc_ref, bt_enc_ref, pos_ref,
                          ws_ref, bs_ref, wd_ref, bd_ref, we_ref, be_ref,
                          # per-layer stacked weights (leading layer dim squeezed)
                          w_in_ref, b_in_ref, w_ev_ref, w_meas_ref,
                          wo_ref, bo_ref, ln_g_ref, ln_b_ref,
                          # outputs
                          hid_ref, attn_ref, skill_ref, diff_ref, eng_ref):
    D, H, Qd = d_model, nhead, qdim
    hd = D // H
    l = pl.program_id(1)
    num_layers = pl.num_programs(1)

    # ---- step 0: multimodal input fusion into the resident hidden block ----
    @pl.when(l == 0)
    def _():
        vis_emb = jnp.dot(vis_ref[0], wv_enc_ref[...],
                          preferred_element_type=jnp.float32) + bv_enc_ref[...]   # (1, D)
        tmp_emb = jnp.dot(tmp_ref[0], wt_enc_ref[...],
                          preferred_element_type=jnp.float32) + bt_enc_ref[...]   # (1, D)
        hid_ref[...] = (text_ref[...] + vis_emb[None] + tmp_emb[None]
                        + pos_ref[...][None])

    x = hid_ref[0]                                            # (S, D) resident hidden
    S = x.shape[0]

    # ---- one fused projection: [Q | K | V | classical(q,k) | quantum-state(q,k)] ----
    proj = jnp.dot(x, w_in_ref[...],
                   preferred_element_type=jnp.float32) + b_in_ref[...]            # (S, 5D+2Q)
    q_lin = proj[:, 0 * D:1 * D]
    k_lin = proj[:, 1 * D:2 * D]
    v_lin = proj[:, 2 * D:3 * D]
    classical = jnp.tanh(proj[:, 3 * D:5 * D])                # (S, 2D)   [q | k]
    qs = proj[:, 5 * D:5 * D + 2 * Qd]                        # (S, 2Q)   [q | k]

    # ---- quantum evolution (entanglement folded into weights), real|imag stacked ----
    # TODO(synk): reference does matmul(quantum_state.unsqueeze(-1), W.unsqueeze(0))
    # which is shape-incompatible; implemented as the intended (qs + 0j) @ (Wr + i*Wi) @ E.
    ev = jnp.dot(qs, w_ev_ref[...], preferred_element_type=jnp.float32)           # (S, 4Q)
    ev_r, ev_i = ev[:, :2 * Qd], ev[:, 2 * Qd:]
    probs = ev_r * ev_r + ev_i * ev_i                         # |amplitude|^2, (S, 2Q)
    q_out = jnp.dot(probs, w_meas_ref[...], preferred_element_type=jnp.float32)   # (S, 2D)

    # TODO(synk): reference takes mean over dim=1 (written for 2-D inputs); for the
    # 3-D activations used here we reduce over the quantum dimension (last axis).
    fw_q = jax.nn.sigmoid(jnp.mean(probs[:, :Qd], axis=-1, keepdims=True))        # (S, 1)
    fw_k = jax.nn.sigmoid(jnp.mean(probs[:, Qd:], axis=-1, keepdims=True))
    q_quantum = fw_q * q_out[:, :D] + (1.0 - fw_q) * classical[:, :D]
    k_quantum = fw_k * q_out[:, D:] + (1.0 - fw_k) * classical[:, D:]

    Qf = 0.7 * q_lin + 0.3 * q_quantum
    Kf = 0.7 * k_lin + 0.3 * k_quantum

    # TODO(synk): reference quantum_interference matmul has incompatible operand
    # shapes; implemented as the intended pairwise dot product over the quantum dim.
    interference = lax.dot_general(probs[:, :Qd], probs[:, Qd:],
                                   (((1,), (1,)), ((), ())),
                                   preferred_element_type=jnp.float32)            # (S, S)

    # ---- multi-head attention, all heads batched (no per-head lane slices) ----
    Qh = Qf.T.reshape(H, hd, S)        # feature-major; splitting the major dim is cheap
    Kh = Kf.T.reshape(H, hd, S)
    Vh = v_lin.T.reshape(H, hd, S)

    scores = lax.dot_general(Qh, Kh, (((1,), (1,)), ((0,), (0,))),
                             preferred_element_type=jnp.float32)                  # (H, Sq, Sk)
    scores = scores * (1.0 / math.sqrt(hd)) + 0.1 * interference[None]

    m = jnp.max(scores, axis=-1, keepdims=True)
    p = jnp.exp(scores - m)
    attn = p * pl.reciprocal(jnp.sum(p, axis=-1, keepdims=True), approx=True)     # (H, Sq, Sk)
    # TODO(synk): attention dropout treated as identity (inference semantics).
    attn_ref[...] = attn[None]                                 # one store per layer

    ctx = lax.dot_general(Vh, attn, (((2,), (2,)), ((0,), (0,))),
                          preferred_element_type=jnp.float32)                     # (H, hd, Sq)
    attended = ctx.reshape(D, S).T                                                # (Sq, D)

    # ---- output projection + residual + LayerNorm ----
    y = jnp.dot(attended, wo_ref[...],
                preferred_element_type=jnp.float32) + bo_ref[...] + x
    mu = jnp.mean(y, axis=-1, keepdims=True)
    var = jnp.mean((y - mu) ** 2, axis=-1, keepdims=True)
    h_new = (y - mu) * lax.rsqrt(var + 1e-5) * ln_g_ref[...] + ln_b_ref[...]
    hid_ref[...] = h_new[None]

    # ---- last step: mean pooling + prediction heads (attention_mask=None path) ----
    # TODO(synk): attention_mask masking / masked pooling path not implemented (mask=None).
    @pl.when(l == num_layers - 1)
    def _():
        pooled = jnp.mean(h_new, axis=0, keepdims=True)                           # (1, D)
        skill_ref[...] = jax.nn.sigmoid(
            jnp.dot(pooled, ws_ref[...], preferred_element_type=jnp.float32)
            + bs_ref[...])[None]
        logits = jnp.dot(pooled, wd_ref[...],
                         preferred_element_type=jnp.float32) + bd_ref[...]
        diff_ref[...] = jax.nn.softmax(logits, axis=-1)[None]
        eng_ref[...] = jax.nn.sigmoid(
            jnp.dot(pooled, we_ref[...], preferred_element_type=jnp.float32)
            + be_ref[...])[None]


# ---------------------------------------------------------------------------
# Parameter packing: stack per-layer weights, fuse projections, fold entanglement.
# ---------------------------------------------------------------------------
def _block_diag(a, b):
    za = jnp.zeros((a.shape[0], b.shape[1]), a.dtype)
    zb = jnp.zeros((b.shape[0], a.shape[1]), b.dtype)
    return jnp.concatenate([jnp.concatenate([a, za], axis=1),
                            jnp.concatenate([zb, b], axis=1)], axis=0)


def pack_params(params, d_model, qdim):
    D, Qd = d_model, qdim
    W_in, b_in, W_ev, W_meas, Wo, bo, ln_g, ln_b = ([] for _ in range(8))
    for layer in params['layers']:
        wlq, blq, supq, qwrq, qwiq, entq, measq = layer['qq']
        wlk, blk, supk, qwrk, qwik, entk, meask = layer['qk']
        W_in.append(jnp.concatenate(
            [layer['wq'], layer['wk'], layer['wv'], wlq, wlk, supq, supk], axis=1))
        b_in.append(jnp.concatenate(
            [layer['bq'], layer['bk'], layer['bv'], blq, blk,
             jnp.zeros((1, 2 * Qd), jnp.float32)], axis=1))
        # Fold the entanglement matrix into the (real, imag) quantum weights
        # (associative: qs @ Wr @ E == qs @ (Wr @ E)), and stack q/k block-diagonally.
        arq, aiq = qwrq @ entq, qwiq @ entq
        ark, aik = qwrk @ entk, qwik @ entk
        W_ev.append(jnp.concatenate([_block_diag(arq, ark),
                                     _block_diag(aiq, aik)], axis=1))
        W_meas.append(_block_diag(measq, meask))
        Wo.append(layer['wo']); bo.append(layer['bo'])
        ln_g.append(layer['ln_g']); ln_b.append(layer['ln_b'])
    st = lambda xs: jnp.stack(xs, axis=0)
    return dict(W_in=st(W_in), b_in=st(b_in), W_ev=st(W_ev), W_meas=st(W_meas),
                Wo=st(Wo), bo=st(bo), ln_g=st(ln_g), ln_b=st(ln_b))


# ---------------------------------------------------------------------------
# Full forward pass (attention_mask=None path; pooled = mean over seq)
# ---------------------------------------------------------------------------
def multimodal_transformer_forward(params, text_input, visual_input, temporal_input,
                                   nhead, pos_enc, qdim=QDIM):
    B, S = text_input.shape
    D = params['embedding'].shape[1]
    L = len(params['layers'])
    H = nhead
    assert D % H == 0
    Wproj = 5 * D + 2 * qdim

    packed = pack_params(params, D, qdim)

    text_emb = params['embedding'][text_input].astype(jnp.float32)   # gather (glue in JAX)
    visual_r = visual_input.reshape(B, 1, -1).astype(jnp.float32)
    temporal_r = temporal_input.reshape(B, 1, -1).astype(jnp.float32)
    pos = pos_enc[:S]

    const_spec = lambda shape: pl.BlockSpec(shape, lambda b, l: (0,) * len(shape))
    batch_spec = lambda shape: pl.BlockSpec(shape, lambda b, l: (b,) + (0,) * (len(shape) - 1))
    layer_spec = lambda shape: pl.BlockSpec((None,) + shape,
                                            lambda b, l: (l,) + (0,) * len(shape))

    in_specs = [
        batch_spec((1, S, D)),                 # text_emb
        batch_spec((1, 1, visual_r.shape[-1])),    # visual
        const_spec((visual_r.shape[-1], D)),   # wv_enc
        const_spec((1, D)),                    # bv_enc
        batch_spec((1, 1, temporal_r.shape[-1])),  # temporal
        const_spec((temporal_r.shape[-1], D)), # wt_enc
        const_spec((1, D)),                    # bt_enc
        const_spec((S, D)),                    # pos
        const_spec((D, 64)), const_spec((1, 64)),   # skill head
        const_spec((D, 5)),  const_spec((1, 5)),    # difficulty head
        const_spec((D, 1)),  const_spec((1, 1)),    # engagement head
        layer_spec((D, Wproj)), layer_spec((1, Wproj)),        # W_in, b_in
        layer_spec((2 * qdim, 4 * qdim)),                      # W_ev (real|imag, block-diag)
        layer_spec((2 * qdim, 2 * D)),                         # W_meas (block-diag)
        layer_spec((D, D)), layer_spec((1, D)),                # Wo, bo
        layer_spec((1, D)), layer_spec((1, D)),                # ln_g, ln_b
    ]
    out_specs = (
        batch_spec((1, S, D)),                                           # hidden (resident)
        pl.BlockSpec((1, None, H, S, S), lambda b, l: (b, l, 0, 0, 0)),  # attn
        batch_spec((1, 1, 64)),                                          # skill
        batch_spec((1, 1, 5)),                                           # difficulty
        batch_spec((1, 1, 1)),                                           # engagement
    )
    out_shape = (
        jax.ShapeDtypeStruct((B, S, D), jnp.float32),
        jax.ShapeDtypeStruct((B, L, H, S, S), jnp.float32),
        jax.ShapeDtypeStruct((B, 1, 64), jnp.float32),
        jax.ShapeDtypeStruct((B, 1, 5), jnp.float32),
        jax.ShapeDtypeStruct((B, 1, 1), jnp.float32),
    )

    hidden, attn_all, skill, diff, eng = pl.pallas_call(
        functools.partial(_fused_forward_kernel, D, H, qdim),
        grid=(B, L),
        in_specs=in_specs,
        out_specs=out_specs,
        out_shape=out_shape,
        compiler_params=pltpu.CompilerParams(
            dimension_semantics=("parallel", "arbitrary")),
    )(text_emb, visual_r, params['wv_enc'], params['bv_enc'],
      temporal_r, params['wt_enc'], params['bt_enc'], pos,
      params['ws'], params['bs'], params['wd'], params['bd'],
      params['we'], params['be'],
      packed['W_in'], packed['b_in'], packed['W_ev'], packed['W_meas'],
      packed['Wo'], packed['bo'], packed['ln_g'], packed['ln_b'])

    attention_weights = [attn_all[:, i] for i in range(L)]
    return {'skill_scores': skill[:, 0, :], 'difficulty_probs': diff[:, 0, :],
            'engagement': eng[:, 0, :], 'hidden_states': hidden,
            'attention_weights': attention_weights}


# ---------------------------------------------------------------------------
# Parameter init + positional encoding (deterministic, synthetic)
# ---------------------------------------------------------------------------
def positional_encoding(max_len, d_model):
    position = jnp.arange(max_len, dtype=jnp.float32)[:, None]
    div_term = jnp.exp(jnp.arange(0, d_model, 2, dtype=jnp.float32)
                       * -(math.log(10000.0) / d_model))
    pe = jnp.zeros((max_len, d_model), jnp.float32)
    pe = pe.at[:, 0::2].set(jnp.sin(position * div_term))
    pe = pe.at[:, 1::2].set(jnp.cos(position * div_term))
    return pe


def init_params(key, vocab_size, d_model, num_layers):
    keys = iter(jax.random.split(key, 256))

    def nrm(shape, scale=0.05):
        return (scale * jax.random.normal(next(keys), shape)).astype(jnp.float32)

    def quantum_params():
        return (nrm((d_model, d_model)), nrm((1, d_model)),   # inner nn.Linear (W^T, b)
                nrm((d_model, QDIM)),                         # superposition_gate
                nrm((QDIM, QDIM)), nrm((QDIM, QDIM)),         # quantum_weights (real, imag)
                nrm((QDIM, QDIM)),                            # entanglement_matrix
                nrm((QDIM, d_model)))                         # measurement_basis

    params = {
        'embedding': nrm((vocab_size, d_model)),
        'wv_enc': nrm((2048, d_model)), 'bv_enc': nrm((1, d_model)),
        'wt_enc': nrm((64, d_model)),   'bt_enc': nrm((1, d_model)),
        'ws': nrm((d_model, 64)), 'bs': nrm((1, 64)),
        'wd': nrm((d_model, 5)),  'bd': nrm((1, 5)),
        'we': nrm((d_model, 1)),  'be': nrm((1, 1)),
        'layers': [],
    }
    for _ in range(num_layers):
        params['layers'].append(dict(
            wq=nrm((d_model, d_model)), bq=nrm((1, d_model)),
            wk=nrm((d_model, d_model)), bk=nrm((1, d_model)),
            wv=nrm((d_model, d_model)), bv=nrm((1, d_model)),
            wo=nrm((d_model, d_model)), bo=nrm((1, d_model)),
            qq=quantum_params(), qk=quantum_params(),
            ln_g=jnp.ones((1, d_model), jnp.float32),
            ln_b=jnp.zeros((1, d_model), jnp.float32)))
    return params


if __name__ == "__main__":
    vocab_size, d_model, nhead, num_layers = 100, 32, 4, 2
    B, S = 2, 8

    key = jax.random.PRNGKey(0)
    kp, kt, kv, ktmp = jax.random.split(key, 4)

    params = init_params(kp, vocab_size, d_model, num_layers)
    pos_enc = positional_encoding(1000, d_model)

    text_input = jax.random.randint(kt, (B, S), 0, vocab_size, dtype=jnp.int32)
    visual_input = jax.random.normal(kv, (B, 2048), dtype=jnp.float32)
    temporal_input = jax.random.normal(ktmp, (B, 64), dtype=jnp.float32)

    out = multimodal_transformer_forward(params, text_input, visual_input,
                                         temporal_input, nhead, pos_enc)
    jax.tree_util.tree_map(jax.block_until_ready, out)

    assert out['skill_scores'].shape == (B, 64)
    assert out['difficulty_probs'].shape == (B, 5)
    assert out['engagement'].shape == (B, 1)
    assert out['hidden_states'].shape == (B, S, d_model)
    assert out['attention_weights'][0].shape == (B, nhead, S, S)
    assert len(out['attention_weights']) == num_layers
    # attention rows should sum to ~1 and difficulty probs to ~1
    row_sums = jnp.sum(out['attention_weights'][0], axis=-1)
    assert jnp.allclose(row_sums, 1.0, atol=1e-2)
    assert jnp.allclose(jnp.sum(out['difficulty_probs'], axis=-1), 1.0, atol=1e-3)
    print("KERNEL_OK")
</pallas_src>

<mosaic_0001>
module attributes {stable_mosaic.version = 11 : i64} {
  func.func @_fused_forward_kernel(%arg0: i32, %arg1: i32, %arg2: memref<1x8x32xf32, #tpu.memory_space<vmem>>, %arg3: memref<1x1x2048xf32, #tpu.memory_space<vmem>>, %arg4: memref<2048x32xf32, #tpu.memory_space<vmem>>, %arg5: memref<1x32xf32, #tpu.memory_space<vmem>>, %arg6: memref<1x1x64xf32, #tpu.memory_space<vmem>>, %arg7: memref<64x32xf32, #tpu.memory_space<vmem>>, %arg8: memref<1x32xf32, #tpu.memory_space<vmem>>, %arg9: memref<8x32xf32, #tpu.memory_space<vmem>>, %arg10: memref<32x64xf32, #tpu.memory_space<vmem>>, %arg11: memref<1x64xf32, #tpu.memory_space<vmem>>, %arg12: memref<32x5xf32, #tpu.memory_space<vmem>>, %arg13: memref<1x5xf32, #tpu.memory_space<vmem>>, %arg14: memref<32x1xf32, #tpu.memory_space<vmem>>, %arg15: memref<1x1xf32, #tpu.memory_space<vmem>>, %arg16: memref<1x32x192xf32, #tpu.memory_space<vmem>>, %arg17: memref<1x1x192xf32, #tpu.memory_space<vmem>>, %arg18: memref<1x32x64xf32, #tpu.memory_space<vmem>>, %arg19: memref<1x32x64xf32, #tpu.memory_space<vmem>>, %arg20: memref<1x32x32xf32, #tpu.memory_space<vmem>>, %arg21: memref<1x1x32xf32, #tpu.memory_space<vmem>>, %arg22: memref<1x1x32xf32, #tpu.memory_space<vmem>>, %arg23: memref<1x1x32xf32, #tpu.memory_space<vmem>>, %arg24: memref<1x8x32xf32, #tpu.memory_space<vmem>>, %arg25: memref<1x1x4x8x8xf32, #tpu.memory_space<vmem>>, %arg26: memref<1x1x64xf32, #tpu.memory_space<vmem>>, %arg27: memref<1x1x5xf32, #tpu.memory_space<vmem>>, %arg28: memref<1x1x1xf32, #tpu.memory_space<vmem>>) attributes {dimension_semantics = [#tpu.dimension_semantics<parallel>, #tpu.dimension_semantics<arbitrary>], iteration_bounds = array<i64: 2, 2>, scalar_prefetch = 0 : i64, scratch_operands = 0 : i64, tpu.core_type = #tpu.core_type<tc>, window_params = [{transform_indices = @transform_0, window_bounds = array<i64: 1, 8, 32>}, {transform_indices = @transform_1, window_bounds = array<i64: 1, 1, 2048>}, {pipeline_mode = #tpu.pipeline_mode<synchronous>, transform_indices = @transform_2, window_bounds = array<i64: 2048, 32>}, {pipeline_mode = #tpu.pipeline_mode<synchronous>, transform_indices = @transform_3, window_bounds = array<i64: 1, 32>}, {transform_indices = @transform_4, window_bounds = array<i64: 1, 1, 64>}, {pipeline_mode = #tpu.pipeline_mode<synchronous>, transform_indices = @transform_5, window_bounds = array<i64: 64, 32>}, {pipeline_mode = #tpu.pipeline_mode<synchronous>, transform_indices = @transform_6, window_bounds = array<i64: 1, 32>}, {pipeline_mode = #tpu.pipeline_mode<synchronous>, transform_indices = @transform_7, window_bounds = array<i64: 8, 32>}, {pipeline_mode = #tpu.pipeline_mode<synchronous>, transform_indices = @transform_8, window_bounds = array<i64: 32, 64>}, {pipeline_mode = #tpu.pipeline_mode<synchronous>, transform_indices = @transform_9, window_bounds = array<i64: 1, 64>}, {pipeline_mode = #tpu.pipeline_mode<synchronous>, transform_indices = @transform_10, window_bounds = array<i64: 32, 5>}, {pipeline_mode = #tpu.pipeline_mode<synchronous>, transform_indices = @transform_11, window_bounds = array<i64: 1, 5>}, {pipeline_mode = #tpu.pipeline_mode<synchronous>, transform_indices = @transform_12, window_bounds = array<i64: 32, 1>}, {pipeline_mode = #tpu.pipeline_mode<synchronous>, transform_indices = @transform_13, window_bounds = array<i64: 1, 1>}, {transform_indices = @transform_14, window_bounds = array<i64: 1, 32, 192>}, {transform_indices = @transform_15, window_bounds = array<i64: 1, 1, 192>}, {transform_indices = @transform_16, window_bounds = array<i64: 1, 32, 64>}, {transform_indices = @transform_17, window_bounds = array<i64: 1, 32, 64>}, {transform_indices = @transform_18, window_bounds = array<i64: 1, 32, 32>}, {transform_indices = @transform_19, window_bounds = array<i64: 1, 1, 32>}, {transform_indices = @transform_20, window_bounds = array<i64: 1, 1, 32>}, {transform_indices = @transform_21, window_bounds = array<i64: 1, 1, 32>}, {transform_indices = @transform_22, window_bounds = array<i64: 1, 8, 32>}, {transform_indices = @transform_23, window_bounds = array<i64: 1, 1, 4, 8, 8>}, {transform_indices = @transform_24, window_bounds = array<i64: 1, 1, 64>}, {transform_indices = @transform_25, window_bounds = array<i64: 1, 1, 5>}, {transform_indices = @transform_26, window_bounds = array<i64: 1, 1, 1>}]} {
    %c0_i32 = arith.constant 0 : i32
    %0 = arith.cmpi eq, %arg1, %c0_i32 : i32
    %1 = arith.extui %0 : i1 to i32
    %c0_i32_0 = arith.constant 0 : i32
    %2 = arith.cmpi ne, %1, %c0_i32_0 : i32
    scf.if %2 {
      %c0_63 = arith.constant 0 : index
      %c0_64 = arith.constant 0 : index
      %c0_65 = arith.constant 0 : index
      %150 = vector.load %arg3[%c0_63, %c0_64, %c0_65] : memref<1x1x2048xf32, #tpu.memory_space<vmem>>, vector<1x1x2048xf32>
      %151 = vector.shape_cast %150 : vector<1x1x2048xf32> to vector<1x2048xf32>
      %c0_66 = arith.constant 0 : index
      %c0_67 = arith.constant 0 : index
      %152 = vector.load %arg4[%c0_66, %c0_67] : memref<2048x32xf32, #tpu.memory_space<vmem>>, vector<2048x32xf32>
      %cst_68 = arith.constant dense<0.000000e+00> : vector<1x32xf32>
      %153 = tpu.matmul %151, %152, %cst_68 {dimension_numbers = #tpu.dot_dimension_numbers<[1], [0], [0], [1], [0, 0, 1, 1], [], []>} : vector<1x2048xf32>, vector<2048x32xf32>, vector<1x32xf32> -> vector<1x32xf32>
      %c0_69 = arith.constant 0 : index
      %c0_70 = arith.constant 0 : index
      %154 = vector.load %arg5[%c0_69, %c0_70] : memref<1x32xf32, #tpu.memory_space<vmem>>, vector<1x32xf32>
      %155 = arith.addf %153, %154 : vector<1x32xf32>
      %c0_71 = arith.constant 0 : index
      %c0_72 = arith.constant 0 : index
      %c0_73 = arith.constant 0 : index
      %156 = vector.load %arg6[%c0_71, %c0_72, %c0_73] : memref<1x1x64xf32, #tpu.memory_space<vmem>>, vector<1x1x64xf32>
      %157 = vector.shape_cast %156 : vector<1x1x64xf32> to vector<1x64xf32>
      %c0_74 = arith.constant 0 : index
      %c0_75 = arith.constant 0 : index
      %158 = vector.load %arg7[%c0_74, %c0_75] : memref<64x32xf32, #tpu.memory_space<vmem>>, vector<64x32xf32>
      %cst_76 = arith.constant dense<0.000000e+00> : vector<1x32xf32>
      %159 = tpu.matmul %157, %158, %cst_76 {dimension_numbers = #tpu.dot_dimension_numbers<[1], [0], [0], [1], [0, 0, 1, 1], [], []>} : vector<1x64xf32>, vector<64x32xf32>, vector<1x32xf32> -> vector<1x32xf32>
      %c0_77 = arith.constant 0 : index
      %c0_78 = arith.constant 0 : index
      %160 = vector.load %arg8[%c0_77, %c0_78] : memref<1x32xf32, #tpu.memory_space<vmem>>, vector<1x32xf32>
      %161 = arith.addf %159, %160 : vector<1x32xf32>
      %c0_79 = arith.constant 0 : index
      %c0_80 = arith.constant 0 : index
      %c0_81 = arith.constant 0 : index
      %162 = vector.load %arg2[%c0_79, %c0_80, %c0_81] : memref<1x8x32xf32, #tpu.memory_space<vmem>>, vector<1x8x32xf32>
      %163 = vector.shape_cast %155 : vector<1x32xf32> to vector<1x1x32xf32>
      %164 = vector.broadcast %163 : vector<1x1x32xf32> to vector<1x8x32xf32>
      %165 = arith.addf %162, %164 : vector<1x8x32xf32>
      %166 = vector.shape_cast %161 : vector<1x32xf32> to vector<1x1x32xf32>
      %167 = vector.broadcast %166 : vector<1x1x32xf32> to vector<1x8x32xf32>
      %168 = arith.addf %165, %167 : vector<1x8x32xf32>
      %c0_82 = arith.constant 0 : index
      %c0_83 = arith.constant 0 : index
      %169 = vector.load %arg9[%c0_82, %c0_83] : memref<8x32xf32, #tpu.memory_space<vmem>>, vector<8x32xf32>
      %170 = vector.shape_cast %169 : vector<8x32xf32> to vector<1x8x32xf32>
      %171 = arith.addf %168, %170 : vector<1x8x32xf32>
      %c0_84 = arith.constant 0 : index
      %c0_85 = arith.constant 0 : index
      %c0_86 = arith.constant 0 : index
      %172 = vector.load %arg24[%c0_84, %c0_85, %c0_86] : memref<1x8x32xf32, #tpu.memory_space<vmem>>, vector<1x8x32xf32>
      tpu.vector_store %arg24[%c0_84, %c0_85, %c0_86], %171 {strides = array<i32>} : memref<1x8x32xf32, #tpu.memory_space<vmem>>, vector<1x8x32xf32>,
    } else {
    }
    %c0 = arith.constant 0 : index
    %c0_1 = arith.constant 0 : index
    %c0_2 = arith.constant 0 : index
    %3 = vector.load %arg24[%c0, %c0_1, %c0_2] : memref<1x8x32xf32, #tpu.memory_space<vmem>>, vector<1x8x32xf32>
    %4 = vector.shape_cast %3 : vector<1x8x32xf32> to vector<8x32xf32>
    %c0_3 = arith.constant 0 : index
    %c0_4 = arith.constant 0 : index
    %c0_5 = arith.constant 0 : index
    %5 = vector.load %arg16[%c0_3, %c0_4, %c0_5] : memref<1x32x192xf32, #tpu.memory_space<vmem>>, vector<1x32x192xf32>
    %6 = vector.shape_cast %5 : vector<1x32x192xf32> to vector<32x192xf32>
    %cst = arith.constant dense<0.000000e+00> : vector<8x192xf32>
    %7 = tpu.matmul %4, %6, %cst {dimension_numbers = #tpu.dot_dimension_numbers<[1], [0], [0], [1], [0, 0, 1, 1], [], []>} : vector<8x32xf32>, vector<32x192xf32>, vector<8x192xf32> -> vector<8x192xf32>
    %c0_6 = arith.constant 0 : index
    %c0_7 = arith.constant 0 : index
    %c0_8 = arith.constant 0 : index
    %8 = vector.load %arg17[%c0_6, %c0_7, %c0_8] : memref<1x1x192xf32, #tpu.memory_space<vmem>>, vector<1x1x192xf32>
    %9 = vector.shape_cast %8 : vector<1x1x192xf32> to vector<1x192xf32>
    %10 = vector.broadcast %9 : vector<1x192xf32> to vector<8x192xf32>
    %11 = arith.addf %7, %10 : vector<8x192xf32>
    %12 = vector.extract_strided_slice %11 {offsets = [0, 0], sizes = [8, 32], strides = [1, 1]} : vector<8x192xf32> to vector<8x32xf32>
    %13 = vector.extract_strided_slice %11 {offsets = [0, 32], sizes = [8, 32], strides = [1, 1]} : vector<8x192xf32> to vector<8x32xf32>
    %14 = vector.extract_strided_slice %11 {offsets = [0, 64], sizes = [8, 32], strides = [1, 1]} : vector<8x192xf32> to vector<8x32xf32>
    %15 = vector.extract_strided_slice %11 {offsets = [0, 96], sizes = [8, 64], strides = [1, 1]} : vector<8x192xf32> to vector<8x64xf32>
    %16 = math.tanh %15 : vector<8x64xf32>
    %17 = vector.extract_strided_slice %11 {offsets = [0, 160], sizes = [8, 32], strides = [1, 1]} : vector<8x192xf32> to vector<8x32xf32>
    %c0_9 = arith.constant 0 : index
    %c0_10 = arith.constant 0 : index
    %c0_11 = arith.constant 0 : index
    %18 = vector.load %arg18[%c0_9, %c0_10, %c0_11] : memref<1x32x64xf32, #tpu.memory_space<vmem>>, vector<1x32x64xf32>
    %19 = vector.shape_cast %18 : vector<1x32x64xf32> to vector<32x64xf32>
    %cst_12 = arith.constant dense<0.000000e+00> : vector<8x64xf32>
    %20 = tpu.matmul %17, %19, %cst_12 {dimension_numbers = #tpu.dot_dimension_numbers<[1], [0], [0], [1], [0, 0, 1, 1], [], []>} : vector<8x32xf32>, vector<32x64xf32>, vector<8x64xf32> -> vector<8x64xf32>
    %21 = vector.extract_strided_slice %20 {offsets = [0, 0], sizes = [8, 32], strides = [1, 1]} : vector<8x64xf32> to vector<8x32xf32>
    %22 = vector.extract_strided_slice %20 {offsets = [0, 32], sizes = [8, 32], strides = [1, 1]} : vector<8x64xf32> to vector<8x32xf32>
    %23 = arith.mulf %21, %21 : vector<8x32xf32>
    %24 = arith.mulf %22, %22 : vector<8x32xf32>
    %25 = arith.addf %23, %24 : vector<8x32xf32>
    %c0_13 = arith.constant 0 : index
    %c0_14 = arith.constant 0 : index
    %c0_15 = arith.constant 0 : index
    %26 = vector.load %arg19[%c0_13, %c0_14, %c0_15] : memref<1x32x64xf32, #tpu.memory_space<vmem>>, vector<1x32x64xf32>
    %27 = vector.shape_cast %26 : vector<1x32x64xf32> to vector<32x64xf32>
    %cst_16 = arith.constant dense<0.000000e+00> : vector<8x64xf32>
    %28 = tpu.matmul %25, %27, %cst_16 {dimension_numbers = #tpu.dot_dimension_numbers<[1], [0], [0], [1], [0, 0, 1, 1], [], []>} : vector<8x32xf32>, vector<32x64xf32>, vector<8x64xf32> -> vector<8x64xf32>
    %29 = vector.extract_strided_slice %25 {offsets = [0, 0], sizes = [8, 16], strides = [1, 1]} : vector<8x32xf32> to vector<8x16xf32>
    %cst_17 = arith.constant dense<0.000000e+00> : vector<8xf32>
    %30 = vector.multi_reduction <add>, %29, %cst_17 [1] : vector<8x16xf32> to vector<8xf32>
    %31 = vector.shape_cast %30 : vector<8xf32> to vector<8x1xf32>
    %cst_18 = arith.constant 1.600000e+01 : f32
    %32 = vector.broadcast %cst_18 : f32 to vector<8x1xf32>
    %33 = arith.divf %31, %32 : vector<8x1xf32>
    %34 = arith.negf %33 : vector<8x1xf32>
    %35 = math.exp %34 : vector<8x1xf32>
    %cst_19 = arith.constant 1.000000e+00 : f32
    %36 = vector.broadcast %cst_19 : f32 to vector<8x1xf32>
    %37 = arith.addf %36, %35 : vector<8x1xf32>
    %38 = arith.divf %36, %37 : vector<8x1xf32>
    %39 = vector.extract_strided_slice %25 {offsets = [0, 16], sizes = [8, 16], strides = [1, 1]} : vector<8x32xf32> to vector<8x16xf32>
    %cst_20 = arith.constant dense<0.000000e+00> : vector<8xf32>
    %40 = vector.multi_reduction <add>, %39, %cst_20 [1] : vector<8x16xf32> to vector<8xf32>
    %41 = vector.shape_cast %40 : vector<8xf32> to vector<8x1xf32>
    %cst_21 = arith.constant 1.600000e+01 : f32
    %42 = vector.broadcast %cst_21 : f32 to vector<8x1xf32>
    %43 = arith.divf %41, %42 : vector<8x1xf32>
    %44 = arith.negf %43 : vector<8x1xf32>
    %45 = math.exp %44 : vector<8x1xf32>
    %cst_22 = arith.constant 1.000000e+00 : f32
    %46 = vector.broadcast %cst_22 : f32 to vector<8x1xf32>
    %47 = arith.addf %46, %45 : vector<8x1xf32>
    %48 = arith.divf %46, %47 : vector<8x1xf32>
    %49 = vector.extract_strided_slice %28 {offsets = [0, 0], sizes = [8, 32], strides = [1, 1]} : vector<8x64xf32> to vector<8x32xf32>
    %50 = vector.broadcast %38 : vector<8x1xf32> to vector<8x32xf32>
    %51 = arith.mulf %50, %49 : vector<8x32xf32>
    %cst_23 = arith.constant 1.000000e+00 : f32
    %52 = vector.broadcast %cst_23 : f32 to vector<8x1xf32>
    %53 = arith.subf %52, %38 : vector<8x1xf32>
    %54 = vector.extract_strided_slice %16 {offsets = [0, 0], sizes = [8, 32], strides = [1, 1]} : vector<8x64xf32> to vector<8x32xf32>
    %55 = vector.broadcast %53 : vector<8x1xf32> to vector<8x32xf32>
    %56 = arith.mulf %55, %54 : vector<8x32xf32>
    %57 = arith.addf %51, %56 : vector<8x32xf32>
    %58 = vector.extract_strided_slice %28 {offsets = [0, 32], sizes = [8, 32], strides = [1, 1]} : vector<8x64xf32> to vector<8x32xf32>
    %59 = vector.broadcast %48 : vector<8x1xf32> to vector<8x32xf32>
    %60 = arith.mulf %59, %58 : vector<8x32xf32>
    %cst_24 = arith.constant 1.000000e+00 : f32
    %61 = vector.broadcast %cst_24 : f32 to vector<8x1xf32>
    %62 = arith.subf %61, %48 : vector<8x1xf32>
    %63 = vector.extract_strided_slice %16 {offsets = [0, 32], sizes = [8, 32], strides = [1, 1]} : vector<8x64xf32> to vector<8x32xf32>
    %64 = vector.broadcast %62 : vector<8x1xf32> to vector<8x32xf32>
    %65 = arith.mulf %64, %63 : vector<8x32xf32>
    %66 = arith.addf %60, %65 : vector<8x32xf32>
    %cst_25 = arith.constant 0.699999988 : f32
    %67 = vector.broadcast %cst_25 : f32 to vector<8x32xf32>
    %68 = arith.mulf %67, %12 : vector<8x32xf32>
    %cst_26 = arith.constant 3.000000e-01 : f32
    %69 = vector.broadcast %cst_26 : f32 to vector<8x32xf32>
    %70 = arith.mulf %69, %57 : vector<8x32xf32>
    %71 = arith.addf %68, %70 : vector<8x32xf32>
    %cst_27 = arith.constant 0.699999988 : f32
    %72 = vector.broadcast %cst_27 : f32 to vector<8x32xf32>
    %73 = arith.mulf %72, %13 : vector<8x32xf32>
    %cst_28 = arith.constant 3.000000e-01 : f32
    %74 = vector.broadcast %cst_28 : f32 to vector<8x32xf32>
    %75 = arith.mulf %74, %66 : vector<8x32xf32>
    %76 = arith.addf %73, %75 : vector<8x32xf32>
    %77 = vector.extract_strided_slice %25 {offsets = [0, 0], sizes = [8, 16], strides = [1, 1]} : vector<8x32xf32> to vector<8x16xf32>
    %78 = vector.extract_strided_slice %25 {offsets = [0, 16], sizes = [8, 16], strides = [1, 1]} : vector<8x32xf32> to vector<8x16xf32>
    %cst_29 = arith.constant dense<0.000000e+00> : vector<8x8xf32>
    %79 = tpu.matmul %77, %78, %cst_29 {dimension_numbers = #tpu.dot_dimension_numbers<[1], [1], [0], [0], [0, 0, 1, 0], [], []>} : vector<8x16xf32>, vector<8x16xf32>, vector<8x8xf32> -> vector<8x8xf32>
    %80 = tpu.transpose %71, [1, 0] : vector<8x32xf32> -> vector<32x8xf32>
    %81 = vector.shape_cast %80 : vector<32x8xf32> to vector<4x8x8xf32>
    %82 = tpu.transpose %76, [1, 0] : vector<8x32xf32> -> vector<32x8xf32>
    %83 = vector.shape_cast %82 : vector<32x8xf32> to vector<4x8x8xf32>
    %84 = tpu.transpose %14, [1, 0] : vector<8x32xf32> -> vector<32x8xf32>
    %85 = vector.shape_cast %84 : vector<32x8xf32> to vector<4x8x8xf32>
    %cst_30 = arith.constant dense<0.000000e+00> : vector<4x8x8xf32>
    %86 = tpu.matmul %81, %83, %cst_30 {dimension_numbers = #tpu.dot_dimension_numbers<[1], [1], [2], [2], [0, 0, 0, 2, 1, 2], [0], [0]>} : vector<4x8x8xf32>, vector<4x8x8xf32>, vector<4x8x8xf32> -> vector<4x8x8xf32>
    %cst_31 = arith.constant 0.353553385 : f32
    %87 = vector.broadcast %cst_31 : f32 to vector<4x8x8xf32>
    %88 = arith.mulf %86, %87 : vector<4x8x8xf32>
    %89 = vector.shape_cast %79 : vector<8x8xf32> to vector<1x8x8xf32>
    %cst_32 = arith.constant 1.000000e-01 : f32
    %90 = vector.broadcast %cst_32 : f32 to vector<1x8x8xf32>
    %91 = arith.mulf %90, %89 : vector<1x8x8xf32>
    %92 = vector.broadcast %91 : vector<1x8x8xf32> to vector<4x8x8xf32>
    %93 = arith.addf %88, %92 : vector<4x8x8xf32>
    %cst_33 = arith.constant dense<0xFF800000> : vector<4x8xf32>
    %94 = vector.multi_reduction <maximumf>, %93, %cst_33 [2] : vector<4x8x8xf32> to vector<4x8xf32>
    %95 = vector.shape_cast %94 : vector<4x8xf32> to vector<4x8x1xf32>
    %96 = vector.broadcast %95 : vector<4x8x1xf32> to vector<4x8x8xf32>
    %97 = arith.subf %93, %96 : vector<4x8x8xf32>
    %98 = math.exp %97 : vector<4x8x8xf32>
    %cst_34 = arith.constant dense<0.000000e+00> : vector<4x8xf32>
    %99 = vector.multi_reduction <add>, %98, %cst_34 [2] : vector<4x8x8xf32> to vector<4x8xf32>
    %100 = vector.shape_cast %99 : vector<4x8xf32> to vector<4x8x1xf32>
    %101 = tpu.reciprocal %100 {approx = true} : vector<4x8x1xf32> -> vector<4x8x1xf32>
    %102 = vector.broadcast %101 : vector<4x8x1xf32> to vector<4x8x8xf32>
    %103 = arith.mulf %98, %102 : vector<4x8x8xf32>
    %104 = vector.shape_cast %103 : vector<4x8x8xf32> to vector<1x4x8x8xf32>
    %c0_35 = arith.constant 0 : index
    %c0_36 = arith.constant 0 : index
    %c0_37 = arith.constant 0 : index
    %c0_38 = arith.constant 0 : index
    %c0_39 = arith.constant 0 : index
    %105 = vector.load %arg25[%c0_35, %c0_36, %c0_37, %c0_38, %c0_39] : memref<1x1x4x8x8xf32, #tpu.memory_space<vmem>>, vector<1x1x4x8x8xf32>
    %106 = vector.shape_cast %105 : vector<1x1x4x8x8xf32> to vector<1x4x8x8xf32>
    %107 = vector.shape_cast %104 : vector<1x4x8x8xf32> to vector<1x1x4x8x8xf32>
    tpu.vector_store %arg25[%c0_35, %c0_36, %c0_37, %c0_38, %c0_39], %107 {strides = array<i32>} : memref<1x1x4x8x8xf32, #tpu.memory_space<vmem>>, vector<1x1x4x8x8xf32>,
    %cst_40 = arith.constant dense<0.000000e+00> : vector<4x8x8xf32>
    %108 = tpu.matmul %85, %103, %cst_40 {dimension_numbers = #tpu.dot_dimension_numbers<[2], [2], [1], [1], [0, 0, 0, 1, 1, 1], [0], [0]>} : vector<4x8x8xf32>, vector<4x8x8xf32>, vector<4x8x8xf32> -> vector<4x8x8xf32>
    %109 = vector.shape_cast %108 : vector<4x8x8xf32> to vector<32x8xf32>
    %110 = tpu.transpose %109, [1, 0] : vector<32x8xf32> -> vector<8x32xf32>
    %c0_41 = arith.constant 0 : index
    %c0_42 = arith.constant 0 : index
    %c0_43 = arith.constant 0 : index
    %111 = vector.load %arg20[%c0_41, %c0_42, %c0_43] : memref<1x32x32xf32, #tpu.memory_space<vmem>>, vector<1x32x32xf32>
    %112 = vector.shape_cast %111 : vector<1x32x32xf32> to vector<32x32xf32>
    %cst_44 = arith.constant dense<0.000000e+00> : vector<8x32xf32>
    %113 = tpu.matmul %110, %112, %cst_44 {dimension_numbers = #tpu.dot_dimension_numbers<[1], [0], [0], [1], [0, 0, 1, 1], [], []>} : vector<8x32xf32>, vector<32x32xf32>, vector<8x32xf32> -> vector<8x32xf32>
    %c0_45 = arith.constant 0 : index
    %c0_46 = arith.constant 0 : index
    %c0_47 = arith.constant 0 : index
    %114 = vector.load %arg21[%c0_45, %c0_46, %c0_47] : memref<1x1x32xf32, #tpu.memory_space<vmem>>, vector<1x1x32xf32>
    %115 = vector.shape_cast %114 : vector<1x1x32xf32> to vector<1x32xf32>
    %116 = vector.broadcast %115 : vector<1x32xf32> to vector<8x32xf32>
    %117 = arith.addf %113, %116 : vector<8x32xf32>
    %118 = arith.addf %117, %4 : vector<8x32xf32>
    %cst_48 = arith.constant dense<0.000000e+00> : vector<8xf32>
    %119 = vector.multi_reduction <add>, %118, %cst_48 [1] : vector<8x32xf32> to vector<8xf32>
    %120 = vector.shape_cast %119 : vector<8xf32> to vector<8x1xf32>
    %cst_49 = arith.constant 3.200000e+01 : f32
    %121 = vector.broadcast %cst_49 : f32 to vector<8x1xf32>
    %122 = arith.divf %120, %121 : vector<8x1xf32>
    %123 = vector.broadcast %122 : vector<8x1xf32> to vector<8x32xf32>
    %124 = arith.subf %118, %123 : vector<8x32xf32>
    %125 = arith.mulf %124, %124 : vector<8x32xf32>
    %cst_50 = arith.constant dense<0.000000e+00> : vector<8xf32>
    %126 = vector.multi_reduction <add>, %125, %cst_50 [1] : vector<8x32xf32> to vector<8xf32>
    %127 = vector.shape_cast %126 : vector<8xf32> to vector<8x1xf32>
    %cst_51 = arith.constant 3.200000e+01 : f32
    %128 = vector.broadcast %cst_51 : f32 to vector<8x1xf32>
    %129 = arith.divf %127, %128 : vector<8x1xf32>
    %130 = vector.broadcast %122 : vector<8x1xf32> to vector<8x32xf32>
    %131 = arith.subf %118, %130 : vector<8x32xf32>
    %cst_52 = arith.constant 9.99999974E-6 : f32
    %132 = vector.broadcast %cst_52 : f32 to vector<8x1xf32>
    %133 = arith.addf %129, %132 : vector<8x1xf32>
    %134 = math.rsqrt %133 : vector<8x1xf32>
    %135 = vector.broadcast %134 : vector<8x1xf32> to vector<8x32xf32>
    %136 = arith.mulf %131, %135 : vector<8x32xf32>
    %c0_53 = arith.constant 0 : index
    %c0_54 = arith.constant 0 : index
    %c0_55 = arith.constant 0 : index
    %137 = vector.load %arg22[%c0_53, %c0_54, %c0_55] : memref<1x1x32xf32, #tpu.memory_space<vmem>>, vector<1x1x32xf32>
    %138 = vector.shape_cast %137 : vector<1x1x32xf32> to vector<1x32xf32>
    %139 = vector.broadcast %138 : vector<1x32xf32> to vector<8x32xf32>
    %140 = arith.mulf %136, %139 : vector<8x32xf32>
    %c0_56 = arith.constant 0 : index
    %c0_57 = arith.constant 0 : index
    %c0_58 = arith.constant 0 : index
    %141 = vector.load %arg23[%c0_56, %c0_57, %c0_58] : memref<1x1x32xf32, #tpu.memory_space<vmem>>, vector<1x1x32xf32>
    %142 = vector.shape_cast %141 : vector<1x1x32xf32> to vector<1x32xf32>
    %143 = vector.broadcast %142 : vector<1x32xf32> to vector<8x32xf32>
    %144 = arith.addf %140, %143 : vector<8x32xf32>
    %145 = vector.shape_cast %144 : vector<8x32xf32> to vector<1x8x32xf32>
    %c0_59 = arith.constant 0 : index
    %c0_60 = arith.constant 0 : index
    %c0_61 = arith.constant 0 : index
    %146 = vector.load %arg24[%c0_59, %c0_60, %c0_61] : memref<1x8x32xf32, #tpu.memory_space<vmem>>, vector<1x8x32xf32>
    tpu.vector_store %arg24[%c0_59, %c0_60, %c0_61], %145 {strides = array<i32>} : memref<1x8x32xf32, #tpu.memory_space<vmem>>, vector<1x8x32xf32>,
    %c1_i32 = arith.constant 1 : i32
    %147 = arith.cmpi eq, %arg1, %c1_i32 : i32
    %148 = arith.extui %147 : i1 to i32
    %c0_i32_62 = arith.constant 0 : i32
    %149 = arith.cmpi ne, %148, %c0_i32_62 : i32
    scf.if %149 {
      %cst_63 = arith.constant dense<0.000000e+00> : vector<32xf32>
      %150 = vector.multi_reduction <add>, %144, %cst_63 [0] : vector<8x32xf32> to vector<32xf32>
      %151 = vector.shape_cast %150 : vector<32xf32> to vector<1x32xf32>
      %cst_64 = arith.constant 8.000000e+00 : f32
      %152 = vector.broadcast %cst_64 : f32 to vector<1x32xf32>
      %153 = arith.divf %151, %152 : vector<1x32xf32>
      %c0_65 = arith.constant 0 : index
      %c0_66 = arith.constant 0 : index
      %154 = vector.load %arg10[%c0_65, %c0_66] : memref<32x64xf32, #tpu.memory_space<vmem>>, vector<32x64xf32>
      %cst_67 = arith.constant dense<0.000000e+00> : vector<1x64xf32>
      %155 = tpu.matmul %153, %154, %cst_67 {dimension_numbers = #tpu.dot_dimension_numbers<[1], [0], [0], [1], [0, 0, 1, 1], [], []>} : vector<1x32xf32>, vector<32x64xf32>, vector<1x64xf32> -> vector<1x64xf32>
      %c0_68 = arith.constant 0 : index
      %c0_69 = arith.constant 0 : index
      %156 = vector.load %arg11[%c0_68, %c0_69] : memref<1x64xf32, #tpu.memory_space<vmem>>, vector<1x64xf32>
      %157 = arith.addf %155, %156 : vector<1x64xf32>
      %158 = arith.negf %157 : vector<1x64xf32>
      %159 = math.exp %158 : vector<1x64xf32>
      %cst_70 = arith.constant 1.000000e+00 : f32
      %160 = vector.broadcast %cst_70 : f32 to vector<1x64xf32>
      %161 = arith.addf %160, %159 : vector<1x64xf32>
      %162 = arith.divf %160, %161 : vector<1x64xf32>
      %163 = vector.shape_cast %162 : vector<1x64xf32> to vector<1x1x64xf32>
      %c0_71 = arith.constant 0 : index
      %c0_72 = arith.constant 0 : index
      %c0_73 = arith.constant 0 : index
      %164 = vector.load %arg26[%c0_71, %c0_72, %c0_73] : memref<1x1x64xf32, #tpu.memory_space<vmem>>, vector<1x1x64xf32>
      tpu.vector_store %arg26[%c0_71, %c0_72, %c0_73], %163 {strides = array<i32>} : memref<1x1x64xf32, #tpu.memory_space<vmem>>, vector<1x1x64xf32>,
      %c0_74 = arith.constant 0 : index
      %c0_75 = arith.constant 0 : index
      %165 = vector.load %arg12[%c0_74, %c0_75] : memref<32x5xf32, #tpu.memory_space<vmem>>, vector<32x5xf32>
      %cst_76 = arith.constant dense<0.000000e+00> : vector<1x5xf32>
      %166 = tpu.matmul %153, %165, %cst_76 {dimension_numbers = #tpu.dot_dimension_numbers<[1], [0], [0], [1], [0, 0, 1, 1], [], []>} : vector<1x32xf32>, vector<32x5xf32>, vector<1x5xf32> -> vector<1x5xf32>
      %c0_77 = arith.constant 0 : index
      %c0_78 = arith.constant 0 : index
      %167 = vector.load %arg13[%c0_77, %c0_78] : memref<1x5xf32, #tpu.memory_space<vmem>>, vector<1x5xf32>
      %168 = arith.addf %166, %167 : vector<1x5xf32>
      %cst_79 = arith.constant dense<0xFF800000> : vector<1xf32>
      %169 = vector.multi_reduction <maximumf>, %168, %cst_79 [1] : vector<1x5xf32> to vector<1xf32>
      %cst_80 = arith.constant 0xFF800000 : f32
      %170 = vector.broadcast %cst_80 : f32 to vector<1xf32>
      %171 = arith.maximumf %170, %169 : vector<1xf32>
      %172 = vector.shape_cast %171 : vector<1xf32> to vector<1x1xf32>
      %173 = vector.broadcast %172 : vector<1x1xf32> to vector<1x5xf32>
      %174 = arith.subf %168, %173 : vector<1x5xf32>
      %175 = math.exp %174 : vector<1x5xf32>
      %cst_81 = arith.constant dense<0.000000e+00> : vector<1xf32>
      %176 = vector.multi_reduction <add>, %175, %cst_81 [1] : vector<1x5xf32> to vector<1xf32>
      %177 = vector.shape_cast %176 : vector<1xf32> to vector<1x1xf32>
      %178 = vector.broadcast %177 : vector<1x1xf32> to vector<1x5xf32>
      %179 = arith.divf %175, %178 : vector<1x5xf32>
      %180 = vector.shape_cast %179 : vector<1x5xf32> to vector<1x1x5xf32>
      %c0_82 = arith.constant 0 : index
      %c0_83 = arith.constant 0 : index
      %c0_84 = arith.constant 0 : index
      %181 = vector.load %arg27[%c0_82, %c0_83, %c0_84] : memref<1x1x5xf32, #tpu.memory_space<vmem>>, vector<1x1x5xf32>
      tpu.vector_store %arg27[%c0_82, %c0_83, %c0_84], %180 {strides = array<i32>} : memref<1x1x5xf32, #tpu.memory_space<vmem>>, vector<1x1x5xf32>,
      %c0_85 = arith.constant 0 : index
      %c0_86 = arith.constant 0 : index
      %182 = vector.load %arg14[%c0_85, %c0_86] : memref<32x1xf32, #tpu.memory_space<vmem>>, vector<32x1xf32>
      %cst_87 = arith.constant dense<0.000000e+00> : vector<1x1xf32>
      %183 = tpu.matmul %153, %182, %cst_87 {dimension_numbers = #tpu.dot_dimension_numbers<[1], [0], [0], [1], [0, 0, 1, 1], [], []>} : vector<1x32xf32>, vector<32x1xf32>, vector<1x1xf32> -> vector<1x1xf32>
      %c0_88 = arith.constant 0 : index
      %c0_89 = arith.constant 0 : index
      %184 = vector.load %arg15[%c0_88, %c0_89] : memref<1x1xf32, #tpu.memory_space<vmem>>, vector<1x1xf32>
      %185 = arith.addf %183, %184 : vector<1x1xf32>
      %186 = arith.negf %185 : vector<1x1xf32>
      %187 = math.exp %186 : vector<1x1xf32>
      %cst_90 = arith.constant 1.000000e+00 : f32
      %188 = vector.broadcast %cst_90 : f32 to vector<1x1xf32>
      %189 = arith.addf %188, %187 : vector<1x1xf32>
      %190 = arith.divf %188, %189 : vector<1x1xf32>
      %191 = vector.shape_cast %190 : vector<1x1xf32> to vector<1x1x1xf32>
      %c0_91 = arith.constant 0 : index
      %c0_92 = arith.constant 0 : index
      %c0_93 = arith.constant 0 : index
      %192 = vector.load %arg28[%c0_91, %c0_92, %c0_93] : memref<1x1x1xf32, #tpu.memory_space<vmem>>, vector<1x1x1xf32>
      tpu.vector_store %arg28[%c0_91, %c0_92, %c0_93], %191 {strides = array<i32>} : memref<1x1x1xf32, #tpu.memory_space<vmem>>, vector<1x1x1xf32>,
    } else {
    }
    return
  }
  func.func @transform_0(%arg0: i32, %arg1: i32) -> (i32, i32, i32) {
    %c0_i32 = arith.constant 0 : i32
    %c0_i32_0 = arith.constant 0 : i32
    %c0_i32_1 = arith.constant 0 : i32
    return %arg0, %c0_i32, %c0_i32_0 : i32, i32, i32
  }
  func.func @transform_1(%arg0: i32, %arg1: i32) -> (i32, i32, i32) {
    %c0_i32 = arith.constant 0 : i32
    %c0_i32_0 = arith.constant 0 : i32
    %c0_i32_1 = arith.constant 0 : i32
    return %arg0, %c0_i32, %c0_i32_0 : i32, i32, i32
  }
  func.func @transform_2(%arg0: i32, %arg1: i32) -> (i32, i32) {
    %c0_i32 = arith.constant 0 : i32
    %c0_i32_0 = arith.constant 0 : i32
    %c0_i32_1 = arith.constant 0 : i32
    return %c0_i32, %c0_i32_0 : i32, i32
  }
  func.func @transform_3(%arg0: i32, %arg1: i32) -> (i32, i32) {
    %c0_i32 = arith.constant 0 : i32
    %c0_i32_0 = arith.constant 0 : i32
    %c0_i32_1 = arith.constant 0 : i32
    return %c0_i32, %c0_i32_0 : i32, i32
  }
  func.func @transform_4(%arg0: i32, %arg1: i32) -> (i32, i32, i32) {
    %c0_i32 = arith.constant 0 : i32
    %c0_i32_0 = arith.constant 0 : i32
    %c0_i32_1 = arith.constant 0 : i32
    return %arg0, %c0_i32, %c0_i32_0 : i32, i32, i32
  }
  func.func @transform_5(%arg0: i32, %arg1: i32) -> (i32, i32) {
    %c0_i32 = arith.constant 0 : i32
    %c0_i32_0 = arith.constant 0 : i32
    %c0_i32_1 = arith.constant 0 : i32
    return %c0_i32, %c0_i32_0 : i32, i32
  }
  func.func @transform_6(%arg0: i32, %arg1: i32) -> (i32, i32) {
    %c0_i32 = arith.constant 0 : i32
    %c0_i32_0 = arith.constant 0 : i32
    %c0_i32_1 = arith.constant 0 : i32
    return %c0_i32, %c0_i32_0 : i32, i32
  }
  func.func @transform_7(%arg0: i32, %arg1: i32) -> (i32, i32) {
    %c0_i32 = arith.constant 0 : i32
    %c0_i32_0 = arith.constant 0 : i32
    %c0_i32_1 = arith.constant 0 : i32
    return %c0_i32, %c0_i32_0 : i32, i32
  }
  func.func @transform_8(%arg0: i32, %arg1: i32) -> (i32, i32) {
    %c0_i32 = arith.constant 0 : i32
    %c0_i32_0 = arith.constant 0 : i32
    %c0_i32_1 = arith.constant 0 : i32
    return %c0_i32, %c0_i32_0 : i32, i32
  }
  func.func @transform_9(%arg0: i32, %arg1: i32) -> (i32, i32) {
    %c0_i32 = arith.constant 0 : i32
    %c0_i32_0 = arith.constant 0 : i32
    %c0_i32_1 = arith.constant 0 : i32
    return %c0_i32, %c0_i32_0 : i32, i32
  }
  func.func @transform_10(%arg0: i32, %arg1: i32) -> (i32, i32) {
    %c0_i32 = arith.constant 0 : i32
    %c0_i32_0 = arith.constant 0 : i32
    %c0_i32_1 = arith.constant 0 : i32
    return %c0_i32, %c0_i32_0 : i32, i32
  }
  func.func @transform_11(%arg0: i32, %arg1: i32) -> (i32, i32) {
    %c0_i32 = arith.constant 0 : i32
    %c0_i32_0 = arith.constant 0 : i32
    %c0_i32_1 = arith.constant 0 : i32
    return %c0_i32, %c0_i32_0 : i32, i32
  }
  func.func @transform_12(%arg0: i32, %arg1: i32) -> (i32, i32) {
    %c0_i32 = arith.constant 0 : i32
    %c0_i32_0 = arith.constant 0 : i32
    %c0_i32_1 = arith.constant 0 : i32
    return %c0_i32, %c0_i32_0 : i32, i32
  }
  func.func @transform_13(%arg0: i32, %arg1: i32) -> (i32, i32) {
    %c0_i32 = arith.constant 0 : i32
    %c0_i32_0 = arith.constant 0 : i32
    %c0_i32_1 = arith.constant 0 : i32
    return %c0_i32, %c0_i32_0 : i32, i32
  }
  func.func @transform_14(%arg0: i32, %arg1: i32) -> (i32, i32, i32) {
    %c0_i32 = arith.constant 0 : i32
    %c0_i32_0 = arith.constant 0 : i32
    %c0_i32_1 = arith.constant 0 : i32
    return %arg1, %c0_i32, %c0_i32_0 : i32, i32, i32
  }
  func.func @transform_15(%arg0: i32, %arg1: i32) -> (i32, i32, i32) {
    %c0_i32 = arith.constant 0 : i32
    %c0_i32_0 = arith.constant 0 : i32
    %c0_i32_1 = arith.constant 0 : i32
    return %arg1, %c0_i32, %c0_i32_0 : i32, i32, i32
  }
  func.func @transform_16(%arg0: i32, %arg1: i32) -> (i32, i32, i32) {
    %c0_i32 = arith.constant 0 : i32
    %c0_i32_0 = arith.constant 0 : i32
    %c0_i32_1 = arith.constant 0 : i32
    return %arg1, %c0_i32, %c0_i32_0 : i32, i32, i32
  }
  func.func @transform_17(%arg0: i32, %arg1: i32) -> (i32, i32, i32) {
    %c0_i32 = arith.constant 0 : i32
    %c0_i32_0 = arith.constant 0 : i32
    %c0_i32_1 = arith.constant 0 : i32
    return %arg1, %c0_i32, %c0_i32_0 : i32, i32, i32
  }
  func.func @transform_18(%arg0: i32, %arg1: i32) -> (i32, i32, i32) {
    %c0_i32 = arith.constant 0 : i32
    %c0_i32_0 = arith.constant 0 : i32
    %c0_i32_1 = arith.constant 0 : i32
    return %arg1, %c0_i32, %c0_i32_0 : i32, i32, i32
  }
  func.func @transform_19(%arg0: i32, %arg1: i32) -> (i32, i32, i32) {
    %c0_i32 = arith.constant 0 : i32
    %c0_i32_0 = arith.constant 0 : i32
    %c0_i32_1 = arith.constant 0 : i32
    return %arg1, %c0_i32, %c0_i32_0 : i32, i32, i32
  }
  func.func @transform_20(%arg0: i32, %arg1: i32) -> (i32, i32, i32) {
    %c0_i32 = arith.constant 0 : i32
    %c0_i32_0 = arith.constant 0 : i32
    %c0_i32_1 = arith.constant 0 : i32
    return %arg1, %c0_i32, %c0_i32_0 : i32, i32, i32
  }
  func.func @transform_21(%arg0: i32, %arg1: i32) -> (i32, i32, i32) {
    %c0_i32 = arith.constant 0 : i32
    %c0_i32_0 = arith.constant 0 : i32
    %c0_i32_1 = arith.constant 0 : i32
    return %arg1, %c0_i32, %c0_i32_0 : i32, i32, i32
  }
  func.func @transform_22(%arg0: i32, %arg1: i32) -> (i32, i32, i32) {
    %c0_i32 = arith.constant 0 : i32
    %c0_i32_0 = arith.constant 0 : i32
    %c0_i32_1 = arith.constant 0 : i32
    return %arg0, %c0_i32, %c0_i32_0 : i32, i32, i32
  }
  func.func @transform_23(%arg0: i32, %arg1: i32) -> (i32, i32, i32, i32, i32) {
    %c0_i32 = arith.constant 0 : i32
    %c0_i32_0 = arith.constant 0 : i32
    %c0_i32_1 = arith.constant 0 : i32
    %c0_i32_2 = arith.constant 0 : i32
    return %arg0, %arg1, %c0_i32, %c0_i32_0, %c0_i32_1 : i32, i32, i32, i32, i32
  }
  func.func @transform_24(%arg0: i32, %arg1: i32) -> (i32, i32, i32) {
    %c0_i32 = arith.constant 0 : i32
    %c0_i32_0 = arith.constant 0 : i32
    %c0_i32_1 = arith.constant 0 : i32
    return %arg0, %c0_i32, %c0_i32_0 : i32, i32, i32
  }
  func.func @transform_25(%arg0: i32, %arg1: i32) -> (i32, i32, i32) {
    %c0_i32 = arith.constant 0 : i32
    %c0_i32_0 = arith.constant 0 : i32
    %c0_i32_1 = arith.constant 0 : i32
    return %arg0, %c0_i32, %c0_i32_0 : i32, i32, i32
  }
  func.func @transform_26(%arg0: i32, %arg1: i32) -> (i32, i32, i32) {
    %c0_i32 = arith.constant 0 : i32
    %c0_i32_0 = arith.constant 0 : i32
    %c0_i32_1 = arith.constant 0 : i32
    return %arg0, %c0_i32, %c0_i32_0 : i32, i32, i32
  }
}

</mosaic_0001>

<llo_original>
// kernel: tpu_custom_call.1
$region0: #{tpu_custom_call.1}
  #allocation0 [shape = 'u32[]', space=smem, size = 0x4, offset = 0x4, fixed_abs, tag = 'smem constant byte address 0x4 - core index']
  #allocation1 [shape = 'u32[72,128]{1,0:T(1,128)}', space=vmem, size = 0x9000, scoped, tag = 'internal scratch']
  #allocation2 [shape = 'f32[1,1]{1,0:T(1,128)S(1)}', space=vmem, size = 0x200, scoped, tag = 'scoped memory for tpu_custom_call.1']
  %s0 = inlined_call_operand.vmem [shape: f32[2,8,32], index: 0, kind: input, shape index: {}]
  %s1 = inlined_call_operand.vmem [shape: f32[2,1,2048], index: 1, kind: input, shape index: {}]
  %s2 = inlined_call_operand.vmem [shape: f32[2048,32], index: 2, kind: input, shape index: {}]
  %s3 = inlined_call_operand.vmem [shape: f32[1,32], index: 3, kind: input, shape index: {}]
  %s4 = inlined_call_operand.vmem [shape: f32[2,1,64], index: 4, kind: input, shape index: {}]
  %s5 = inlined_call_operand.vmem [shape: f32[64,32], index: 5, kind: input, shape index: {}]
  %s6 = inlined_call_operand.vmem [shape: f32[1,32], index: 6, kind: input, shape index: {}]
  %s7 = inlined_call_operand.vmem [shape: f32[8,32], index: 7, kind: input, shape index: {}]
  %s8 = inlined_call_operand.vmem [shape: f32[32,64], index: 8, kind: input, shape index: {}]
  %s9 = inlined_call_operand.vmem [shape: f32[1,64], index: 9, kind: input, shape index: {}]
  %s10 = inlined_call_operand.vmem [shape: f32[32,5], index: 10, kind: input, shape index: {}]
  %s11 = inlined_call_operand.vmem [shape: f32[1,5], index: 11, kind: input, shape index: {}]
  %s12 = inlined_call_operand.vmem [shape: f32[32,1], index: 12, kind: input, shape index: {}]
  %s13 = inlined_call_operand.<no memory space> [shape: f32[1,1], index: 13, kind: input, shape index: {}]
  %s14 = inlined_call_operand.vmem [shape: f32[2,32,192], index: 14, kind: input, shape index: {}]
  %s15 = inlined_call_operand.vmem [shape: f32[2,1,192], index: 15, kind: input, shape index: {}]
  %s16 = inlined_call_operand.vmem [shape: f32[2,32,64], index: 16, kind: input, shape index: {}]
  %s17 = inlined_call_operand.vmem [shape: f32[2,32,64], index: 17, kind: input, shape index: {}]
  %s18 = inlined_call_operand.vmem [shape: f32[2,32,32], index: 18, kind: input, shape index: {}]
  %s19 = inlined_call_operand.vmem [shape: f32[2,1,32], index: 19, kind: input, shape index: {}]
  %s20 = inlined_call_operand.vmem [shape: f32[2,1,32], index: 20, kind: input, shape index: {}]
  %s21 = inlined_call_operand.vmem [shape: f32[2,1,32], index: 21, kind: input, shape index: {}]
  %s22 = inlined_call_operand.hbm [shape: f32[2,8,32], index: 22, kind: output, shape index: {0}]
  %s23 = inlined_call_operand.hbm [shape: f32[2,2,4,8,8], index: 23, kind: output, shape index: {1}]
  %s24 = inlined_call_operand.hbm [shape: f32[2,1,64], index: 24, kind: output, shape index: {2}]
  %s25 = inlined_call_operand.hbm [shape: f32[2,1,5], index: 25, kind: output, shape index: {3}]
  %s26 = inlined_call_operand.vmem [shape: f32[2,1,1], index: 26, kind: output, shape index: {4}]
  %27 = xla_tuple %s22, %s23, %s24, %s25, %s26
  %s28 = sld [smem:[#allocation0]]
  $region161: #{tpu_custom_call.1} parent=0
    _
  %s30 = ssub.s32 1, %s28
  %s31 = scalar_select 0, %s30, %s28
  %v32 = vstv %s13
  %33 = vst [vmem:[#allocation2] sm:$0x1] %v32
  $region1: #{tpu_custom_call.1} parent=0
    #allocation3 [shape = 'u8[8192]{0}', space=vmem, size = 0x2000, scoped, tag = 'output window, operand 0']
    #allocation4 [shape = 's32[2]{0}', space=sflag, size = 0x8, scoped, tag = 'scoped memory for tpu_custom_call.1']
    #allocation5 [shape = 'u8[32768]{0}', space=vmem, size = 0x8000, scoped, tag = 'output window, operand 1']
    #allocation6 [shape = 's32[2]{0}', space=sflag, size = 0x8, scoped, tag = 'scoped memory for tpu_custom_call.1']
    #allocation7 [shape = 'u8[1024]{0}', space=vmem, size = 0x400, scoped, tag = 'output window, operand 2']
    #allocation8 [shape = 'u8[1024]{0}', space=vmem, size = 0x400, scoped, tag = 'output window, operand 3']
    #allocation9 [shape = 's32[2]{0}', space=sflag, size = 0x8, scoped, tag = 'scoped memory for tpu_custom_call.1']
    %34 = vsyncpa [#allocation4], 0
    %s35 = scalar_lea.sflag [#allocation4], 1
    %36 = vsyncpa %s35, 0
    %37 = vsyncpa [#allocation6], 0
    %s38 = scalar_lea.sflag [#allocation6], 1
    %39 = vsyncpa %s38, 0
    %40 = vsyncpa [#allocation9], 0
    %s41 = scalar_lea.sflag [#allocation9], 1
    %42 = vsyncpa %s41, 0
    loop: start=0, step=1, limit=6
    $region2: #{tpu_custom_call.1} parent=1 // loop_pre_header
      _
    $region3: #{tpu_custom_call.1} parent=1 // loop_header
      %s44 = sphi 0, %s48
      %p45 = scmp.ge.s32.totalorder %s44, 6
      %s51 = sphi 0, %s63
      %s52 = sphi 0, %s59
      %s53 = sphi 0, %s51
      %s54 = sphi 0, %s52
      %s55 = sphi 0, %s53
      %s56 = sphi 0, %s54
      %s66 = sphi 0, %s68
      %s69 = sphi 0, %s66
      %s70 = sphi 0, %s69
      %s86 = sphi 0, %s70
      %s92 = sphi 0, %s94
      %s95 = sphi 0, %s92
      %s96 = sphi 0, %s95
      %s112 = sphi 0, %s96
      %s116 = sphi 0, %s116
      %s118 = sphi 0, %s116
      %s119 = sphi 0, %s118
      %s133 = sphi 0, %s119
      %s137 = sphi 0, %s137
      %s139 = sphi 0, %s137
      %s140 = sphi 0, %s139
      %s154 = sphi 0, %s140
      %s160 = sphi 0, %s162
      %s163 = sphi 0, %s160
      %s164 = sphi 0, %s163
      %s180 = sphi 0, %s164
      %s184 = sphi 0, %s184
      %s186 = sphi 0, %s184
      %s187 = sphi 0, %s186
      %s201 = sphi 0, %s187
      %s205 = sphi 0, %s205
      %s207 = sphi 0, %s205
      %s208 = sphi 0, %s207
      %s222 = sphi 0, %s208
      %s226 = sphi 0, %s226
      %s228 = sphi 0, %s226
      %s229 = sphi 0, %s228
      %s243 = sphi 0, %s229
      %s247 = sphi 0, %s247
      %s249 = sphi 0, %s247
      %s250 = sphi 0, %s249
      %s264 = sphi 0, %s250
      %s268 = sphi 0, %s268
      %s270 = sphi 0, %s268
      %s271 = sphi 0, %s270
      %s285 = sphi 0, %s271
      %s289 = sphi 0, %s289
      %s291 = sphi 0, %s289
      %s292 = sphi 0, %s291
      %s306 = sphi 0, %s292
      %s310 = sphi 0, %s310
      %s312 = sphi 0, %s310
      %s313 = sphi 0, %s312
      %s327 = sphi 0, %s313
      %s331 = sphi 0, %s331
      %s333 = sphi 0, %s331
      %s334 = sphi 0, %s333
      %s348 = sphi 0, %s334
      %s352 = sphi 0, %s352
      %s354 = sphi 0, %s352
      %s355 = sphi 0, %s354
      %s369 = sphi 0, %s355
      %s375 = sphi 0, %s377
      %s378 = sphi 0, %s375
      %s379 = sphi 0, %s378
      %s395 = sphi 0, %s379
      %s401 = sphi 0, %s403
      %s404 = sphi 0, %s401
      %s405 = sphi 0, %s404
      %s421 = sphi 0, %s405
      %s427 = sphi 0, %s429
      %s430 = sphi 0, %s427
      %s431 = sphi 0, %s430
      %s447 = sphi 0, %s431
      %s453 = sphi 0, %s455
      %s456 = sphi 0, %s453
      %s457 = sphi 0, %s456
      %s473 = sphi 0, %s457
      %s479 = sphi 0, %s481
      %s482 = sphi 0, %s479
      %s483 = sphi 0, %s482
      %s499 = sphi 0, %s483
      %s505 = sphi 0, %s507
      %s508 = sphi 0, %s505
      %s509 = sphi 0, %s508
      %s525 = sphi 0, %s509
      %s531 = sphi 0, %s533
      %s534 = sphi 0, %s531
      %s535 = sphi 0, %s534
      %s551 = sphi 0, %s535
      %s557 = sphi 0, %s559
      %s560 = sphi 0, %s557
      %s561 = sphi 0, %s560
      %s577 = sphi 0, %s561
      %s583 = sphi 0, %s585
      %s586 = sphi 0, %s583
      %s587 = sphi 0, %s586
      %s603 = sphi 0, %s587
      %s611 = sphi 0, %s613
      %s614 = sphi 0, %s611
      %s615 = sphi 0, %s614
      %s631 = sphi 0, %s615
      %s637 = sphi 0, %s639
      %s640 = sphi 0, %s637
      %s641 = sphi 0, %s640
      %s657 = sphi 0, %s641
      %s663 = sphi 0, %s665
      %s666 = sphi 0, %s663
      %s667 = sphi 0, %s666
      %s683 = sphi 0, %s667
      %s689 = sphi 0, %s691
      %s692 = sphi 0, %s689
      %s693 = sphi 0, %s692
      %s709 = sphi 0, %s693
    $region4: #{tpu_custom_call.1} parent=1 // loop_header_branch
      %47 = sbr.rel (%p45) target = $region8
    $region5: #{tpu_custom_call.1} parent=1 // loop_body
      %s49 = ssub.s32 %s44, 1
      %s50 = ssub.s32 %s44, 2
      %s57 = sadd.s32 1, %s52
      %p58 = scmp.ge.s32.totalorder %s57, 2
      %s59 = scalar_select %p58, 0, %s57
      %s60 = sadd.s32 1, %s51
      %s61 = scalar_select %p58, %s60, %s51
      %p62 = scmp.ge.s32.totalorder %s61, 2
      %s63 = scalar_select %p62, 0, %s61
      %s64 = ssub.s32 %s51, %s63
      %p65 = scmp.eq.s32.totalorder %s64, 0
      %s67 = sadd.s32 %s66, 1
      %s68 = scalar_select %p65, %s66, %s67
      %p71 = pneg %p65
      %p72 = scmp.eq.s32.totalorder %s44, 3
      %p73 = por %p71, %p72
      %p74 = scmp.ne.s32.totalorder %s66, %s69
      %p75 = scmp.eq.s32.totalorder %s44, 0
      %p76 = por %p74, %p75
      %p77 = scmp.ne.s32.totalorder %s66, %s69
      %p78 = scmp.eq.s32.totalorder %s49, 3
      %p79 = por %p77, %p78
      %p80 = scmp.ne.s32.totalorder %s69, %s70
      %p81 = scmp.eq.s32.totalorder %s49, 0
      %p82 = por %p80, %p81
      %p83 = scmp.ne.s32.totalorder %s69, %s70
      %p84 = scmp.eq.s32.totalorder %s50, 3
      %p85 = por %p83, %p84
      %p87 = scmp.ne.s32.totalorder %s70, %s86
      %p88 = scmp.eq.s32.totalorder %s50, 0
      %p89 = por %p87, %p88
      %s90 = ssub.s32 %s51, %s63
      %p91 = scmp.eq.s32.totalorder %s90, 0
      %s93 = sadd.s32 %s92, 1
      %s94 = scalar_select %p91, %s92, %s93
      %p97 = pneg %p91
      %p98 = scmp.eq.s32.totalorder %s44, 3
      %p99 = por %p97, %p98
      %p100 = scmp.ne.s32.totalorder %s92, %s95
      %p101 = scmp.eq.s32.totalorder %s44, 0
      %p102 = por %p100, %p101
      %p103 = scmp.ne.s32.totalorder %s92, %s95
      %p104 = scmp.eq.s32.totalorder %s49, 3
      %p105 = por %p103, %p104
      %p106 = scmp.ne.s32.totalorder %s95, %s96
      %p107 = scmp.eq.s32.totalorder %s49, 0
      %p108 = por %p106, %p107
      %p109 = scmp.ne.s32.totalorder %s95, %s96
      %p110 = scmp.eq.s32.totalorder %s50, 3
      %p111 = por %p109, %p110
      %p113 = scmp.ne.s32.totalorder %s96, %s112
      %p114 = scmp.eq.s32.totalorder %s50, 0
      %p115 = por %p113, %p114
      %s117 = sadd.s32 %s116, 1
      %p120 = scmp.eq.s32.totalorder %s44, 3
      %p121 = scmp.ne.s32.totalorder %s116, %s118
      %p122 = scmp.eq.s32.totalorder %s44, 0
      %p123 = por %p121, %p122
      %p124 = scmp.ne.s32.totalorder %s116, %s118
      %p125 = scmp.eq.s32.totalorder %s49, 3
      %p126 = por %p124, %p125
      %p127 = scmp.ne.s32.totalorder %s118, %s119
      %p128 = scmp.eq.s32.totalorder %s49, 0
      %p129 = por %p127, %p128
      %p130 = scmp.ne.s32.totalorder %s118, %s119
      %p131 = scmp.eq.s32.totalorder %s50, 3
      %p132 = por %p130, %p131
      %p134 = scmp.ne.s32.totalorder %s119, %s133
      %p135 = scmp.eq.s32.totalorder %s50, 0
      %p136 = por %p134, %p135
      %s138 = sadd.s32 %s137, 1
      %p141 = scmp.eq.s32.totalorder %s44, 3
      %p142 = scmp.ne.s32.totalorder %s137, %s139
      %p143 = scmp.eq.s32.totalorder %s44, 0
      %p144 = por %p142, %p143
      %p145 = scmp.ne.s32.totalorder %s137, %s139
      %p146 = scmp.eq.s32.totalorder %s49, 3
      %p147 = por %p145, %p146
      %p148 = scmp.ne.s32.totalorder %s139, %s140
      %p149 = scmp.eq.s32.totalorder %s49, 0
      %p150 = por %p148, %p149
      %p151 = scmp.ne.s32.totalorder %s139, %s140
      %p152 = scmp.eq.s32.totalorder %s50, 3
      %p153 = por %p151, %p152
      %p155 = scmp.ne.s32.totalorder %s140, %s154
      %p156 = scmp.eq.s32.totalorder %s50, 0
      %p157 = por %p155, %p156
      %s158 = ssub.s32 %s51, %s63
      %p159 = scmp.eq.s32.totalorder %s158, 0
      %s161 = sadd.s32 %s160, 1
      %s162 = scalar_select %p159, %s160, %s161
      %p165 = pneg %p159
      %p166 = scmp.eq.s32.totalorder %s44, 3
      %p167 = por %p165, %p166
      %p168 = scmp.ne.s32.totalorder %s160, %s163
      %p169 = scmp.eq.s32.totalorder %s44, 0
      %p170 = por %p168, %p169
      %p171 = scmp.ne.s32.totalorder %s160, %s163
      %p172 = scmp.eq.s32.totalorder %s49, 3
      %p173 = por %p171, %p172
      %p174 = scmp.ne.s32.totalorder %s163, %s164
      %p175 = scmp.eq.s32.totalorder %s49, 0
      %p176 = por %p174, %p175
      %p177 = scmp.ne.s32.totalorder %s163, %s164
      %p178 = scmp.eq.s32.totalorder %s50, 3
      %p179 = por %p177, %p178
      %p181 = scmp.ne.s32.totalorder %s164, %s180
      %p182 = scmp.eq.s32.totalorder %s50, 0
      %p183 = por %p181, %p182
      %s185 = sadd.s32 %s184, 1
      %p188 = scmp.eq.s32.totalorder %s44, 3
      %p189 = scmp.ne.s32.totalorder %s184, %s186
      %p190 = scmp.eq.s32.totalorder %s44, 0
      %p191 = por %p189, %p190
      %p192 = scmp.ne.s32.totalorder %s184, %s186
      %p193 = scmp.eq.s32.totalorder %s49, 3
      %p194 = por %p192, %p193
      %p195 = scmp.ne.s32.totalorder %s186, %s187
      %p196 = scmp.eq.s32.totalorder %s49, 0
      %p197 = por %p195, %p196
      %p198 = scmp.ne.s32.totalorder %s186, %s187
      %p199 = scmp.eq.s32.totalorder %s50, 3
      %p200 = por %p198, %p199
      %p202 = scmp.ne.s32.totalorder %s187, %s201
      %p203 = scmp.eq.s32.totalorder %s50, 0
      %p204 = por %p202, %p203
      %s206 = sadd.s32 %s205, 1
      %p209 = scmp.eq.s32.totalorder %s44, 3
      %p210 = scmp.ne.s32.totalorder %s205, %s207
      %p211 = scmp.eq.s32.totalorder %s44, 0
      %p212 = por %p210, %p211
      %p213 = scmp.ne.s32.totalorder %s205, %s207
      %p214 = scmp.eq.s32.totalorder %s49, 3
      %p215 = por %p213, %p214
      %p216 = scmp.ne.s32.totalorder %s207, %s208
      %p217 = scmp.eq.s32.totalorder %s49, 0
      %p218 = por %p216, %p217
      %p219 = scmp.ne.s32.totalorder %s207, %s208
      %p220 = scmp.eq.s32.totalorder %s50, 3
      %p221 = por %p219, %p220
      %p223 = scmp.ne.s32.totalorder %s208, %s222
      %p224 = scmp.eq.s32.totalorder %s50, 0
      %p225 = por %p223, %p224
      %s227 = sadd.s32 %s226, 1
      %p230 = scmp.eq.s32.totalorder %s44, 3
      %p231 = scmp.ne.s32.totalorder %s226, %s228
      %p232 = scmp.eq.s32.totalorder %s44, 0
      %p233 = por %p231, %p232
      %p234 = scmp.ne.s32.totalorder %s226, %s228
      %p235 = scmp.eq.s32.totalorder %s49, 3
      %p236 = por %p234, %p235
      %p237 = scmp.ne.s32.totalorder %s228, %s229
      %p238 = scmp.eq.s32.totalorder %s49, 0
      %p239 = por %p237, %p238
      %p240 = scmp.ne.s32.totalorder %s228, %s229
      %p241 = scmp.eq.s32.totalorder %s50, 3
      %p242 = por %p240, %p241
      %p244 = scmp.ne.s32.totalorder %s229, %s243
      %p245 = scmp.eq.s32.totalorder %s50, 0
      %p246 = por %p244, %p245
      %s248 = sadd.s32 %s247, 1
      %p251 = scmp.eq.s32.totalorder %s44, 3
      %p252 = scmp.ne.s32.totalorder %s247, %s249
      %p253 = scmp.eq.s32.totalorder %s44, 0
      %p254 = por %p252, %p253
      %p255 = scmp.ne.s32.totalorder %s247, %s249
      %p256 = scmp.eq.s32.totalorder %s49, 3
      %p257 = por %p255, %p256
      %p258 = scmp.ne.s32.totalorder %s249, %s250
      %p259 = scmp.eq.s32.totalorder %s49, 0
      %p260 = por %p258, %p259
      %p261 = scmp.ne.s32.totalorder %s249, %s250
      %p262 = scmp.eq.s32.totalorder %s50, 3
      %p263 = por %p261, %p262
      %p265 = scmp.ne.s32.totalorder %s250, %s264
      %p266 = scmp.eq.s32.totalorder %s50, 0
      %p267 = por %p265, %p266
      %s269 = sadd.s32 %s268, 1
      %p272 = scmp.eq.s32.totalorder %s44, 3
      %p273 = scmp.ne.s32.totalorder %s268, %s270
      %p274 = scmp.eq.s32.totalorder %s44, 0
      %p275 = por %p273, %p274
      %p276 = scmp.ne.s32.totalorder %s268, %s270
      %p277 = scmp.eq.s32.totalorder %s49, 3
      %p278 = por %p276, %p277
      %p279 = scmp.ne.s32.totalorder %s270, %s271
      %p280 = scmp.eq.s32.totalorder %s49, 0
      %p281 = por %p279, %p280
      %p282 = scmp.ne.s32.totalorder %s270, %s271
      %p283 = scmp.eq.s32.totalorder %s50, 3
      %p284 = por %p282, %p283
      %p286 = scmp.ne.s32.totalorder %s271, %s285
      %p287 = scmp.eq.s32.totalorder %s50, 0
      %p288 = por %p286, %p287
      %s290 = sadd.s32 %s289, 1
      %p293 = scmp.eq.s32.totalorder %s44, 3
      %p294 = scmp.ne.s32.totalorder %s289, %s291
      %p295 = scmp.eq.s32.totalorder %s44, 0
      %p296 = por %p294, %p295
      %p297 = scmp.ne.s32.totalorder %s289, %s291
      %p298 = scmp.eq.s32.totalorder %s49, 3
      %p299 = por %p297, %p298
      %p300 = scmp.ne.s32.totalorder %s291, %s292
      %p301 = scmp.eq.s32.totalorder %s49, 0
      %p302 = por %p300, %p301
      %p303 = scmp.ne.s32.totalorder %s291, %s292
      %p304 = scmp.eq.s32.totalorder %s50, 3
      %p305 = por %p303, %p304
      %p307 = scmp.ne.s32.totalorder %s292, %s306
      %p308 = scmp.eq.s32.totalorder %s50, 0
      %p309 = por %p307, %p308
      %s311 = sadd.s32 %s310, 1
      %p314 = scmp.eq.s32.totalorder %s44, 3
      %p315 = scmp.ne.s32.totalorder %s310, %s312
      %p316 = scmp.eq.s32.totalorder %s44, 0
      %p317 = por %p315, %p316
      %p318 = scmp.ne.s32.totalorder %s310, %s312
      %p319 = scmp.eq.s32.totalorder %s49, 3
      %p320 = por %p318, %p319
      %p321 = scmp.ne.s32.totalorder %s312, %s313
      %p322 = scmp.eq.s32.totalorder %s49, 0
      %p323 = por %p321, %p322
      %p324 = scmp.ne.s32.totalorder %s312, %s313
      %p325 = scmp.eq.s32.totalorder %s50, 3
      %p326 = por %p324, %p325
      %p328 = scmp.ne.s32.totalorder %s313, %s327
      %p329 = scmp.eq.s32.totalorder %s50, 0
      %p330 = por %p328, %p329
      %s332 = sadd.s32 %s331, 1
      %p335 = scmp.eq.s32.totalorder %s44, 3
      %p336 = scmp.ne.s32.totalorder %s331, %s333
      %p337 = scmp.eq.s32.totalorder %s44, 0
      %p338 = por %p336, %p337
      %p339 = scmp.ne.s32.totalorder %s331, %s333
      %p340 = scmp.eq.s32.totalorder %s49, 3
      %p341 = por %p339, %p340
      %p342 = scmp.ne.s32.totalorder %s333, %s334
      %p343 = scmp.eq.s32.totalorder %s49, 0
      %p344 = por %p342, %p343
      %p345 = scmp.ne.s32.totalorder %s333, %s334
      %p346 = scmp.eq.s32.totalorder %s50, 3
      %p347 = por %p345, %p346
      %p349 = scmp.ne.s32.totalorder %s334, %s348
      %p350 = scmp.eq.s32.totalorder %s50, 0
      %p351 = por %p349, %p350
      %s353 = sadd.s32 %s352, 1
      %p356 = scmp.eq.s32.totalorder %s44, 3
      %p357 = scmp.ne.s32.totalorder %s352, %s354
      %p358 = scmp.eq.s32.totalorder %s44, 0
      %p359 = por %p357, %p358
      %p360 = scmp.ne.s32.totalorder %s352, %s354
      %p361 = scmp.eq.s32.totalorder %s49, 3
      %p362 = por %p360, %p361
      %p363 = scmp.ne.s32.totalorder %s354, %s355
      %p364 = scmp.eq.s32.totalorder %s49, 0
      %p365 = por %p363, %p364
      %p366 = scmp.ne.s32.totalorder %s354, %s355
      %p367 = scmp.eq.s32.totalorder %s50, 3
      %p368 = por %p366, %p367
      %p370 = scmp.ne.s32.totalorder %s355, %s369
      %p371 = scmp.eq.s32.totalorder %s50, 0
      %p372 = por %p370, %p371
      %s373 = ssub.s32 %s52, %s59
      %p374 = scmp.eq.s32.totalorder %s373, 0
      %s376 = sadd.s32 %s375, 1
      %s377 = scalar_select %p374, %s375, %s376
      %p380 = pneg %p374
      %p381 = scmp.eq.s32.totalorder %s44, 3
      %p382 = por %p380, %p381
      %p383 = scmp.ne.s32.totalorder %s375, %s378
      %p384 = scmp.eq.s32.totalorder %s44, 0
      %p385 = por %p383, %p384
      %p386 = scmp.ne.s32.totalorder %s375, %s378
      %p387 = scmp.eq.s32.totalorder %s49, 3
      %p388 = por %p386, %p387
      %p389 = scmp.ne.s32.totalorder %s378, %s379
      %p390 = scmp.eq.s32.totalorder %s49, 0
      %p391 = por %p389, %p390
      %p392 = scmp.ne.s32.totalorder %s378, %s379
      %p393 = scmp.eq.s32.totalorder %s50, 3
      %p394 = por %p392, %p393
      %p396 = scmp.ne.s32.totalorder %s379, %s395
      %p397 = scmp.eq.s32.totalorder %s50, 0
      %p398 = por %p396, %p397
      %s399 = ssub.s32 %s52, %s59
      %p400 = scmp.eq.s32.totalorder %s399, 0
      %s402 = sadd.s32 %s401, 1
      %s403 = scalar_select %p400, %s401, %s402
      %p406 = pneg %p400
      %p407 = scmp.eq.s32.totalorder %s44, 3
      %p408 = por %p406, %p407
      %p409 = scmp.ne.s32.totalorder %s401, %s404
      %p410 = scmp.eq.s32.totalorder %s44, 0
      %p411 = por %p409, %p410
      %p412 = scmp.ne.s32.totalorder %s401, %s404
      %p413 = scmp.eq.s32.totalorder %s49, 3
      %p414 = por %p412, %p413
      %p415 = scmp.ne.s32.totalorder %s404, %s405
      %p416 = scmp.eq.s32.totalorder %s49, 0
      %p417 = por %p415, %p416
      %p418 = scmp.ne.s32.totalorder %s404, %s405
      %p419 = scmp.eq.s32.totalorder %s50, 3
      %p420 = por %p418, %p419
      %p422 = scmp.ne.s32.totalorder %s405, %s421
      %p423 = scmp.eq.s32.totalorder %s50, 0
      %p424 = por %p422, %p423
      %s425 = ssub.s32 %s52, %s59
      %p426 = scmp.eq.s32.totalorder %s425, 0
      %s428 = sadd.s32 %s427, 1
      %s429 = scalar_select %p426, %s427, %s428
      %p432 = pneg %p426
      %p433 = scmp.eq.s32.totalorder %s44, 3
      %p434 = por %p432, %p433
      %p435 = scmp.ne.s32.totalorder %s427, %s430
      %p436 = scmp.eq.s32.totalorder %s44, 0
      %p437 = por %p435, %p436
      %p438 = scmp.ne.s32.totalorder %s427, %s430
      %p439 = scmp.eq.s32.totalorder %s49, 3
      %p440 = por %p438, %p439
      %p441 = scmp.ne.s32.totalorder %s430, %s431
      %p442 = scmp.eq.s32.totalorder %s49, 0
      %p443 = por %p441, %p442
      %p444 = scmp.ne.s32.totalorder %s430, %s431
      %p445 = scmp.eq.s32.totalorder %s50, 3
      %p446 = por %p444, %p445
      %p448 = scmp.ne.s32.totalorder %s431, %s447
      %p449 = scmp.eq.s32.totalorder %s50, 0
      %p450 = por %p448, %p449
      %s451 = ssub.s32 %s52, %s59
      %p452 = scmp.eq.s32.totalorder %s451, 0
      %s454 = sadd.s32 %s453, 1
      %s455 = scalar_select %p452, %s453, %s454
      %p458 = pneg %p452
      %p459 = scmp.eq.s32.totalorder %s44, 3
      %p460 = por %p458, %p459
      %p461 = scmp.ne.s32.totalorder %s453, %s456
      %p462 = scmp.eq.s32.totalorder %s44, 0
      %p463 = por %p461, %p462
      %p464 = scmp.ne.s32.totalorder %s453, %s456
      %p465 = scmp.eq.s32.totalorder %s49, 3
      %p466 = por %p464, %p465
      %p467 = scmp.ne.s32.totalorder %s456, %s457
      %p468 = scmp.eq.s32.totalorder %s49, 0
      %p469 = por %p467, %p468
      %p470 = scmp.ne.s32.totalorder %s456, %s457
      %p471 = scmp.eq.s32.totalorder %s50, 3
      %p472 = por %p470, %p471
      %p474 = scmp.ne.s32.totalorder %s457, %s473
      %p475 = scmp.eq.s32.totalorder %s50, 0
      %p476 = por %p474, %p475
      %s477 = ssub.s32 %s52, %s59
      %p478 = scmp.eq.s32.totalorder %s477, 0
      %s480 = sadd.s32 %s479, 1
      %s481 = scalar_select %p478, %s479, %s480
      %p484 = pneg %p478
      %p485 = scmp.eq.s32.totalorder %s44, 3
      %p486 = por %p484, %p485
      %p487 = scmp.ne.s32.totalorder %s479, %s482
      %p488 = scmp.eq.s32.totalorder %s44, 0
      %p489 = por %p487, %p488
      %p490 = scmp.ne.s32.totalorder %s479, %s482
      %p491 = scmp.eq.s32.totalorder %s49, 3
      %p492 = por %p490, %p491
      %p493 = scmp.ne.s32.totalorder %s482, %s483
      %p494 = scmp.eq.s32.totalorder %s49, 0
      %p495 = por %p493, %p494
      %p496 = scmp.ne.s32.totalorder %s482, %s483
      %p497 = scmp.eq.s32.totalorder %s50, 3
      %p498 = por %p496, %p497
      %p500 = scmp.ne.s32.totalorder %s483, %s499
      %p501 = scmp.eq.s32.totalorder %s50, 0
      %p502 = por %p500, %p501
      %s503 = ssub.s32 %s52, %s59
      %p504 = scmp.eq.s32.totalorder %s503, 0
      %s506 = sadd.s32 %s505, 1
      %s507 = scalar_select %p504, %s505, %s506
      %p510 = pneg %p504
      %p511 = scmp.eq.s32.totalorder %s44, 3
      %p512 = por %p510, %p511
      %p513 = scmp.ne.s32.totalorder %s505, %s508
      %p514 = scmp.eq.s32.totalorder %s44, 0
      %p515 = por %p513, %p514
      %p516 = scmp.ne.s32.totalorder %s505, %s508
      %p517 = scmp.eq.s32.totalorder %s49, 3
      %p518 = por %p516, %p517
      %p519 = scmp.ne.s32.totalorder %s508, %s509
      %p520 = scmp.eq.s32.totalorder %s49, 0
      %p521 = por %p519, %p520
      %p522 = scmp.ne.s32.totalorder %s508, %s509
      %p523 = scmp.eq.s32.totalorder %s50, 3
      %p524 = por %p522, %p523
      %p526 = scmp.ne.s32.totalorder %s509, %s525
      %p527 = scmp.eq.s32.totalorder %s50, 0
      %p528 = por %p526, %p527
      %s529 = ssub.s32 %s52, %s59
      %p530 = scmp.eq.s32.totalorder %s529, 0
      %s532 = sadd.s32 %s531, 1
      %s533 = scalar_select %p530, %s531, %s532
      %p536 = pneg %p530
      %p537 = scmp.eq.s32.totalorder %s44, 3
      %p538 = por %p536, %p537
      %p539 = scmp.ne.s32.totalorder %s531, %s534
      %p540 = scmp.eq.s32.totalorder %s44, 0
      %p541 = por %p539, %p540
      %p542 = scmp.ne.s32.totalorder %s531, %s534
      %p543 = scmp.eq.s32.totalorder %s49, 3
      %p544 = por %p542, %p543
      %p545 = scmp.ne.s32.totalorder %s534, %s535
      %p546 = scmp.eq.s32.totalorder %s49, 0
      %p547 = por %p545, %p546
      %p548 = scmp.ne.s32.totalorder %s534, %s535
      %p549 = scmp.eq.s32.totalorder %s50, 3
      %p550 = por %p548, %p549
      %p552 = scmp.ne.s32.totalorder %s535, %s551
      %p553 = scmp.eq.s32.totalorder %s50, 0
      %p554 = por %p552, %p553
      %s555 = ssub.s32 %s52, %s59
      %p556 = scmp.eq.s32.totalorder %s555, 0
      %s558 = sadd.s32 %s557, 1
      %s559 = scalar_select %p556, %s557, %s558
      %p562 = pneg %p556
      %p563 = scmp.eq.s32.totalorder %s44, 3
      %p564 = por %p562, %p563
      %p565 = scmp.ne.s32.totalorder %s557, %s560
      %p566 = scmp.eq.s32.totalorder %s44, 0
      %p567 = por %p565, %p566
      %p568 = scmp.ne.s32.totalorder %s557, %s560
      %p569 = scmp.eq.s32.totalorder %s49, 3
      %p570 = por %p568, %p569
      %p571 = scmp.ne.s32.totalorder %s560, %s561
      %p572 = scmp.eq.s32.totalorder %s49, 0
      %p573 = por %p571, %p572
      %p574 = scmp.ne.s32.totalorder %s560, %s561
      %p575 = scmp.eq.s32.totalorder %s50, 3
      %p576 = por %p574, %p575
      %p578 = scmp.ne.s32.totalorder %s561, %s577
      %p579 = scmp.eq.s32.totalorder %s50, 0
      %p580 = por %p578, %p579
      %s581 = ssub.s32 %s51, %s63
      %p582 = scmp.eq.s32.totalorder %s581, 0
      %s584 = sadd.s32 %s583, 1
      %s585 = scalar_select %p582, %s583, %s584
      %p588 = pneg %p582
      %p589 = scmp.eq.s32.totalorder %s44, 3
      %p590 = por %p588, %p589
      %p591 = scmp.ne.s32.totalorder %s583, %s586
      %p592 = scmp.eq.s32.totalorder %s44, 0
      %p593 = por %p591, %p592
      %p594 = scmp.ne.s32.totalorder %s583, %s586
      %p595 = scmp.eq.s32.totalorder %s49, 3
      %p596 = por %p594, %p595
      %p597 = scmp.ne.s32.totalorder %s586, %s587
      %p598 = scmp.eq.s32.totalorder %s49, 0
      %p599 = por %p597, %p598
      %p600 = scmp.ne.s32.totalorder %s586, %s587
      %p601 = scmp.eq.s32.totalorder %s50, 3
      %p602 = por %p600, %p601
      %p604 = scmp.ne.s32.totalorder %s587, %s603
      %p605 = scmp.eq.s32.totalorder %s50, 0
      %p606 = por %p604, %p605
      %s607 = ssub.s32 %s51, %s63
      %s608 = ssub.s32 %s52, %s59
      %s609 = sor.u32 %s607, %s608
      %p610 = scmp.eq.s32.totalorder %s609, 0
      %s612 = sadd.s32 %s611, 1
      %s613 = scalar_select %p610, %s611, %s612
      %p616 = pneg %p610
      %p617 = scmp.eq.s32.totalorder %s44, 3
      %p618 = por %p616, %p617
      %p619 = scmp.ne.s32.totalorder %s611, %s614
      %p620 = scmp.eq.s32.totalorder %s44, 0
      %p621 = por %p619, %p620
      %p622 = scmp.ne.s32.totalorder %s611, %s614
      %p623 = scmp.eq.s32.totalorder %s49, 3
      %p624 = por %p622, %p623
      %p625 = scmp.ne.s32.totalorder %s614, %s615
      %p626 = scmp.eq.s32.totalorder %s49, 0
      %p627 = por %p625, %p626
      %p628 = scmp.ne.s32.totalorder %s614, %s615
      %p629 = scmp.eq.s32.totalorder %s50, 3
      %p630 = por %p628, %p629
      %p632 = scmp.ne.s32.totalorder %s615, %s631
      %p633 = scmp.eq.s32.totalorder %s50, 0
      %p634 = por %p632, %p633
      %s635 = ssub.s32 %s51, %s63
      %p636 = scmp.eq.s32.totalorder %s635, 0
      %s638 = sadd.s32 %s637, 1
      %s639 = scalar_select %p636, %s637, %s638
      %p642 = pneg %p636
      %p643 = scmp.eq.s32.totalorder %s44, 3
      %p644 = por %p642, %p643
      %p645 = scmp.ne.s32.totalorder %s637, %s640
      %p646 = scmp.eq.s32.totalorder %s44, 0
      %p647 = por %p645, %p646
      %p648 = scmp.ne.s32.totalorder %s637, %s640
      %p649 = scmp.eq.s32.totalorder %s49, 3
      %p650 = por %p648, %p649
      %p651 = scmp.ne.s32.totalorder %s640, %s641
      %p652 = scmp.eq.s32.totalorder %s49, 0
      %p653 = por %p651, %p652
      %p654 = scmp.ne.s32.totalorder %s640, %s641
      %p655 = scmp.eq.s32.totalorder %s50, 3
      %p656 = por %p654, %p655
      %p658 = scmp.ne.s32.totalorder %s641, %s657
      %p659 = scmp.eq.s32.totalorder %s50, 0
      %p660 = por %p658, %p659
      %s661 = ssub.s32 %s51, %s63
      %p662 = scmp.eq.s32.totalorder %s661, 0
      %s664 = sadd.s32 %s663, 1
      %s665 = scalar_select %p662, %s663, %s664
      %p668 = pneg %p662
      %p669 = scmp.eq.s32.totalorder %s44, 3
      %p670 = por %p668, %p669
      %p671 = scmp.ne.s32.totalorder %s663, %s666
      %p672 = scmp.eq.s32.totalorder %s44, 0
      %p673 = por %p671, %p672
      %p674 = scmp.ne.s32.totalorder %s663, %s666
      %p675 = scmp.eq.s32.totalorder %s49, 3
      %p676 = por %p674, %p675
      %p677 = scmp.ne.s32.totalorder %s666, %s667
      %p678 = scmp.eq.s32.totalorder %s49, 0
      %p679 = por %p677, %p678
      %p680 = scmp.ne.s32.totalorder %s666, %s667
      %p681 = scmp.eq.s32.totalorder %s50, 3
      %p682 = por %p680, %p681
      %p684 = scmp.ne.s32.totalorder %s667, %s683
      %p685 = scmp.eq.s32.totalorder %s50, 0
      %p686 = por %p684, %p685
      %s687 = ssub.s32 %s51, %s63
      %p688 = scmp.eq.s32.totalorder %s687, 0
      %s690 = sadd.s32 %s689, 1
      %s691 = scalar_select %p688, %s689, %s690
      %p694 = pneg %p688
      %p695 = scmp.eq.s32.totalorder %s44, 3
      %p696 = por %p694, %p695
      %p697 = scmp.ne.s32.totalorder %s689, %s692
      %p698 = scmp.eq.s32.totalorder %s44, 0
      %p699 = por %p697, %p698
      %p700 = scmp.ne.s32.totalorder %s689, %s692
      %p701 = scmp.eq.s32.totalorder %s49, 3
      %p702 = por %p700, %p701
      %p703 = scmp.ne.s32.totalorder %s692, %s693
      %p704 = scmp.eq.s32.totalorder %s49, 0
      %p705 = por %p703, %p704
      %p706 = scmp.ne.s32.totalorder %s692, %s693
      %p707 = scmp.eq.s32.totalorder %s50, 3
      %p708 = por %p706, %p707
      %p710 = scmp.ne.s32.totalorder %s693, %s709
      %p711 = scmp.eq.s32.totalorder %s50, 0
      %p712 = por %p710, %p711
      %p713 = scmp.le.s32.totalorder 1, %s44
      %p714 = scmp.lt.s32.totalorder %s44, 5
      %p715 = pnand %p713, %p714
      %p716 = pneg %p715
      // Predicated region
      $region9: #{tpu_custom_call.1} parent=5 // pred_check
        _
      $region10: #{tpu_custom_call.1} parent=5 // pred_check_branch
        %718 = sbr.rel (%p715) target = $region12
      $region11: #{tpu_custom_call.1} parent=5 // pred_region
        %s719 = ssub.s32 %s44, 1
        // Predicated region
        $region13: #{tpu_custom_call.1} parent=11 // pred_check
          %p720 = pneg %p129
        $region14: #{tpu_custom_call.1} parent=11 // pred_check_branch
          %722 = sbr.rel (%p720) target = $region16
        $region15: #{tpu_custom_call.1} parent=11 // pred_region
          _
        $region16: #{tpu_custom_call.1} parent=11 // pred_fallthru
          _
        // Predicated region
        $region17: #{tpu_custom_call.1} parent=11 // pred_check
          %p723 = pneg %p150
        $region18: #{tpu_custom_call.1} parent=11 // pred_check_branch
          %725 = sbr.rel (%p723) target = $region20
        $region19: #{tpu_custom_call.1} parent=11 // pred_region
          _
        $region20: #{tpu_custom_call.1} parent=11 // pred_fallthru
          _
        // Predicated region
        $region21: #{tpu_custom_call.1} parent=11 // pred_check
          %p726 = pneg %p197
        $region22: #{tpu_custom_call.1} parent=11 // pred_check_branch
          %728 = sbr.rel (%p726) target = $region24
        $region23: #{tpu_custom_call.1} parent=11 // pred_region
          _
        $region24: #{tpu_custom_call.1} parent=11 // pred_fallthru
          _
        // Predicated region
        $region25: #{tpu_custom_call.1} parent=11 // pred_check
          %p729 = pneg %p218
        $region26: #{tpu_custom_call.1} parent=11 // pred_check_branch
          %731 = sbr.rel (%p729) target = $region28
        $region27: #{tpu_custom_call.1} parent=11 // pred_region
          _
        $region28: #{tpu_custom_call.1} parent=11 // pred_fallthru
          _
        // Predicated region
        $region29: #{tpu_custom_call.1} parent=11 // pred_check
          %p732 = pneg %p239
        $region30: #{tpu_custom_call.1} parent=11 // pred_check_branch
          %734 = sbr.rel (%p732) target = $region32
        $region31: #{tpu_custom_call.1} parent=11 // pred_region
          _
        $region32: #{tpu_custom_call.1} parent=11 // pred_fallthru
          _
        // Predicated region
        $region33: #{tpu_custom_call.1} parent=11 // pred_check
          %p735 = pneg %p260
        $region34: #{tpu_custom_call.1} parent=11 // pred_check_branch
          %737 = sbr.rel (%p735) target = $region36
        $region35: #{tpu_custom_call.1} parent=11 // pred_region
          _
        $region36: #{tpu_custom_call.1} parent=11 // pred_fallthru
          _
        // Predicated region
        $region37: #{tpu_custom_call.1} parent=11 // pred_check
          %p738 = pneg %p281
        $region38: #{tpu_custom_call.1} parent=11 // pred_check_branch
          %740 = sbr.rel (%p738) target = $region40
        $region39: #{tpu_custom_call.1} parent=11 // pred_region
          _
        $region40: #{tpu_custom_call.1} parent=11 // pred_fallthru
          _
        // Predicated region
        $region41: #{tpu_custom_call.1} parent=11 // pred_check
          %p741 = pneg %p302
        $region42: #{tpu_custom_call.1} parent=11 // pred_check_branch
          %743 = sbr.rel (%p741) target = $region44
        $region43: #{tpu_custom_call.1} parent=11 // pred_region
          _
        $region44: #{tpu_custom_call.1} parent=11 // pred_fallthru
          _
        // Predicated region
        $region45: #{tpu_custom_call.1} parent=11 // pred_check
          %p744 = pneg %p323
        $region46: #{tpu_custom_call.1} parent=11 // pred_check_branch
          %746 = sbr.rel (%p744) target = $region48
        $region47: #{tpu_custom_call.1} parent=11 // pred_region
          _
        $region48: #{tpu_custom_call.1} parent=11 // pred_fallthru
          _
        // Predicated region
        $region49: #{tpu_custom_call.1} parent=11 // pred_check
          %p747 = pneg %p344
        $region50: #{tpu_custom_call.1} parent=11 // pred_check_branch
          %749 = sbr.rel (%p747) target = $region52
        $region51: #{tpu_custom_call.1} parent=11 // pred_region
          _
        $region52: #{tpu_custom_call.1} parent=11 // pred_fallthru
          _
        // Predicated region
        $region53: #{tpu_custom_call.1} parent=11 // pred_check
          %p750 = pneg %p365
        $region54: #{tpu_custom_call.1} parent=11 // pred_check_branch
          %752 = sbr.rel (%p750) target = $region56
        $region55: #{tpu_custom_call.1} parent=11 // pred_region
          _
        $region56: #{tpu_custom_call.1} parent=11 // pred_fallthru
          _
      $region12: #{tpu_custom_call.1} parent=5 // pred_fallthru
        _
      %p753 = scmp.lt.s32.totalorder %s44, 4
      // Predicated region
      $region57: #{tpu_custom_call.1} parent=5 // pred_check
        %p754 = pneg %p753
      $region58: #{tpu_custom_call.1} parent=5 // pred_check_branch
        %756 = sbr.rel (%p754) target = $region60
      $region59: #{tpu_custom_call.1} parent=5 // pred_region
        // Predicated region
        $region61: #{tpu_custom_call.1} parent=59 // pred_check
          %p757 = pneg %p76
        $region62: #{tpu_custom_call.1} parent=59 // pred_check_branch
          %759 = sbr.rel (%p757) target = $region64
        $region63: #{tpu_custom_call.1} parent=59 // pred_region
          %p760 = scmp.lt.s32.totalorder %s51, 1
          %s761 = scalar_select %p760, %s51, 1
          %s762 = smul.addr %s761, 8
          %s763 = scalar_lea.vmem %s0, %s762
        $region64: #{tpu_custom_call.1} parent=59 // pred_fallthru
          _
        // Predicated region
        $region65: #{tpu_custom_call.1} parent=59 // pred_check
          %p764 = pneg %p102
        $region66: #{tpu_custom_call.1} parent=59 // pred_check_branch
          %766 = sbr.rel (%p764) target = $region68
        $region67: #{tpu_custom_call.1} parent=59 // pred_region
          %p767 = scmp.lt.s32.totalorder %s51, 1
          %s768 = scalar_select %p767, %s51, 1
          %s769 = smul.addr %s768, 16
          %s770 = scalar_lea.vmem %s1, %s769
        $region68: #{tpu_custom_call.1} parent=59 // pred_fallthru
          _
        // Predicated region
        $region69: #{tpu_custom_call.1} parent=59 // pred_check
          %p771 = pneg %p170
        $region70: #{tpu_custom_call.1} parent=59 // pred_check_branch
          %773 = sbr.rel (%p771) target = $region72
        $region71: #{tpu_custom_call.1} parent=59 // pred_region
          %p774 = scmp.lt.s32.totalorder %s51, 1
          %s775 = scalar_select %p774, %s51, 1
          %s776 = scalar_lea.vmem %s4, %s775
        $region72: #{tpu_custom_call.1} parent=59 // pred_fallthru
          _
        // Predicated region
        $region73: #{tpu_custom_call.1} parent=59 // pred_check
          %p777 = pneg %p385
        $region74: #{tpu_custom_call.1} parent=59 // pred_check_branch
          %779 = sbr.rel (%p777) target = $region76
        $region75: #{tpu_custom_call.1} parent=59 // pred_region
          %p780 = scmp.lt.s32.totalorder %s52, 1
          %s781 = scalar_select %p780, %s52, 1
          %s782 = smul.addr %s781, 8
          %s783 = smul.addr %s782, 8
          %s784 = scalar_lea.vmem %s14, %s783
        $region76: #{tpu_custom_call.1} parent=59 // pred_fallthru
          _
        // Predicated region
        $region77: #{tpu_custom_call.1} parent=59 // pred_check
          %p785 = pneg %p411
        $region78: #{tpu_custom_call.1} parent=59 // pred_check_branch
          %787 = sbr.rel (%p785) target = $region80
        $region79: #{tpu_custom_call.1} parent=59 // pred_region
          %p788 = scmp.lt.s32.totalorder %s52, 1
          %s789 = scalar_select %p788, %s52, 1
          %s790 = smul.addr %s789, 2
          %s791 = scalar_lea.vmem %s15, %s790
        $region80: #{tpu_custom_call.1} parent=59 // pred_fallthru
          _
        // Predicated region
        $region81: #{tpu_custom_call.1} parent=59 // pred_check
          %p792 = pneg %p437
        $region82: #{tpu_custom_call.1} parent=59 // pred_check_branch
          %794 = sbr.rel (%p792) target = $region84
        $region83: #{tpu_custom_call.1} parent=59 // pred_region
          %p795 = scmp.lt.s32.totalorder %s52, 1
          %s796 = scalar_select %p795, %s52, 1
          %s797 = smul.addr %s796, 4
          %s798 = smul.addr %s797, 8
          %s799 = scalar_lea.vmem %s16, %s798
        $region84: #{tpu_custom_call.1} parent=59 // pred_fallthru
          _
        // Predicated region
        $region85: #{tpu_custom_call.1} parent=59 // pred_check
          %p800 = pneg %p463
        $region86: #{tpu_custom_call.1} parent=59 // pred_check_branch
          %802 = sbr.rel (%p800) target = $region88
        $region87: #{tpu_custom_call.1} parent=59 // pred_region
          %p803 = scmp.lt.s32.totalorder %s52, 1
          %s804 = scalar_select %p803, %s52, 1
          %s805 = smul.addr %s804, 4
          %s806 = smul.addr %s805, 8
          %s807 = scalar_lea.vmem %s17, %s806
        $region88: #{tpu_custom_call.1} parent=59 // pred_fallthru
          _
        // Predicated region
        $region89: #{tpu_custom_call.1} parent=59 // pred_check
          %p808 = pneg %p489
        $region90: #{tpu_custom_call.1} parent=59 // pred_check_branch
          %810 = sbr.rel (%p808) target = $region92
        $region91: #{tpu_custom_call.1} parent=59 // pred_region
          %p811 = scmp.lt.s32.totalorder %s52, 1
          %s812 = scalar_select %p811, %s52, 1
          %s813 = smul.addr %s812, 4
          %s814 = smul.addr %s813, 8
          %s815 = scalar_lea.vmem %s18, %s814
        $region92: #{tpu_custom_call.1} parent=59 // pred_fallthru
          _
        // Predicated region
        $region93: #{tpu_custom_call.1} parent=59 // pred_check
          %p816 = pneg %p515
        $region94: #{tpu_custom_call.1} parent=59 // pred_check_branch
          %818 = sbr.rel (%p816) target = $region96
        $region95: #{tpu_custom_call.1} parent=59 // pred_region
          %p819 = scmp.lt.s32.totalorder %s52, 1
          %s820 = scalar_select %p819, %s52, 1
          %s821 = scalar_lea.vmem %s19, %s820
        $region96: #{tpu_custom_call.1} parent=59 // pred_fallthru
          _
        // Predicated region
        $region97: #{tpu_custom_call.1} parent=59 // pred_check
          %p822 = pneg %p541
        $region98: #{tpu_custom_call.1} parent=59 // pred_check_branch
          %824 = sbr.rel (%p822) target = $region100
        $region99: #{tpu_custom_call.1} parent=59 // pred_region
          %p825 = scmp.lt.s32.totalorder %s52, 1
          %s826 = scalar_select %p825, %s52, 1
          %s827 = scalar_lea.vmem %s20, %s826
        $region100: #{tpu_custom_call.1} parent=59 // pred_fallthru
          _
        // Predicated region
        $region101: #{tpu_custom_call.1} parent=59 // pred_check
          %p828 = pneg %p567
        $region102: #{tpu_custom_call.1} parent=59 // pred_check_branch
          %830 = sbr.rel (%p828) target = $region104
        $region103: #{tpu_custom_call.1} parent=59 // pred_region
          %p831 = scmp.lt.s32.totalorder %s52, 1
          %s832 = scalar_select %p831, %s52, 1
          %s833 = scalar_lea.vmem %s21, %s832
        $region104: #{tpu_custom_call.1} parent=59 // pred_fallthru
          _
      $region60: #{tpu_custom_call.1} parent=5 // pred_fallthru
        _
      %p834 = scmp.le.s32.totalorder 1, %s44
      %p835 = scmp.lt.s32.totalorder %s44, 5
      %p836 = pnand %p834, %p835
      %p837 = pneg %p836
      // Predicated region
      $region105: #{tpu_custom_call.1} parent=5 // pred_check
        _
      $region106: #{tpu_custom_call.1} parent=5 // pred_check_branch
        %839 = sbr.rel (%p836) target = $region108
      $region107: #{tpu_custom_call.1} parent=5 // pred_region
        %s840 = ssub.s32 %s44, 1
        %p841 = scmp.lt.s32.totalorder %s53, 1
        %s842 = scalar_select %p841, %s53, 1
        %s843 = smul.addr %s842, 8
        %s844 = scalar_lea.vmem %s0, %s843
        %p845 = pneg %p82
        %p846 = pneg %p79
        %p847 = scmp.lt.s32.totalorder %s53, 1
        %s848 = scalar_select %p847, %s53, 1
        %s849 = smul.addr %s848, 16
        %s850 = scalar_lea.vmem %s1, %s849
        %p851 = pneg %p108
        %p852 = pneg %p105
        %p853 = pneg %p129
        %p854 = pneg %p126
        %p855 = pneg %p150
        %p856 = pneg %p147
        %p857 = scmp.lt.s32.totalorder %s53, 1
        %s858 = scalar_select %p857, %s53, 1
        %s859 = scalar_lea.vmem %s4, %s858
        %p860 = pneg %p176
        %p861 = pneg %p173
        %p862 = pneg %p197
        %p863 = pneg %p194
        %p864 = pneg %p218
        %p865 = pneg %p215
        %p866 = pneg %p239
        %p867 = pneg %p236
        %p868 = pneg %p260
        %p869 = pneg %p257
        %p870 = pneg %p281
        %p871 = pneg %p278
        %p872 = pneg %p302
        %p873 = pneg %p299
        %p874 = pneg %p323
        %p875 = pneg %p320
        %p876 = pneg %p344
        %p877 = pneg %p341
        %p878 = pneg %p365
        %p879 = pneg %p362
        %p880 = scmp.lt.s32.totalorder %s54, 1
        %s881 = scalar_select %p880, %s54, 1
        %s882 = smul.addr %s881, 8
        %s883 = smul.addr %s882, 8
        %s884 = scalar_lea.vmem %s14, %s883
        %p885 = pneg %p391
        %p886 = pneg %p388
        %p887 = scmp.lt.s32.totalorder %s54, 1
        %s888 = scalar_select %p887, %s54, 1
        %s889 = smul.addr %s888, 2
        %s890 = scalar_lea.vmem %s15, %s889
        %p891 = pneg %p417
        %p892 = pneg %p414
        %p893 = scmp.lt.s32.totalorder %s54, 1
        %s894 = scalar_select %p893, %s54, 1
        %s895 = smul.addr %s894, 4
        %s896 = smul.addr %s895, 8
        %s897 = scalar_lea.vmem %s16, %s896
        %p898 = pneg %p443
        %p899 = pneg %p440
        %p900 = scmp.lt.s32.totalorder %s54, 1
        %s901 = scalar_select %p900, %s54, 1
        %s902 = smul.addr %s901, 4
        %s903 = smul.addr %s902, 8
        %s904 = scalar_lea.vmem %s17, %s903
        %p905 = pneg %p469
        %p906 = pneg %p466
        %p907 = scmp.lt.s32.totalorder %s54, 1
        %s908 = scalar_select %p907, %s54, 1
        %s909 = smul.addr %s908, 4
        %s910 = smul.addr %s909, 8
        %s911 = scalar_lea.vmem %s18, %s910
        %p912 = pneg %p495
        %p913 = pneg %p492
        %p914 = scmp.lt.s32.totalorder %s54, 1
        %s915 = scalar_select %p914, %s54, 1
        %s916 = scalar_lea.vmem %s19, %s915
        %p917 = pneg %p521
        %p918 = pneg %p518
        %p919 = scmp.lt.s32.totalorder %s54, 1
        %s920 = scalar_select %p919, %s54, 1
        %s921 = scalar_lea.vmem %s20, %s920
        %p922 = pneg %p547
        %p923 = pneg %p544
        %p924 = scmp.lt.s32.totalorder %s54, 1
        %s925 = scalar_select %p924, %s54, 1
        %s926 = scalar_lea.vmem %s21, %s925
        %p927 = pneg %p573
        %p928 = pneg %p570
        %p929 = pneg %p599
        %p930 = pneg %p596
        %s931 = sand.u32 %s586, 1
        %s932 = scalar_lea.sflag [#allocation4], %s931
        %s933 = sand.u32 %s586, 1
        %s934 = smul.addr %s933, 8
        %s935 = scalar_lea.vmem [#allocation3], %s934
        %p936 = pneg %p627
        %p937 = pneg %p624
        %s938 = sand.u32 %s49, 1
        %s939 = scalar_lea.sflag [#allocation6], %s938
        %s940 = sand.u32 %s614, 1
        %s941 = smul.addr %s940, 32
        %s942 = scalar_lea.vmem [#allocation5], %s941
        %p943 = pneg %p653
        %p944 = pneg %p650
        %s945 = sand.u32 %s49, 1
        %s946 = scalar_lea.sflag [#allocation6], %s945
        %s947 = sand.u32 %s640, 1
        %s948 = scalar_lea.vmem [#allocation7], %s947
        %p949 = pneg %p679
        %p950 = pneg %p676
        %s951 = sand.u32 %s666, 1
        %s952 = scalar_lea.sflag [#allocation9], %s951
        %s953 = sand.u32 %s666, 1
        %s954 = scalar_lea.vmem [#allocation8], %s953
        %p955 = pneg %p705
        %p956 = pneg %p702
        %p957 = scmp.lt.s32.totalorder %s53, 1
        %s958 = scalar_select %p957, %s53, 1
        %s959 = scalar_lea.vmem %s26, %s958
        %p960 = scmp.lt.s32.totalorder %s53, 1
        %s961 = scalar_select %p960, %s53, 1
        %s962 = smul.addr %s961, 8
        %s963 = scalar_lea.vmem %s0, %s962
        %p964 = scmp.lt.s32.totalorder %s53, 1
        %s965 = scalar_select %p964, %s53, 1
        %s966 = smul.addr %s965, 16
        %s967 = scalar_lea.vmem %s1, %s966
        %p968 = scmp.lt.s32.totalorder %s53, 1
        %s969 = scalar_select %p968, %s53, 1
        %s970 = scalar_lea.vmem %s4, %s969
        %p971 = scmp.lt.s32.totalorder %s54, 1
        %s972 = scalar_select %p971, %s54, 1
        %s973 = smul.addr %s972, 8
        %s974 = smul.addr %s973, 8
        %s975 = scalar_lea.vmem %s14, %s974
        %p976 = scmp.lt.s32.totalorder %s54, 1
        %s977 = scalar_select %p976, %s54, 1
        %s978 = smul.addr %s977, 2
        %s979 = scalar_lea.vmem %s15, %s978
        %p980 = scmp.lt.s32.totalorder %s54, 1
        %s981 = scalar_select %p980, %s54, 1
        %s982 = smul.addr %s981, 4
        %s983 = smul.addr %s982, 8
        %s984 = scalar_lea.vmem %s16, %s983
        %p985 = scmp.lt.s32.totalorder %s54, 1
        %s986 = scalar_select %p985, %s54, 1
        %s987 = smul.addr %s986, 4
        %s988 = smul.addr %s987, 8
        %s989 = scalar_lea.vmem %s17, %s988
        %p990 = scmp.lt.s32.totalorder %s54, 1
        %s991 = scalar_select %p990, %s54, 1
        %s992 = smul.addr %s991, 4
        %s993 = smul.addr %s992, 8
        %s994 = scalar_lea.vmem %s18, %s993
        %p995 = scmp.lt.s32.totalorder %s54, 1
        %s996 = scalar_select %p995, %s54, 1
        %s997 = scalar_lea.vmem %s19, %s996
        %p998 = scmp.lt.s32.totalorder %s54, 1
        %s999 = scalar_select %p998, %s54, 1
        %s1000 = scalar_lea.vmem %s20, %s999
        %p1001 = scmp.lt.s32.totalorder %s54, 1
        %s1002 = scalar_select %p1001, %s54, 1
        %s1003 = scalar_lea.vmem %s21, %s1002
        %p1004 = scmp.lt.s32.totalorder %s53, 1
        %s1005 = scalar_select %p1004, %s53, 1
        %s1006 = scalar_lea.vmem %s26, %s1005
        %p1007 = scmp.eq.s32.totalorder %s54, 0
        // Predicated region
        $region109: #{tpu_custom_call.1} parent=107 // pred_check
          %p1008 = pneg %p1007
        $region110: #{tpu_custom_call.1} parent=107 // pred_check_branch
          %1010 = sbr.rel (%p1008) target = $region112
        $region111: #{tpu_custom_call.1} parent=107 // pred_region
          %v1011 = vld [vmem:[%s967] sm:$0xff]
          %v1012 = vld [vmem:[%s967 + $0x8] sm:$0xff]
          %v1013 = vld [vmem:[%s2] sm:$0xff]
          %v1014 = vld [vmem:[%s2 + $0x8] sm:$0xff]
          %v1015 = vld [vmem:[%s2 + $0x10] sm:$0xff]
          %v1016 = vld [vmem:[%s2 + $0x18] sm:$0xff]
          %v1017 = vld [vmem:[%s2 + $0x20] sm:$0xff]
          %v1018 = vld [vmem:[%s2 + $0x28] sm:$0xff]
          %v1019 = vld [vmem:[%s2 + $0x30] sm:$0xff]
          %v1020 = vld [vmem:[%s2 + $0x38] sm:$0xff]
          %v1021 = vld [vmem:[%s2 + $0x40] sm:$0xff]
          %v1022 = vld [vmem:[%s2 + $0x48] sm:$0xff]
          %v1023 = vld [vmem:[%s2 + $0x50] sm:$0xff]
          %v1024 = vld [vmem:[%s2 + $0x58] sm:$0xff]
          %v1025 = vld [vmem:[%s2 + $0x60] sm:$0xff]
          %v1026 = vld [vmem:[%s2 + $0x68] sm:$0xff]
          %v1027 = vld [vmem:[%s2 + $0x70] sm:$0xff]
          %v1028 = vld [vmem:[%s2 + $0x78] sm:$0xff]
          %v1029 = vld [vmem:[%s2 + $0x80] sm:$0xff]
          %v1030 = vld [vmem:[%s2 + $0x88] sm:$0xff]
          %v1031 = vld [vmem:[%s2 + $0x90] sm:$0xff]
          %v1032 = vld [vmem:[%s2 + $0x98] sm:$0xff]
          %v1033 = vld [vmem:[%s2 + $0xa0] sm:$0xff]
          %v1034 = vld [vmem:[%s2 + $0xa8] sm:$0xff]
          %v1035 = vld [vmem:[%s2 + $0xb0] sm:$0xff]
          %v1036 = vld [vmem:[%s2 + $0xb8] sm:$0xff]
          %v1037 = vld [vmem:[%s2 + $0xc0] sm:$0xff]
          %v1038 = vld [vmem:[%s2 + $0xc8] sm:$0xff]
          %v1039 = vld [vmem:[%s2 + $0xd0] sm:$0xff]
          %v1040 = vld [vmem:[%s2 + $0xd8] sm:$0xff]
          %v1041 = vld [vmem:[%s2 + $0xe0] sm:$0xff]
          %v1042 = vld [vmem:[%s2 + $0xe8] sm:$0xff]
          %v1043 = vld [vmem:[%s2 + $0xf0] sm:$0xff]
          %v1044 = vld [vmem:[%s2 + $0xf8] sm:$0xff]
          %v1045 = vld [vmem:[%s2 + $0x100] sm:$0xff]
          %v1046 = vld [vmem:[%s2 + $0x108] sm:$0xff]
          %v1047 = vld [vmem:[%s2 + $0x110] sm:$0xff]
          %v1048 = vld [vmem:[%s2 + $0x118] sm:$0xff]
          %v1049 = vld [vmem:[%s2 + $0x120] sm:$0xff]
          %v1050 = vld [vmem:[%s2 + $0x128] sm:$0xff]
          %v1051 = vld [vmem:[%s2 + $0x130] sm:$0xff]
          %v1052 = vld [vmem:[%s2 + $0x138] sm:$0xff]
          %v1053 = vld [vmem:[%s2 + $0x140] sm:$0xff]
          %v1054 = vld [vmem:[%s2 + $0x148] sm:$0xff]
          %v1055 = vld [vmem:[%s2 + $0x150] sm:$0xff]
          %v1056 = vld [vmem:[%s2 + $0x158] sm:$0xff]
          %v1057 = vld [vmem:[%s2 + $0x160] sm:$0xff]
          %v1058 = vld [vmem:[%s2 + $0x168] sm:$0xff]
          %v1059 = vld [vmem:[%s2 + $0x170] sm:$0xff]
          %v1060 = vld [vmem:[%s2 + $0x178] sm:$0xff]
          %v1061 = vld [vmem:[%s2 + $0x180] sm:$0xff]
          %v1062 = vld [vmem:[%s2 + $0x188] sm:$0xff]
          %v1063 = vld [vmem:[%s2 + $0x190] sm:$0xff]
          %v1064 = vld [vmem:[%s2 + $0x198] sm:$0xff]
          %v1065 = vld [vmem:[%s2 + $0x1a0] sm:$0xff]
          %v1066 = vld [vmem:[%s2 + $0x1a8] sm:$0xff]
          %v1067 = vld [vmem:[%s2 + $0x1b0] sm:$0xff]
          %v1068 = vld [vmem:[%s2 + $0x1b8] sm:$0xff]
          %v1069 = vld [vmem:[%s2 + $0x1c0] sm:$0xff]
          %v1070 = vld [vmem:[%s2 + $0x1c8] sm:$0xff]
          %v1071 = vld [vmem:[%s2 + $0x1d0] sm:$0xff]
          %v1072 = vld [vmem:[%s2 + $0x1d8] sm:$0xff]
          %v1073 = vld [vmem:[%s2 + $0x1e0] sm:$0xff]
          %v1074 = vld [vmem:[%s2 + $0x1e8] sm:$0xff]
          %v1075 = vld [vmem:[%s2 + $0x1f0] sm:$0xff]
          %v1076 = vld [vmem:[%s2 + $0x1f8] sm:$0xff]
          %v1077 = vld [vmem:[%s2 + $0x200] sm:$0xff]
          %v1078 = vld [vmem:[%s2 + $0x208] sm:$0xff]
          %v1079 = vld [vmem:[%s2 + $0x210] sm:$0xff]
          %v1080 = vld [vmem:[%s2 + $0x218] sm:$0xff]
          %v1081 = vld [vmem:[%s2 + $0x220] sm:$0xff]
          %v1082 = vld [vmem:[%s2 + $0x228] sm:$0xff]
          %v1083 = vld [vmem:[%s2 + $0x230] sm:$0xff]
          %v1084 = vld [vmem:[%s2 + $0x238] sm:$0xff]
          %v1085 = vld [vmem:[%s2 + $0x240] sm:$0xff]
          %v1086 = vld [vmem:[%s2 + $0x248] sm:$0xff]
          %v1087 = vld [vmem:[%s2 + $0x250] sm:$0xff]
          %v1088 = vld [vmem:[%s2 + $0x258] sm:$0xff]
          %v1089 = vld [vmem:[%s2 + $0x260] sm:$0xff]
          %v1090 = vld [vmem:[%s2 + $0x268] sm:$0xff]
          %v1091 = vld [vmem:[%s2 + $0x270] sm:$0xff]
          %v1092 = vld [vmem:[%s2 + $0x278] sm:$0xff]
          %v1093 = vld [vmem:[%s2 + $0x280] sm:$0xff]
          %v1094 = vld [vmem:[%s2 + $0x288] sm:$0xff]
          %v1095 = vld [vmem:[%s2 + $0x290] sm:$0xff]
          %v1096 = vld [vmem:[%s2 + $0x298] sm:$0xff]
          %v1097 = vld [vmem:[%s2 + $0x2a0] sm:$0xff]
          %v1098 = vld [vmem:[%s2 + $0x2a8] sm:$0xff]
          %v1099 = vld [vmem:[%s2 + $0x2b0] sm:$0xff]
          %v1100 = vld [vmem:[%s2 + $0x2b8] sm:$0xff]
          %v1101 = vld [vmem:[%s2 + $0x2c0] sm:$0xff]
          %v1102 = vld [vmem:[%s2 + $0x2c8] sm:$0xff]
          %v1103 = vld [vmem:[%s2 + $0x2d0] sm:$0xff]
          %v1104 = vld [vmem:[%s2 + $0x2d8] sm:$0xff]
          %v1105 = vld [vmem:[%s2 + $0x2e0] sm:$0xff]
          %v1106 = vld [vmem:[%s2 + $0x2e8] sm:$0xff]
          %v1107 = vld [vmem:[%s2 + $0x2f0] sm:$0xff]
          %v1108 = vld [vmem:[%s2 + $0x2f8] sm:$0xff]
          %v1109 = vld [vmem:[%s2 + $0x300] sm:$0xff]
          %v1110 = vld [vmem:[%s2 + $0x308] sm:$0xff]
          %v1111 = vld [vmem:[%s2 + $0x310] sm:$0xff]
          %v1112 = vld [vmem:[%s2 + $0x318] sm:$0xff]
          %v1113 = vld [vmem:[%s2 + $0x320] sm:$0xff]
          %v1114 = vld [vmem:[%s2 + $0x328] sm:$0xff]
          %v1115 = vld [vmem:[%s2 + $0x330] sm:$0xff]
          %v1116 = vld [vmem:[%s2 + $0x338] sm:$0xff]
          %v1117 = vld [vmem:[%s2 + $0x340] sm:$0xff]
          %v1118 = vld [vmem:[%s2 + $0x348] sm:$0xff]
          %v1119 = vld [vmem:[%s2 + $0x350] sm:$0xff]
          %v1120 = vld [vmem:[%s2 + $0x358] sm:$0xff]
          %v1121 = vld [vmem:[%s2 + $0x360] sm:$0xff]
          %v1122 = vld [vmem:[%s2 + $0x368] sm:$0xff]
          %v1123 = vld [vmem:[%s2 + $0x370] sm:$0xff]
          %v1124 = vld [vmem:[%s2 + $0x378] sm:$0xff]
          %v1125 = vld [vmem:[%s2 + $0x380] sm:$0xff]
          %v1126 = vld [vmem:[%s2 + $0x388] sm:$0xff]
          %v1127 = vld [vmem:[%s2 + $0x390] sm:$0xff]
          %v1128 = vld [vmem:[%s2 + $0x398] sm:$0xff]
          %v1129 = vld [vmem:[%s2 + $0x3a0] sm:$0xff]
          %v1130 = vld [vmem:[%s2 + $0x3a8] sm:$0xff]
          %v1131 = vld [vmem:[%s2 + $0x3b0] sm:$0xff]
          %v1132 = vld [vmem:[%s2 + $0x3b8] sm:$0xff]
          %v1133 = vld [vmem:[%s2 + $0x3c0] sm:$0xff]
          %v1134 = vld [vmem:[%s2 + $0x3c8] sm:$0xff]
          %v1135 = vld [vmem:[%s2 + $0x3d0] sm:$0xff]
          %v1136 = vld [vmem:[%s2 + $0x3d8] sm:$0xff]
          %v1137 = vld [vmem:[%s2 + $0x3e0] sm:$0xff]
          %v1138 = vld [vmem:[%s2 + $0x3e8] sm:$0xff]
          %v1139 = vld [vmem:[%s2 + $0x3f0] sm:$0xff]
          %v1140 = vld [vmem:[%s2 + $0x3f8] sm:$0xff]
          %v1141 = vld [vmem:[%s2 + $0x400] sm:$0xff]
          %v1142 = vld [vmem:[%s2 + $0x408] sm:$0xff]
          %v1143 = vld [vmem:[%s2 + $0x410] sm:$0xff]
          %v1144 = vld [vmem:[%s2 + $0x418] sm:$0xff]
          %v1145 = vld [vmem:[%s2 + $0x420] sm:$0xff]
          %v1146 = vld [vmem:[%s2 + $0x428] sm:$0xff]
          %v1147 = vld [vmem:[%s2 + $0x430] sm:$0xff]
          %v1148 = vld [vmem:[%s2 + $0x438] sm:$0xff]
          %v1149 = vld [vmem:[%s2 + $0x440] sm:$0xff]
          %v1150 = vld [vmem:[%s2 + $0x448] sm:$0xff]
          %v1151 = vld [vmem:[%s2 + $0x450] sm:$0xff]
          %v1152 = vld [vmem:[%s2 + $0x458] sm:$0xff]
          %v1153 = vld [vmem:[%s2 + $0x460] sm:$0xff]
          %v1154 = vld [vmem:[%s2 + $0x468] sm:$0xff]
          %v1155 = vld [vmem:[%s2 + $0x470] sm:$0xff]
          %v1156 = vld [vmem:[%s2 + $0x478] sm:$0xff]
          %v1157 = vld [vmem:[%s2 + $0x480] sm:$0xff]
          %v1158 = vld [vmem:[%s2 + $0x488] sm:$0xff]
          %v1159 = vld [vmem:[%s2 + $0x490] sm:$0xff]
          %v1160 = vld [vmem:[%s2 + $0x498] sm:$0xff]
          %v1161 = vld [vmem:[%s2 + $0x4a0] sm:$0xff]
          %v1162 = vld [vmem:[%s2 + $0x4a8] sm:$0xff]
          %v1163 = vld [vmem:[%s2 + $0x4b0] sm:$0xff]
          %v1164 = vld [vmem:[%s2 + $0x4b8] sm:$0xff]
          %v1165 = vld [vmem:[%s2 + $0x4c0] sm:$0xff]
          %v1166 = vld [vmem:[%s2 + $0x4c8] sm:$0xff]
          %v1167 = vld [vmem:[%s2 + $0x4d0] sm:$0xff]
          %v1168 = vld [vmem:[%s2 + $0x4d8] sm:$0xff]
          %v1169 = vld [vmem:[%s2 + $0x4e0] sm:$0xff]
          %v1170 = vld [vmem:[%s2 + $0x4e8] sm:$0xff]
          %v1171 = vld [vmem:[%s2 + $0x4f0] sm:$0xff]
          %v1172 = vld [vmem:[%s2 + $0x4f8] sm:$0xff]
          %v1173 = vld [vmem:[%s2 + $0x500] sm:$0xff]
          %v1174 = vld [vmem:[%s2 + $0x508] sm:$0xff]
          %v1175 = vld [vmem:[%s2 + $0x510] sm:$0xff]
          %v1176 = vld [vmem:[%s2 + $0x518] sm:$0xff]
          %v1177 = vld [vmem:[%s2 + $0x520] sm:$0xff]
          %v1178 = vld [vmem:[%s2 + $0x528] sm:$0xff]
          %v1179 = vld [vmem:[%s2 + $0x530] sm:$0xff]
          %v1180 = vld [vmem:[%s2 + $0x538] sm:$0xff]
          %v1181 = vld [vmem:[%s2 + $0x540] sm:$0xff]
          %v1182 = vld [vmem:[%s2 + $0x548] sm:$0xff]
          %v1183 = vld [vmem:[%s2 + $0x550] sm:$0xff]
          %v1184 = vld [vmem:[%s2 + $0x558] sm:$0xff]
          %v1185 = vld [vmem:[%s2 + $0x560] sm:$0xff]
          %v1186 = vld [vmem:[%s2 + $0x568] sm:$0xff]
          %v1187 = vld [vmem:[%s2 + $0x570] sm:$0xff]
          %v1188 = vld [vmem:[%s2 + $0x578] sm:$0xff]
          %v1189 = vld [vmem:[%s2 + $0x580] sm:$0xff]
          %v1190 = vld [vmem:[%s2 + $0x588] sm:$0xff]
          %v1191 = vld [vmem:[%s2 + $0x590] sm:$0xff]
          %v1192 = vld [vmem:[%s2 + $0x598] sm:$0xff]
          %v1193 = vld [vmem:[%s2 + $0x5a0] sm:$0xff]
          %v1194 = vld [vmem:[%s2 + $0x5a8] sm:$0xff]
          %v1195 = vld [vmem:[%s2 + $0x5b0] sm:$0xff]
          %v1196 = vld [vmem:[%s2 + $0x5b8] sm:$0xff]
          %v1197 = vld [vmem:[%s2 + $0x5c0] sm:$0xff]
          %v1198 = vld [vmem:[%s2 + $0x5c8] sm:$0xff]
          %v1199 = vld [vmem:[%s2 + $0x5d0] sm:$0xff]
          %v1200 = vld [vmem:[%s2 + $0x5d8] sm:$0xff]
          %v1201 = vld [vmem:[%s2 + $0x5e0] sm:$0xff]
          %v1202 = vld [vmem:[%s2 + $0x5e8] sm:$0xff]
          %v1203 = vld [vmem:[%s2 + $0x5f0] sm:$0xff]
          %v1204 = vld [vmem:[%s2 + $0x5f8] sm:$0xff]
          %v1205 = vld [vmem:[%s2 + $0x600] sm:$0xff]
          %v1206 = vld [vmem:[%s2 + $0x608] sm:$0xff]
          %v1207 = vld [vmem:[%s2 + $0x610] sm:$0xff]
          %v1208 = vld [vmem:[%s2 + $0x618] sm:$0xff]
          %v1209 = vld [vmem:[%s2 + $0x620] sm:$0xff]
          %v1210 = vld [vmem:[%s2 + $0x628] sm:$0xff]
          %v1211 = vld [vmem:[%s2 + $0x630] sm:$0xff]
          %v1212 = vld [vmem:[%s2 + $0x638] sm:$0xff]
          %v1213 = vld [vmem:[%s2 + $0x640] sm:$0xff]
          %v1214 = vld [vmem:[%s2 + $0x648] sm:$0xff]
          %v1215 = vld [vmem:[%s2 + $0x650] sm:$0xff]
          %v1216 = vld [vmem:[%s2 + $0x658] sm:$0xff]
          %v1217 = vld [vmem:[%s2 + $0x660] sm:$0xff]
          %v1218 = vld [vmem:[%s2 + $0x668] sm:$0xff]
          %v1219 = vld [vmem:[%s2 + $0x670] sm:$0xff]
          %v1220 = vld [vmem:[%s2 + $0x678] sm:$0xff]
          %v1221 = vld [vmem:[%s2 + $0x680] sm:$0xff]
          %v1222 = vld [vmem:[%s2 + $0x688] sm:$0xff]
          %v1223 = vld [vmem:[%s2 + $0x690] sm:$0xff]
          %v1224 = vld [vmem:[%s2 + $0x698] sm:$0xff]
          %v1225 = vld [vmem:[%s2 + $0x6a0] sm:$0xff]
          %v1226 = vld [vmem:[%s2 + $0x6a8] sm:$0xff]
          %v1227 = vld [vmem:[%s2 + $0x6b0] sm:$0xff]
          %v1228 = vld [vmem:[%s2 + $0x6b8] sm:$0xff]
          %v1229 = vld [vmem:[%s2 + $0x6c0] sm:$0xff]
          %v1230 = vld [vmem:[%s2 + $0x6c8] sm:$0xff]
          %v1231 = vld [vmem:[%s2 + $0x6d0] sm:$0xff]
          %v1232 = vld [vmem:[%s2 + $0x6d8] sm:$0xff]
          %v1233 = vld [vmem:[%s2 + $0x6e0] sm:$0xff]
          %v1234 = vld [vmem:[%s2 + $0x6e8] sm:$0xff]
          %v1235 = vld [vmem:[%s2 + $0x6f0] sm:$0xff]
          %v1236 = vld [vmem:[%s2 + $0x6f8] sm:$0xff]
          %v1237 = vld [vmem:[%s2 + $0x700] sm:$0xff]
          %v1238 = vld [vmem:[%s2 + $0x708] sm:$0xff]
          %v1239 = vld [vmem:[%s2 + $0x710] sm:$0xff]
          %v1240 = vld [vmem:[%s2 + $0x718] sm:$0xff]
          %v1241 = vld [vmem:[%s2 + $0x720] sm:$0xff]
          %v1242 = vld [vmem:[%s2 + $0x728] sm:$0xff]
          %v1243 = vld [vmem:[%s2 + $0x730] sm:$0xff]
          %v1244 = vld [vmem:[%s2 + $0x738] sm:$0xff]
          %v1245 = vld [vmem:[%s2 + $0x740] sm:$0xff]
          %v1246 = vld [vmem:[%s2 + $0x748] sm:$0xff]
          %v1247 = vld [vmem:[%s2 + $0x750] sm:$0xff]
          %v1248 = vld [vmem:[%s2 + $0x758] sm:$0xff]
          %v1249 = vld [vmem:[%s2 + $0x760] sm:$0xff]
          %v1250 = vld [vmem:[%s2 + $0x768] sm:$0xff]
          %v1251 = vld [vmem:[%s2 + $0x770] sm:$0xff]
          %v1252 = vld [vmem:[%s2 + $0x778] sm:$0xff]
          %v1253 = vld [vmem:[%s2 + $0x780] sm:$0xff]
          %v1254 = vld [vmem:[%s2 + $0x788] sm:$0xff]
          %v1255 = vld [vmem:[%s2 + $0x790] sm:$0xff]
          %v1256 = vld [vmem:[%s2 + $0x798] sm:$0xff]
          %v1257 = vld [vmem:[%s2 + $0x7a0] sm:$0xff]
          %v1258 = vld [vmem:[%s2 + $0x7a8] sm:$0xff]
          %v1259 = vld [vmem:[%s2 + $0x7b0] sm:$0xff]
          %v1260 = vld [vmem:[%s2 + $0x7b8] sm:$0xff]
          %v1261 = vld [vmem:[%s2 + $0x7c0] sm:$0xff]
          %v1262 = vld [vmem:[%s2 + $0x7c8] sm:$0xff]
          %v1263 = vld [vmem:[%s2 + $0x7d0] sm:$0xff]
          %v1264 = vld [vmem:[%s2 + $0x7d8] sm:$0xff]
          %v1265 = vld [vmem:[%s2 + $0x7e0] sm:$0xff]
          %v1266 = vld [vmem:[%s2 + $0x7e8] sm:$0xff]
          %v1267 = vld [vmem:[%s2 + $0x7f0] sm:$0xff]
          %v1268 = vld [vmem:[%s2 + $0x7f8] sm:$0xff]
          %v1269 = vld [vmem:[%s3] sm:$0x1]
          %v1272 = vperm.slane %v1011, 0
          %v1273 = vperm.slane %v1011, 1
          %v1274 = vperm.slane %v1011, 2
          %v1275 = vperm.slane %v1011, 3
          %v1276 = vperm.slane %v1011, 4
          %v1277 = vperm.slane %v1011, 5
          %v1278 = vperm.slane %v1011, 6
          %v1279 = vperm.slane %v1011, 7
          %v1280 = vperm.slane %v1012, 0
          %v1281 = vperm.slane %v1012, 1
          %v1282 = vperm.slane %v1012, 2
          %v1283 = vperm.slane %v1012, 3
          %v1284 = vperm.slane %v1012, 4
          %v1285 = vperm.slane %v1012, 5
          %v1286 = vperm.slane %v1012, 6
          %v1287 = vperm.slane %v1012, 7
          %1304 = vmatpush.msra.mxu0 %v1028
          %1305 = vmatpush.msra.mxu0 %v1027
          %1306 = vmatpush.msra.mxu0 %v1026
          %1307 = vmatpush.msra.mxu0 %v1025
          %1308 = vmatpush.msra.mxu0 %v1024
          %1309 = vmatpush.msra.mxu0 %v1023
          %1310 = vmatpush.msra.mxu0 %v1022
          %1311 = vmatpush.msra.mxu0 %v1021
          %1312 = vmatpush.msra.mxu0 %v1020
          %1313 = vmatpush.msra.mxu0 %v1019
          %1314 = vmatpush.msra.mxu0 %v1018
          %1315 = vmatpush.msra.mxu0 %v1017
          %1316 = vmatpush.msra.mxu0 %v1016
          %1317 = vmatpush.msra.mxu0 %v1015
          %1318 = vmatpush.msra.mxu0 %v1014
          %1319 = vmatpush.msra.mxu0 %v1013
          %1320 = vmatmul.f32.gmra.mxu0 %v1272
          %v1321 = vpop.f32.mrf.mxu0
          %v1322 = vadd.f32 %v1269, %v1321
          %1323 = vdwg.mxu0
          %1324 = vmatpush.msra.mxu0 %v1044
          %1325 = vmatpush.msra.mxu0 %v1043
          %1326 = vmatpush.msra.mxu0 %v1042
          %1327 = vmatpush.msra.mxu0 %v1041
          %1328 = vmatpush.msra.mxu0 %v1040
          %1329 = vmatpush.msra.mxu0 %v1039
          %1330 = vmatpush.msra.mxu0 %v1038
          %1331 = vmatpush.msra.mxu0 %v1037
          %1332 = vmatpush.msra.mxu0 %v1036
          %1333 = vmatpush.msra.mxu0 %v1035
          %1334 = vmatpush.msra.mxu0 %v1034
          %1335 = vmatpush.msra.mxu0 %v1033
          %1336 = vmatpush.msra.mxu0 %v1032
          %1337 = vmatpush.msra.mxu0 %v1031
          %1338 = vmatpush.msra.mxu0 %v1030
          %1339 = vmatpush.msra.mxu0 %v1029
          %1340 = vmatmul.f32.gmra.mxu0 %v1273
          %v1341 = vpop.f32.mrf.mxu0
          %v1342 = vadd.f32 %v1322, %v1341
          %1343 = vdwg.mxu0
          %1344 = vmatpush.msra.mxu0 %v1060
          %1345 = vmatpush.msra.mxu0 %v1059
          %1346 = vmatpush.msra.mxu0 %v1058
          %1347 = vmatpush.msra.mxu0 %v1057
          %1348 = vmatpush.msra.mxu0 %v1056
          %1349 = vmatpush.msra.mxu0 %v1055
          %1350 = vmatpush.msra.mxu0 %v1054
          %1351 = vmatpush.msra.mxu0 %v1053
          %1352 = vmatpush.msra.mxu0 %v1052
          %1353 = vmatpush.msra.mxu0 %v1051
          %1354 = vmatpush.msra.mxu0 %v1050
          %1355 = vmatpush.msra.mxu0 %v1049
          %1356 = vmatpush.msra.mxu0 %v1048
          %1357 = vmatpush.msra.mxu0 %v1047
          %1358 = vmatpush.msra.mxu0 %v1046
          %1359 = vmatpush.msra.mxu0 %v1045
          %1360 = vmatmul.f32.gmra.mxu0 %v1274
          %v1361 = vpop.f32.mrf.mxu0
          %v1362 = vadd.f32 %v1342, %v1361
          %1363 = vdwg.mxu0
          %1364 = vmatpush.msra.mxu0 %v1076
          %1365 = vmatpush.msra.mxu0 %v1075
          %1366 = vmatpush.msra.mxu0 %v1074
          %1367 = vmatpush.msra.mxu0 %v1073
          %1368 = vmatpush.msra.mxu0 %v1072
          %1369 = vmatpush.msra.mxu0 %v1071
          %1370 = vmatpush.msra.mxu0 %v1070
          %1371 = vmatpush.msra.mxu0 %v1069
          %1372 = vmatpush.msra.mxu0 %v1068
          %1373 = vmatpush.msra.mxu0 %v1067
          %1374 = vmatpush.msra.mxu0 %v1066
          %1375 = vmatpush.msra.mxu0 %v1065
          %1376 = vmatpush.msra.mxu0 %v1064
          %1377 = vmatpush.msra.mxu0 %v1063
          %1378 = vmatpush.msra.mxu0 %v1062
          %1379 = vmatpush.msra.mxu0 %v1061
          %1380 = vmatmul.f32.gmra.mxu0 %v1275
          %v1381 = vpop.f32.mrf.mxu0
          %v1382 = vadd.f32 %v1362, %v1381
          %1383 = vdwg.mxu0
          %1384 = vmatpush.msra.mxu0 %v1092
          %1385 = vmatpush.msra.mxu0 %v1091
          %1386 = vmatpush.msra.mxu0 %v1090
          %1387 = vmatpush.msra.mxu0 %v1089
          %1388 = vmatpush.msra.mxu0 %v1088
          %1389 = vmatpush.msra.mxu0 %v1087
          %1390 = vmatpush.msra.mxu0 %v1086
          %1391 = vmatpush.msra.mxu0 %v1085
          %1392 = vmatpush.msra.mxu0 %v1084
          %1393 = vmatpush.msra.mxu0 %v1083
          %1394 = vmatpush.msra.mxu0 %v1082
          %1395 = vmatpush.msra.mxu0 %v1081
          %1396 = vmatpush.msra.mxu0 %v1080
          %1397 = vmatpush.msra.mxu0 %v1079
          %1398 = vmatpush.msra.mxu0 %v1078
          %1399 = vmatpush.msra.mxu0 %v1077
          %1400 = vmatmul.f32.gmra.mxu0 %v1276
          %v1401 = vpop.f32.mrf.mxu0
          %v1402 = vadd.f32 %v1382, %v1401
          %1403 = vdwg.mxu0
          %1404 = vmatpush.msra.mxu0 %v1108
          %1405 = vmatpush.msra.mxu0 %v1107
          %1406 = vmatpush.msra.mxu0 %v1106
          %1407 = vmatpush.msra.mxu0 %v1105
          %1408 = vmatpush.msra.mxu0 %v1104
          %1409 = vmatpush.msra.mxu0 %v1103
          %1410 = vmatpush.msra.mxu0 %v1102
          %1411 = vmatpush.msra.mxu0 %v1101
          %1412 = vmatpush.msra.mxu0 %v1100
          %1413 = vmatpush.msra.mxu0 %v1099
          %1414 = vmatpush.msra.mxu0 %v1098
          %1415 = vmatpush.msra.mxu0 %v1097
          %1416 = vmatpush.msra.mxu0 %v1096
          %1417 = vmatpush.msra.mxu0 %v1095
          %1418 = vmatpush.msra.mxu0 %v1094
          %1419 = vmatpush.msra.mxu0 %v1093
          %1420 = vmatmul.f32.gmra.mxu0 %v1277
          %v1421 = vpop.f32.mrf.mxu0
          %v1422 = vadd.f32 %v1402, %v1421
          %1423 = vdwg.mxu0
          %1424 = vmatpush.msra.mxu0 %v1124
          %1425 = vmatpush.msra.mxu0 %v1123
          %1426 = vmatpush.msra.mxu0 %v1122
          %1427 = vmatpush.msra.mxu0 %v1121
          %1428 = vmatpush.msra.mxu0 %v1120
          %1429 = vmatpush.msra.mxu0 %v1119
          %1430 = vmatpush.msra.mxu0 %v1118
          %1431 = vmatpush.msra.mxu0 %v1117
          %1432 = vmatpush.msra.mxu0 %v1116
          %1433 = vmatpush.msra.mxu0 %v1115
          %1434 = vmatpush.msra.mxu0 %v1114
          %1435 = vmatpush.msra.mxu0 %v1113
          %1436 = vmatpush.msra.mxu0 %v1112
          %1437 = vmatpush.msra.mxu0 %v1111
          %1438 = vmatpush.msra.mxu0 %v1110
          %1439 = vmatpush.msra.mxu0 %v1109
          %1440 = vmatmul.f32.gmra.mxu0 %v1278
          %v1441 = vpop.f32.mrf.mxu0
          %v1442 = vadd.f32 %v1422, %v1441
          %1443 = vdwg.mxu0
          %1444 = vmatpush.msra.mxu0 %v1140
          %1445 = vmatpush.msra.mxu0 %v1139
          %1446 = vmatpush.msra.mxu0 %v1138
          %1447 = vmatpush.msra.mxu0 %v1137
          %1448 = vmatpush.msra.mxu0 %v1136
          %1449 = vmatpush.msra.mxu0 %v1135
          %1450 = vmatpush.msra.mxu0 %v1134
          %1451 = vmatpush.msra.mxu0 %v1133
          %1452 = vmatpush.msra.mxu0 %v1132
          %1453 = vmatpush.msra.mxu0 %v1131
          %1454 = vmatpush.msra.mxu0 %v1130
          %1455 = vmatpush.msra.mxu0 %v1129
          %1456 = vmatpush.msra.mxu0 %v1128
          %1457 = vmatpush.msra.mxu0 %v1127
          %1458 = vmatpush.msra.mxu0 %v1126
          %1459 = vmatpush.msra.mxu0 %v1125
          %1460 = vmatmul.f32.gmra.mxu0 %v1279
          %v1461 = vpop.f32.mrf.mxu0
          %v1462 = vadd.f32 %v1442, %v1461
          %1463 = vdwg.mxu0
          %1464 = vmatpush.msra.mxu0 %v1156
          %1465 = vmatpush.msra.mxu0 %v1155
          %1466 = vmatpush.msra.mxu0 %v1154
          %1467 = vmatpush.msra.mxu0 %v1153
          %1468 = vmatpush.msra.mxu0 %v1152
          %1469 = vmatpush.msra.mxu0 %v1151
          %1470 = vmatpush.msra.mxu0 %v1150
          %1471 = vmatpush.msra.mxu0 %v1149
          %1472 = vmatpush.msra.mxu0 %v1148
          %1473 = vmatpush.msra.mxu0 %v1147
          %1474 = vmatpush.msra.mxu0 %v1146
          %1475 = vmatpush.msra.mxu0 %v1145
          %1476 = vmatpush.msra.mxu0 %v1144
          %1477 = vmatpush.msra.mxu0 %v1143
          %1478 = vmatpush.msra.mxu0 %v1142
          %1479 = vmatpush.msra.mxu0 %v1141
          %1480 = vmatmul.f32.gmra.mxu0 %v1280
          %v1481 = vpop.f32.mrf.mxu0
          %v1482 = vadd.f32 %v1462, %v1481
          %1483 = vdwg.mxu0
          %1484 = vmatpush.msra.mxu0 %v1172
          %1485 = vmatpush.msra.mxu0 %v1171
          %1486 = vmatpush.msra.mxu0 %v1170
          %1487 = vmatpush.msra.mxu0 %v1169
          %1488 = vmatpush.msra.mxu0 %v1168
          %1489 = vmatpush.msra.mxu0 %v1167
          %1490 = vmatpush.msra.mxu0 %v1166
          %1491 = vmatpush.msra.mxu0 %v1165
          %1492 = vmatpush.msra.mxu0 %v1164
          %1493 = vmatpush.msra.mxu0 %v1163
          %1494 = vmatpush.msra.mxu0 %v1162
          %1495 = vmatpush.msra.mxu0 %v1161
          %1496 = vmatpush.msra.mxu0 %v1160
          %1497 = vmatpush.msra.mxu0 %v1159
          %1498 = vmatpush.msra.mxu0 %v1158
          %1499 = vmatpush.msra.mxu0 %v1157
          %1500 = vmatmul.f32.gmra.mxu0 %v1281
          %v1501 = vpop.f32.mrf.mxu0
          %v1502 = vadd.f32 %v1482, %v1501
          %1503 = vdwg.mxu0
          %1504 = vmatpush.msra.mxu0 %v1188
          %1505 = vmatpush.msra.mxu0 %v1187
          %1506 = vmatpush.msra.mxu0 %v1186
          %1507 = vmatpush.msra.mxu0 %v1185
          %1508 = vmatpush.msra.mxu0 %v1184
          %1509 = vmatpush.msra.mxu0 %v1183
          %1510 = vmatpush.msra.mxu0 %v1182
          %1511 = vmatpush.msra.mxu0 %v1181
          %1512 = vmatpush.msra.mxu0 %v1180
          %1513 = vmatpush.msra.mxu0 %v1179
          %1514 = vmatpush.msra.mxu0 %v1178
          %1515 = vmatpush.msra.mxu0 %v1177
          %1516 = vmatpush.msra.mxu0 %v1176
          %1517 = vmatpush.msra.mxu0 %v1175
          %1518 = vmatpush.msra.mxu0 %v1174
          %1519 = vmatpush.msra.mxu0 %v1173
          %1520 = vmatmul.f32.gmra.mxu0 %v1282
          %v1521 = vpop.f32.mrf.mxu0
          %v1522 = vadd.f32 %v1502, %v1521
          %1523 = vdwg.mxu0
          %1524 = vmatpush.msra.mxu0 %v1204
          %1525 = vmatpush.msra.mxu0 %v1203
          %1526 = vmatpush.msra.mxu0 %v1202
          %1527 = vmatpush.msra.mxu0 %v1201
          %1528 = vmatpush.msra.mxu0 %v1200
          %1529 = vmatpush.msra.mxu0 %v1199
          %1530 = vmatpush.msra.mxu0 %v1198
          %1531 = vmatpush.msra.mxu0 %v1197
          %1532 = vmatpush.msra.mxu0 %v1196
          %1533 = vmatpush.msra.mxu0 %v1195
          %1534 = vmatpush.msra.mxu0 %v1194
          %1535 = vmatpush.msra.mxu0 %v1193
          %1536 = vmatpush.msra.mxu0 %v1192
          %1537 = vmatpush.msra.mxu0 %v1191
          %1538 = vmatpush.msra.mxu0 %v1190
          %1539 = vmatpush.msra.mxu0 %v1189
          %1540 = vmatmul.f32.gmra.mxu0 %v1283
          %v1541 = vpop.f32.mrf.mxu0
          %v1542 = vadd.f32 %v1522, %v1541
          %1543 = vdwg.mxu0
          %1544 = vmatpush.msra.mxu0 %v1220
          %1545 = vmatpush.msra.mxu0 %v1219
          %1546 = vmatpush.msra.mxu0 %v1218
          %1547 = vmatpush.msra.mxu0 %v1217
          %1548 = vmatpush.msra.mxu0 %v1216
          %1549 = vmatpush.msra.mxu0 %v1215
          %1550 = vmatpush.msra.mxu0 %v1214
          %1551 = vmatpush.msra.mxu0 %v1213
          %1552 = vmatpush.msra.mxu0 %v1212
          %1553 = vmatpush.msra.mxu0 %v1211
          %1554 = vmatpush.msra.mxu0 %v1210
          %1555 = vmatpush.msra.mxu0 %v1209
          %1556 = vmatpush.msra.mxu0 %v1208
          %1557 = vmatpush.msra.mxu0 %v1207
          %1558 = vmatpush.msra.mxu0 %v1206
          %1559 = vmatpush.msra.mxu0 %v1205
          %1560 = vmatmul.f32.gmra.mxu0 %v1284
          %v1561 = vpop.f32.mrf.mxu0
          %v1562 = vadd.f32 %v1542, %v1561
          %1563 = vdwg.mxu0
          %1564 = vmatpush.msra.mxu0 %v1236
          %1565 = vmatpush.msra.mxu0 %v1235
          %1566 = vmatpush.msra.mxu0 %v1234
          %1567 = vmatpush.msra.mxu0 %v1233
          %1568 = vmatpush.msra.mxu0 %v1232
          %1569 = vmatpush.msra.mxu0 %v1231
          %1570 = vmatpush.msra.mxu0 %v1230
          %1571 = vmatpush.msra.mxu0 %v1229
          %1572 = vmatpush.msra.mxu0 %v1228
          %1573 = vmatpush.msra.mxu0 %v1227
          %1574 = vmatpush.msra.mxu0 %v1226
          %1575 = vmatpush.msra.mxu0 %v1225
          %1576 = vmatpush.msra.mxu0 %v1224
          %1577 = vmatpush.msra.mxu0 %v1223
          %1578 = vmatpush.msra.mxu0 %v1222
          %1579 = vmatpush.msra.mxu0 %v1221
          %1580 = vmatmul.f32.gmra.mxu0 %v1285
          %v1581 = vpop.f32.mrf.mxu0
          %v1582 = vadd.f32 %v1562, %v1581
          %1583 = vdwg.mxu0
          %1584 = vmatpush.msra.mxu0 %v1252
          %1585 = vmatpush.msra.mxu0 %v1251
          %1586 = vmatpush.msra.mxu0 %v1250
          %1587 = vmatpush.msra.mxu0 %v1249
          %1588 = vmatpush.msra.mxu0 %v1248
          %1589 = vmatpush.msra.mxu0 %v1247
          %1590 = vmatpush.msra.mxu0 %v1246
          %1591 = vmatpush.msra.mxu0 %v1245
          %1592 = vmatpush.msra.mxu0 %v1244
          %1593 = vmatpush.msra.mxu0 %v1243
          %1594 = vmatpush.msra.mxu0 %v1242
          %1595 = vmatpush.msra.mxu0 %v1241
          %1596 = vmatpush.msra.mxu0 %v1240
          %1597 = vmatpush.msra.mxu0 %v1239
          %1598 = vmatpush.msra.mxu0 %v1238
          %1599 = vmatpush.msra.mxu0 %v1237
          %1600 = vmatmul.f32.gmra.mxu0 %v1286
          %v1601 = vpop.f32.mrf.mxu0
          %v1602 = vadd.f32 %v1582, %v1601
          %1603 = vdwg.mxu0
          %1604 = vmatpush.msra.mxu0 %v1268
          %1605 = vmatpush.msra.mxu0 %v1267
          %1606 = vmatpush.msra.mxu0 %v1266
          %1607 = vmatpush.msra.mxu0 %v1265
          %1608 = vmatpush.msra.mxu0 %v1264
          %1609 = vmatpush.msra.mxu0 %v1263
          %1610 = vmatpush.msra.mxu0 %v1262
          %1611 = vmatpush.msra.mxu0 %v1261
          %1612 = vmatpush.msra.mxu0 %v1260
          %1613 = vmatpush.msra.mxu0 %v1259
          %1614 = vmatpush.msra.mxu0 %v1258
          %1615 = vmatpush.msra.mxu0 %v1257
          %1616 = vmatpush.msra.mxu0 %v1256
          %1617 = vmatpush.msra.mxu0 %v1255
          %1618 = vmatpush.msra.mxu0 %v1254
          %1619 = vmatpush.msra.mxu0 %v1253
          %1620 = vmatmul.f32.gmra.mxu0 %v1287
          %v1621 = vpop.f32.mrf.mxu0
          %v1622 = vadd.f32 %v1602, %v1621
          %1623 = vdwg.mxu0
          %v1624 = vld [vmem:[%s970] sm:$0x1]
          %v1625 = vld [vmem:[%s5] sm:$0xff]
          %v1626 = vld [vmem:[%s5 + $0x8] sm:$0xff]
          %v1627 = vld [vmem:[%s5 + $0x10] sm:$0xff]
          %v1628 = vld [vmem:[%s5 + $0x18] sm:$0xff]
          %v1629 = vld [vmem:[%s5 + $0x20] sm:$0xff]
          %v1630 = vld [vmem:[%s5 + $0x28] sm:$0xff]
          %v1631 = vld [vmem:[%s5 + $0x30] sm:$0xff]
          %v1632 = vld [vmem:[%s5 + $0x38] sm:$0xff]
          %v1633 = vld [vmem:[%s6] sm:$0x1]
          %vm1634 = vcmask 523264
          %v1636 = vsel %vm1634, %v1624, 0
          %1638 = vmatpush.msra.mxu0 0.0
          %1639 = vmatpush.msra.mxu0 0.0
          %1640 = vmatpush.msra.mxu0 0.0
          %1641 = vmatpush.msra.mxu0 0.0
          %1642 = vmatpush.msra.mxu0 0.0
          %1643 = vmatpush.msra.mxu0 0.0
          %1644 = vmatpush.msra.mxu0 0.0
          %1645 = vmatpush.msra.mxu0 0.0
          %1646 = vmatpush.msra.mxu0 %v1632
          %1647 = vmatpush.msra.mxu0 %v1631
          %1648 = vmatpush.msra.mxu0 %v1630
          %1649 = vmatpush.msra.mxu0 %v1629
          %1650 = vmatpush.msra.mxu0 %v1628
          %1651 = vmatpush.msra.mxu0 %v1627
          %1652 = vmatpush.msra.mxu0 %v1626
          %1653 = vmatpush.msra.mxu0 %v1625
          %1654 = vmatmul.f32.gmra.mxu0 %v1636
          %v1655 = vpop.f32.mrf.mxu0
          %v1656 = vadd.f32 %v1633, %v1655
          %1657 = vdwg.mxu0
          %v1658 = vld [vmem:[%s963] sm:$0xff]
          %v1659 = vperm.slane %v1622, 0
          %v1660 = vadd.f32 %v1658, %v1659
          %v1661 = vperm.slane %v1656, 0
          %v1662 = vadd.f32 %v1660, %v1661
          %v1663 = vld [vmem:[%s7] sm:$0xff]
          %v1664 = vadd.f32 %v1662, %v1663
          %vm1665 = vcmask 261120
          %1666 = vst.msk [vmem:[%s935] sm:$0xff] %vm1665, %v1664
        $region112: #{tpu_custom_call.1} parent=107 // pred_fallthru
          _
        %v1667 = vld [vmem:[%s935] sm:$0xff]
        %v1668 = vld [vmem:[%s975] sm:$0xff]
        %v1669 = vld [vmem:[%s975 + $0x8] sm:$0xff]
        %v1670 = vld [vmem:[%s975 + $0x10] sm:$0xff]
        %v1671 = vld [vmem:[%s975 + $0x18] sm:$0xff]
        %v1672 = vld [vmem:[%s975 + $0x20] sm:$0xff]
        %v1673 = vld [vmem:[%s975 + $0x28] sm:$0xff]
        %v1674 = vld [vmem:[%s975 + $0x30] sm:$0xff]
        %v1675 = vld [vmem:[%s975 + $0x38] sm:$0xff]
        %v1676 = vld [vmem:[%s979] sm:$0x3]
        %v1678 = vperm.slane %v1676, 0
        %v1679 = vperm.slane %v1676, 1
        %vm1682 = vcmask 261120
        %v1684 = vsel %vm1682, %v1667, 0
        %1686 = vmatpush.msra.mxu0 0.0
        %1687 = vmatpush.msra.mxu0 0.0
        %1688 = vmatpush.msra.mxu0 0.0
        %1689 = vmatpush.msra.mxu0 0.0
        %1690 = vmatpush.msra.mxu0 0.0
        %1691 = vmatpush.msra.mxu0 0.0
        %1692 = vmatpush.msra.mxu0 0.0
        %1693 = vmatpush.msra.mxu0 0.0
        %1694 = vmatpush.msra.mxu0 0.0
        %1695 = vmatpush.msra.mxu0 0.0
        %1696 = vmatpush.msra.mxu0 0.0
        %1697 = vmatpush.msra.mxu0 0.0
        %1698 = vmatpush.msra.mxu0 %v1674
        %1699 = vmatpush.msra.mxu0 %v1672
        %1700 = vmatpush.msra.mxu0 %v1670
        %1701 = vmatpush.msra.mxu0 %v1668
        %1702 = vmatmul.f32.gmra.mxu0 %v1684
        %v1703 = vpop.f32.mrf.mxu0
        %v1704 = vadd.f32 %v1678, %v1703
        %1705 = vdwg.mxu0
        %1706 = vmatpush.msra.mxu0 0.0
        %1707 = vmatpush.msra.mxu0 0.0
        %1708 = vmatpush.msra.mxu0 0.0
        %1709 = vmatpush.msra.mxu0 0.0
        %1710 = vmatpush.msra.mxu0 0.0
        %1711 = vmatpush.msra.mxu0 0.0
        %1712 = vmatpush.msra.mxu0 0.0
        %1713 = vmatpush.msra.mxu0 0.0
        %1714 = vmatpush.msra.mxu0 0.0
        %1715 = vmatpush.msra.mxu0 0.0
        %1716 = vmatpush.msra.mxu0 0.0
        %1717 = vmatpush.msra.mxu0 0.0
        %1718 = vmatpush.msra.mxu0 %v1675
        %1719 = vmatpush.msra.mxu0 %v1673
        %1720 = vmatpush.msra.mxu0 %v1671
        %1721 = vmatpush.msra.mxu0 %v1669
        %1722 = vmatmul.f32.gmra.mxu0 %v1684
        %v1723 = vpop.f32.mrf.mxu0
        %v1724 = vadd.f32 %v1679, %v1723
        %1725 = vdwg.mxu0
        %v1726 = vtanh.pop %v1704
        %v1727 = vtanh.pop %v1724
        %v1728 = vld [vmem:[%s984] sm:$0xff]
        %v1729 = vld [vmem:[%s984 + $0x8] sm:$0xff]
        %v1730 = vld [vmem:[%s984 + $0x10] sm:$0xff]
        %v1731 = vld [vmem:[%s984 + $0x18] sm:$0xff]
        %1733 = vrot.lane.b32.xlu0 %v1724, 96
        %v1734 = vpop.permute.xlu0 %1733
        %v1735 = vsel %vm1682, %v1734, 0
        %1737 = vmatpush.msra.mxu0 0.0
        %1738 = vmatpush.msra.mxu0 0.0
        %1739 = vmatpush.msra.mxu0 0.0
        %1740 = vmatpush.msra.mxu0 0.0
        %1741 = vmatpush.msra.mxu0 0.0
        %1742 = vmatpush.msra.mxu0 0.0
        %1743 = vmatpush.msra.mxu0 0.0
        %1744 = vmatpush.msra.mxu0 0.0
        %1745 = vmatpush.msra.mxu0 0.0
        %1746 = vmatpush.msra.mxu0 0.0
        %1747 = vmatpush.msra.mxu0 0.0
        %1748 = vmatpush.msra.mxu0 0.0
        %1749 = vmatpush.msra.mxu0 %v1731
        %1750 = vmatpush.msra.mxu0 %v1730
        %1751 = vmatpush.msra.mxu0 %v1729
        %1752 = vmatpush.msra.mxu0 %v1728
        %1753 = vmatmul.f32.gmra.mxu0 %v1735
        %v1754 = vpop.f32.mrf.mxu0
        %v1755 = vadd.f32 0.0, %v1754
        %1756 = vdwg.mxu0
        %v1757 = vmul.f32 %v1755, %v1755
        %1759 = vrot.lane.b32.xlu0 %v1757, 96
        %v1760 = vpop.permute.xlu0 %1759
        %v1762 = vadd.f32 %v1757, %v1760
        %v1763 = vld [vmem:[%s989] sm:$0xff]
        %v1764 = vld [vmem:[%s989 + $0x8] sm:$0xff]
        %v1765 = vld [vmem:[%s989 + $0x10] sm:$0xff]
        %v1766 = vld [vmem:[%s989 + $0x18] sm:$0xff]
        %v1768 = vsel %vm1682, %v1762, 0
        %1770 = vmatpush.msra.mxu0 0.0
        %1771 = vmatpush.msra.mxu0 0.0
        %1772 = vmatpush.msra.mxu0 0.0
        %1773 = vmatpush.msra.mxu0 0.0
        %1774 = vmatpush.msra.mxu0 0.0
        %1775 = vmatpush.msra.mxu0 0.0
        %1776 = vmatpush.msra.mxu0 0.0
        %1777 = vmatpush.msra.mxu0 0.0
        %1778 = vmatpush.msra.mxu0 0.0
        %1779 = vmatpush.msra.mxu0 0.0
        %1780 = vmatpush.msra.mxu0 0.0
        %1781 = vmatpush.msra.mxu0 0.0
        %1782 = vmatpush.msra.mxu0 %v1766
        %1783 = vmatpush.msra.mxu0 %v1765
        %1784 = vmatpush.msra.mxu0 %v1764
        %1785 = vmatpush.msra.mxu0 %v1763
        %1786 = vmatmul.f32.gmra.mxu0 %v1768
        %v1787 = vpop.f32.mrf.mxu0
        %v1788 = vadd.f32 0.0, %v1787
        %1789 = vdwg.mxu0
        %vm1790 = vcmask 130048
        %v1791 = vsel %vm1790, %v1762, 0.0
        %1792 = vadd.xlane.f32.xlu0 %v1791
        %v1793 = vpop.xlane.xlu0 %1792
        %v1794 = vrcp.pop 16.0
        %v1795 = vmul.f32 16.0, %v1794
        %v1796 = vsub.f32 1.0, %v1795
        %v1797 = vmul.f32 %v1794, %v1796
        %v1798 = vadd.f32 %v1794, %v1797
        %vm1799 = vweird.f32 %v1794
        %v1800 = vsel %vm1799, %v1794, %v1798
        %v1801 = vmul.f32 %v1793, %v1800
        %v1802 = vxor.u32 %v1801, 2147483648
        %v1803 = vmul.f32 %v1802, 1.442695
        %v1804 = vpow.pop %v1803
        %v1805 = vadd.f32 %v1804, 1.0
        %v1806 = vrcp.pop %v1805
        %v1807 = vmul.f32 %v1805, %v1806
        %v1808 = vsub.f32 1.0, %v1807
        %v1809 = vmul.f32 %v1806, %v1808
        %v1810 = vadd.f32 %v1806, %v1809
        %vm1811 = vweird.f32 %v1805
        %vm1812 = vweird.f32 %v1806
        %vm1813 = vmor %vm1811, %vm1812
        %v1814 = vsel %vm1813, %v1806, %v1810
        %v1815 = vand.u32 2147483647, %v1805
        %vm1816 = vcmp.eq.f32.partialorder %v1815, 8.507059e+37
        %v1817 = vand.u32 %v1805, 2147483648
        %v1818 = vor.u32 1.1754944e-38, %v1817
        %v1819 = vsel %vm1816, %v1818, %v1814
        %v1820 = vmul.f32 1.0, %v1819
        %1821 = vrot.lane.b32.xlu0 %v1762, 112
        %v1822 = vpop.permute.xlu0 %1821
        %v1824 = vsel %vm1790, %v1822, 0.0
        %1825 = vadd.xlane.f32.xlu0 %v1824
        %v1826 = vpop.xlane.xlu0 %1825
        %v1827 = vmul.f32 %v1826, %v1800
        %v1828 = vxor.u32 %v1827, 2147483648
        %v1829 = vmul.f32 %v1828, 1.442695
        %v1830 = vpow.pop %v1829
        %v1831 = vadd.f32 %v1830, 1.0
        %v1832 = vrcp.pop %v1831
        %v1833 = vmul.f32 %v1831, %v1832
        %v1834 = vsub.f32 1.0, %v1833
        %v1835 = vmul.f32 %v1832, %v1834
        %v1836 = vadd.f32 %v1832, %v1835
        %vm1837 = vweird.f32 %v1831
        %vm1838 = vweird.f32 %v1832
        %vm1839 = vmor %vm1837, %vm1838
        %v1840 = vsel %vm1839, %v1832, %v1836
        %v1841 = vand.u32 2147483647, %v1831
        %vm1842 = vcmp.eq.f32.partialorder %v1841, 8.507059e+37
        %v1843 = vand.u32 %v1831, 2147483648
        %v1844 = vor.u32 1.1754944e-38, %v1843
        %v1845 = vsel %vm1842, %v1844, %v1840
        %v1846 = vmul.f32 1.0, %v1845
        %v1847 = vmul.f32 %v1820, %v1788
        %v1848 = vsub.f32 1.0, %v1820
        %v1849 = vmul.f32 %v1848, %v1726
        %1851 = vrot.lane.b32.xlu0 %v1849, 32
        %v1852 = vpop.permute.xlu0 %1851
        %v1854 = vadd.f32 %v1847, %v1852
        %v1855 = vmul.f32 %v1846, %v1788
        %v1856 = vsub.f32 1.0, %v1846
        %v1857 = vmul.f32 %v1856, %v1727
        %1859 = vrot.lane.b32.xlu0 %v1857, 32
        %v1860 = vpop.permute.xlu0 %1859
        %v1862 = vadd.f32 %v1855, %v1860
        %v1863 = vmul.f32 %v1704, 0.7
        %v1864 = vmul.f32 %v1854, 0.3
        %v1865 = vadd.f32 %v1863, %v1864
        %v1866 = vmul.f32 %v1862, 0.3
        %v1867 = vadd.f32 %v1863, %v1866
        %v1868 = vsel %vm1790, %v1762, 0
        %v1870 = vsel %vm1790, %v1822, 0
        %1872 = vmatpush.xpose.msra.mxu0 0.0
        %1873 = vmatpush.xpose.msra.mxu0 0.0
        %1874 = vmatpush.xpose.msra.mxu0 0.0
        %1875 = vmatpush.xpose.msra.mxu0 0.0
        %1876 = vmatpush.xpose.msra.mxu0 0.0
        %1877 = vmatpush.xpose.msra.mxu0 0.0
        %1878 = vmatpush.xpose.msra.mxu0 0.0
        %1879 = vmatpush.xpose.msra.mxu0 0.0
        %1880 = vmatpush.xpose.msra.mxu0 0.0
        %1881 = vmatpush.xpose.msra.mxu0 0.0
        %1882 = vmatpush.xpose.msra.mxu0 0.0
        %1883 = vmatpush.xpose.msra.mxu0 0.0
        %1884 = vmatpush.xpose.msra.mxu0 0.0
        %1885 = vmatpush.xpose.msra.mxu0 0.0
        %1886 = vmatpush.xpose.msra.mxu0 0.0
        %1887 = vmatpush.xpose.msra.mxu0 %v1870
        %1888 = vmatmul.f32.gmra.mxu0 %v1868
        %v1889 = vpop.f32.mrf.mxu0
        %v1890 = vadd.f32 0.0, %v1889
        %1891 = vdwg.mxu0
        %1892 = vxpose.xlu0.b32.start [1/16] %v1865, 128
        %1893 = vxpose.xlu0.b32.cont [2/16] 0.0, 128
        %1894 = vxpose.xlu0.b32.cont [3/16] 0.0, 128
        %1895 = vxpose.xlu0.b32.cont [4/16] 0.0, 128
        %1896 = vxpose.xlu0.b32.cont [5/16] 0.0, 128
        %1897 = vxpose.xlu0.b32.cont [6/16] 0.0, 128
        %1898 = vxpose.xlu0.b32.cont [7/16] 0.0, 128
        %1899 = vxpose.xlu0.b32.cont [8/16] 0.0, 128
        %1900 = vxpose.xlu0.b32.cont [9/16] 0.0, 128
        %1901 = vxpose.xlu0.b32.cont [10/16] 0.0, 128
        %1902 = vxpose.xlu0.b32.cont [11/16] 0.0, 128
        %1903 = vxpose.xlu0.b32.cont [12/16] 0.0, 128
        %1904 = vxpose.xlu0.b32.cont [13/16] 0.0, 128
        %1905 = vxpose.xlu0.b32.cont [14/16] 0.0, 128
        %1906 = vxpose.xlu0.b32.cont [15/16] 0.0, 128
        %1907 = vxpose.xlu0.b32.end [16/16] 0.0, 128
        %v1908 = vpop.trf.xlu0
        %v1909 = vpop.trf.xlu0
        %v1910 = vpop.trf.xlu0
        %v1911 = vpop.trf.xlu0
        %v1912 = vpop.trf.xlu0
        %v1913 = vpop.trf.xlu0
        %v1914 = vpop.trf.xlu0
        %v1915 = vpop.trf.xlu0
        %v1916 = vpop.trf.xlu0
        %v1917 = vpop.trf.xlu0
        %v1918 = vpop.trf.xlu0
        %v1919 = vpop.trf.xlu0
        %v1920 = vpop.trf.xlu0
        %v1921 = vpop.trf.xlu0
        %v1922 = vpop.trf.xlu0
        %v1923 = vpop.trf.xlu0
        %1925 = vrot.lane.b32.xlu0 %v1867, 96
        %v1926 = vpop.permute.xlu0 %1925
        %1928 = vxpose.xlu0.b32.start [1/16] %v1926, 128
        %1929 = vxpose.xlu0.b32.cont [2/16] 0.0, 128
        %1930 = vxpose.xlu0.b32.cont [3/16] 0.0, 128
        %1931 = vxpose.xlu0.b32.cont [4/16] 0.0, 128
        %1932 = vxpose.xlu0.b32.cont [5/16] 0.0, 128
        %1933 = vxpose.xlu0.b32.cont [6/16] 0.0, 128
        %1934 = vxpose.xlu0.b32.cont [7/16] 0.0, 128
        %1935 = vxpose.xlu0.b32.cont [8/16] 0.0, 128
        %1936 = vxpose.xlu0.b32.cont [9/16] 0.0, 128
        %1937 = vxpose.xlu0.b32.cont [10/16] 0.0, 128
        %1938 = vxpose.xlu0.b32.cont [11/16] 0.0, 128
        %1939 = vxpose.xlu0.b32.cont [12/16] 0.0, 128
        %1940 = vxpose.xlu0.b32.cont [13/16] 0.0, 128
        %1941 = vxpose.xlu0.b32.cont [14/16] 0.0, 128
        %1942 = vxpose.xlu0.b32.cont [15/16] 0.0, 128
        %1943 = vxpose.xlu0.b32.end [16/16] 0.0, 128
        %v1944 = vpop.trf.xlu0
        %v1945 = vpop.trf.xlu0
        %v1946 = vpop.trf.xlu0
        %v1947 = vpop.trf.xlu0
        %v1948 = vpop.trf.xlu0
        %v1949 = vpop.trf.xlu0
        %v1950 = vpop.trf.xlu0
        %v1951 = vpop.trf.xlu0
        %v1952 = vpop.trf.xlu0
        %v1953 = vpop.trf.xlu0
        %v1954 = vpop.trf.xlu0
        %v1955 = vpop.trf.xlu0
        %v1956 = vpop.trf.xlu0
        %v1957 = vpop.trf.xlu0
        %v1958 = vpop.trf.xlu0
        %v1959 = vpop.trf.xlu0
        %1961 = vrot.lane.b32.xlu0 %v1704, 64
        %v1962 = vpop.permute.xlu0 %1961
        %1964 = vxpose.xlu0.b32.start [1/16] %v1962, 128
        %1965 = vxpose.xlu0.b32.cont [2/16] 0.0, 128
        %1966 = vxpose.xlu0.b32.cont [3/16] 0.0, 128
        %1967 = vxpose.xlu0.b32.cont [4/16] 0.0, 128
        %1968 = vxpose.xlu0.b32.cont [5/16] 0.0, 128
        %1969 = vxpose.xlu0.b32.cont [6/16] 0.0, 128
        %1970 = vxpose.xlu0.b32.cont [7/16] 0.0, 128
        %1971 = vxpose.xlu0.b32.cont [8/16] 0.0, 128
        %1972 = vxpose.xlu0.b32.cont [9/16] 0.0, 128
        %1973 = vxpose.xlu0.b32.cont [10/16] 0.0, 128
        %1974 = vxpose.xlu0.b32.cont [11/16] 0.0, 128
        %1975 = vxpose.xlu0.b32.cont [12/16] 0.0, 128
        %1976 = vxpose.xlu0.b32.cont [13/16] 0.0, 128
        %1977 = vxpose.xlu0.b32.cont [14/16] 0.0, 128
        %1978 = vxpose.xlu0.b32.cont [15/16] 0.0, 128
        %1979 = vxpose.xlu0.b32.end [16/16] 0.0, 128
        %v1980 = vpop.trf.xlu0
        %v1981 = vpop.trf.xlu0
        %v1982 = vpop.trf.xlu0
        %v1983 = vpop.trf.xlu0
        %v1984 = vpop.trf.xlu0
        %v1985 = vpop.trf.xlu0
        %v1986 = vpop.trf.xlu0
        %v1987 = vpop.trf.xlu0
        %v1988 = vpop.trf.xlu0
        %v1989 = vpop.trf.xlu0
        %v1990 = vpop.trf.xlu0
        %v1991 = vpop.trf.xlu0
        %v1992 = vpop.trf.xlu0
        %v1993 = vpop.trf.xlu0
        %v1994 = vpop.trf.xlu0
        %v1995 = vpop.trf.xlu0
        %1996 = vxpose.xlu0.b32.start [1/16] %v1908, 128
        %1997 = vxpose.xlu0.b32.cont [2/16] 0.0, 128
        %1998 = vxpose.xlu0.b32.cont [3/16] 0.0, 128
        %1999 = vxpose.xlu0.b32.cont [4/16] 0.0, 128
        %2000 = vxpose.xlu0.b32.cont [5/16] 0.0, 128
        %2001 = vxpose.xlu0.b32.cont [6/16] 0.0, 128
        %2002 = vxpose.xlu0.b32.cont [7/16] 0.0, 128
        %2003 = vxpose.xlu0.b32.cont [8/16] 0.0, 128
        %2004 = vxpose.xlu0.b32.cont [9/16] 0.0, 128
        %2005 = vxpose.xlu0.b32.cont [10/16] 0.0, 128
        %2006 = vxpose.xlu0.b32.cont [11/16] 0.0, 128
        %2007 = vxpose.xlu0.b32.cont [12/16] 0.0, 128
        %2008 = vxpose.xlu0.b32.cont [13/16] 0.0, 128
        %2009 = vxpose.xlu0.b32.cont [14/16] 0.0, 128
        %2010 = vxpose.xlu0.b32.cont [15/16] 0.0, 128
        %2011 = vxpose.xlu0.b32.end [16/16] 0.0, 128
        %v2012 = vpop.trf.xlu0
        %v2013 = vpop.trf.xlu0
        %v2014 = vpop.trf.xlu0
        %v2015 = vpop.trf.xlu0
        %v2016 = vpop.trf.xlu0
        %v2017 = vpop.trf.xlu0
        %v2018 = vpop.trf.xlu0
        %v2019 = vpop.trf.xlu0
        %v2020 = vpop.trf.xlu0
        %v2021 = vpop.trf.xlu0
        %v2022 = vpop.trf.xlu0
        %v2023 = vpop.trf.xlu0
        %v2024 = vpop.trf.xlu0
        %v2025 = vpop.trf.xlu0
        %v2026 = vpop.trf.xlu0
        %v2027 = vpop.trf.xlu0
        %vm2028 = vcmask 64512
        %v2030 = vsel %vm2028, %v2012, 0
        %2032 = vmatpush.msra.mxu0 0.0
        %2033 = vmatpush.msra.mxu0 0.0
        %2034 = vmatpush.msra.mxu0 0.0
        %2035 = vmatpush.msra.mxu0 0.0
        %2036 = vmatpush.msra.mxu0 0.0
        %2037 = vmatpush.msra.mxu0 0.0
        %2038 = vmatpush.msra.mxu0 0.0
        %2039 = vmatpush.msra.mxu0 0.0
        %2040 = vmatpush.msra.mxu0 0.0
        %2041 = vmatpush.msra.mxu0 0.0
        %2042 = vmatpush.msra.mxu0 0.0
        %2043 = vmatpush.msra.mxu0 0.0
        %2044 = vmatpush.msra.mxu0 0.0
        %2045 = vmatpush.msra.mxu0 0.0
        %2046 = vmatpush.msra.mxu0 0.0
        %2047 = vmatpush.msra.mxu0 %v1944
        %2048 = vmatmul.f32.gmra.mxu0 %v2030
        %v2049 = vpop.f32.mrf.mxu0
        %v2050 = vadd.f32 0.0, %v2049
        %2051 = vdwg.mxu0
        %2052 = vxpose.xlu0.b32.start [1/16] %v1909, 128
        %2053 = vxpose.xlu0.b32.cont [2/16] 0.0, 128
        %2054 = vxpose.xlu0.b32.cont [3/16] 0.0, 128
        %2055 = vxpose.xlu0.b32.cont [4/16] 0.0, 128
        %2056 = vxpose.xlu0.b32.cont [5/16] 0.0, 128
        %2057 = vxpose.xlu0.b32.cont [6/16] 0.0, 128
        %2058 = vxpose.xlu0.b32.cont [7/16] 0.0, 128
        %2059 = vxpose.xlu0.b32.cont [8/16] 0.0, 128
        %2060 = vxpose.xlu0.b32.cont [9/16] 0.0, 128
        %2061 = vxpose.xlu0.b32.cont [10/16] 0.0, 128
        %2062 = vxpose.xlu0.b32.cont [11/16] 0.0, 128
        %2063 = vxpose.xlu0.b32.cont [12/16] 0.0, 128
        %2064 = vxpose.xlu0.b32.cont [13/16] 0.0, 128
        %2065 = vxpose.xlu0.b32.cont [14/16] 0.0, 128
        %2066 = vxpose.xlu0.b32.cont [15/16] 0.0, 128
        %2067 = vxpose.xlu0.b32.end [16/16] 0.0, 128
        %v2068 = vpop.trf.xlu0
        %v2069 = vpop.trf.xlu0
        %v2070 = vpop.trf.xlu0
        %v2071 = vpop.trf.xlu0
        %v2072 = vpop.trf.xlu0
        %v2073 = vpop.trf.xlu0
        %v2074 = vpop.trf.xlu0
        %v2075 = vpop.trf.xlu0
        %v2076 = vpop.trf.xlu0
        %v2077 = vpop.trf.xlu0
        %v2078 = vpop.trf.xlu0
        %v2079 = vpop.trf.xlu0
        %v2080 = vpop.trf.xlu0
        %v2081 = vpop.trf.xlu0
        %v2082 = vpop.trf.xlu0
        %v2083 = vpop.trf.xlu0
        %v2085 = vsel %vm2028, %v2068, 0
        %2087 = vmatpush.msra.mxu0 0.0
        %2088 = vmatpush.msra.mxu0 0.0
        %2089 = vmatpush.msra.mxu0 0.0
        %2090 = vmatpush.msra.mxu0 0.0
        %2091 = vmatpush.msra.mxu0 0.0
        %2092 = vmatpush.msra.mxu0 0.0
        %2093 = vmatpush.msra.mxu0 0.0
        %2094 = vmatpush.msra.mxu0 0.0
        %2095 = vmatpush.msra.mxu0 0.0
        %2096 = vmatpush.msra.mxu0 0.0
        %2097 = vmatpush.msra.mxu0 0.0
        %2098 = vmatpush.msra.mxu0 0.0
        %2099 = vmatpush.msra.mxu0 0.0
        %2100 = vmatpush.msra.mxu0 0.0
        %2101 = vmatpush.msra.mxu0 0.0
        %2102 = vmatpush.msra.mxu0 %v1945
        %2103 = vmatmul.f32.gmra.mxu0 %v2085
        %v2104 = vpop.f32.mrf.mxu0
        %v2105 = vadd.f32 0.0, %v2104
        %2106 = vdwg.mxu0
        %2107 = vxpose.xlu0.b32.start [1/16] %v1910, 128
        %2108 = vxpose.xlu0.b32.cont [2/16] 0.0, 128
        %2109 = vxpose.xlu0.b32.cont [3/16] 0.0, 128
        %2110 = vxpose.xlu0.b32.cont [4/16] 0.0, 128
        %2111 = vxpose.xlu0.b32.cont [5/16] 0.0, 128
        %2112 = vxpose.xlu0.b32.cont [6/16] 0.0, 128
        %2113 = vxpose.xlu0.b32.cont [7/16] 0.0, 128
        %2114 = vxpose.xlu0.b32.cont [8/16] 0.0, 128
        %2115 = vxpose.xlu0.b32.cont [9/16] 0.0, 128
        %2116 = vxpose.xlu0.b32.cont [10/16] 0.0, 128
        %2117 = vxpose.xlu0.b32.cont [11/16] 0.0, 128
        %2118 = vxpose.xlu0.b32.cont [12/16] 0.0, 128
        %2119 = vxpose.xlu0.b32.cont [13/16] 0.0, 128
        %2120 = vxpose.xlu0.b32.cont [14/16] 0.0, 128
        %2121 = vxpose.xlu0.b32.cont [15/16] 0.0, 128
        %2122 = vxpose.xlu0.b32.end [16/16] 0.0, 128
        %v2123 = vpop.trf.xlu0
        %v2124 = vpop.trf.xlu0
        %v2125 = vpop.trf.xlu0
        %v2126 = vpop.trf.xlu0
        %v2127 = vpop.trf.xlu0
        %v2128 = vpop.trf.xlu0
        %v2129 = vpop.trf.xlu0
        %v2130 = vpop.trf.xlu0
        %v2131 = vpop.trf.xlu0
        %v2132 = vpop.trf.xlu0
        %v2133 = vpop.trf.xlu0
        %v2134 = vpop.trf.xlu0
        %v2135 = vpop.trf.xlu0
        %v2136 = vpop.trf.xlu0
        %v2137 = vpop.trf.xlu0
        %v2138 = vpop.trf.xlu0
        %v2140 = vsel %vm2028, %v2123, 0
        %2142 = vmatpush.msra.mxu0 0.0
        %2143 = vmatpush.msra.mxu0 0.0
        %2144 = vmatpush.msra.mxu0 0.0
        %2145 = vmatpush.msra.mxu0 0.0
        %2146 = vmatpush.msra.mxu0 0.0
        %2147 = vmatpush.msra.mxu0 0.0
        %2148 = vmatpush.msra.mxu0 0.0
        %2149 = vmatpush.msra.mxu0 0.0
        %2150 = vmatpush.msra.mxu0 0.0
        %2151 = vmatpush.msra.mxu0 0.0
        %2152 = vmatpush.msra.mxu0 0.0
        %2153 = vmatpush.msra.mxu0 0.0
        %2154 = vmatpush.msra.mxu0 0.0
        %2155 = vmatpush.msra.mxu0 0.0
        %2156 = vmatpush.msra.mxu0 0.0
        %2157 = vmatpush.msra.mxu0 %v1946
        %2158 = vmatmul.f32.gmra.mxu0 %v2140
        %v2159 = vpop.f32.mrf.mxu0
        %v2160 = vadd.f32 0.0, %v2159
        %2161 = vdwg.mxu0
        %2162 = vxpose.xlu0.b32.start [1/16] %v1911, 128
        %2163 = vxpose.xlu0.b32.cont [2/16] 0.0, 128
        %2164 = vxpose.xlu0.b32.cont [3/16] 0.0, 128
        %2165 = vxpose.xlu0.b32.cont [4/16] 0.0, 128
        %2166 = vxpose.xlu0.b32.cont [5/16] 0.0, 128
        %2167 = vxpose.xlu0.b32.cont [6/16] 0.0, 128
        %2168 = vxpose.xlu0.b32.cont [7/16] 0.0, 128
        %2169 = vxpose.xlu0.b32.cont [8/16] 0.0, 128
        %2170 = vxpose.xlu0.b32.cont [9/16] 0.0, 128
        %2171 = vxpose.xlu0.b32.cont [10/16] 0.0, 128
        %2172 = vxpose.xlu0.b32.cont [11/16] 0.0, 128
        %2173 = vxpose.xlu0.b32.cont [12/16] 0.0, 128
        %2174 = vxpose.xlu0.b32.cont [13/16] 0.0, 128
        %2175 = vxpose.xlu0.b32.cont [14/16] 0.0, 128
        %2176 = vxpose.xlu0.b32.cont [15/16] 0.0, 128
        %2177 = vxpose.xlu0.b32.end [16/16] 0.0, 128
        %v2178 = vpop.trf.xlu0
        %v2179 = vpop.trf.xlu0
        %v2180 = vpop.trf.xlu0
        %v2181 = vpop.trf.xlu0
        %v2182 = vpop.trf.xlu0
        %v2183 = vpop.trf.xlu0
        %v2184 = vpop.trf.xlu0
        %v2185 = vpop.trf.xlu0
        %v2186 = vpop.trf.xlu0
        %v2187 = vpop.trf.xlu0
        %v2188 = vpop.trf.xlu0
        %v2189 = vpop.trf.xlu0
        %v2190 = vpop.trf.xlu0
        %v2191 = vpop.trf.xlu0
        %v2192 = vpop.trf.xlu0
        %v2193 = vpop.trf.xlu0
        %v2195 = vsel %vm2028, %v2178, 0
        %2197 = vmatpush.msra.mxu0 0.0
        %2198 = vmatpush.msra.mxu0 0.0
        %2199 = vmatpush.msra.mxu0 0.0
        %2200 = vmatpush.msra.mxu0 0.0
        %2201 = vmatpush.msra.mxu0 0.0
        %2202 = vmatpush.msra.mxu0 0.0
        %2203 = vmatpush.msra.mxu0 0.0
        %2204 = vmatpush.msra.mxu0 0.0
        %2205 = vmatpush.msra.mxu0 0.0
        %2206 = vmatpush.msra.mxu0 0.0
        %2207 = vmatpush.msra.mxu0 0.0
        %2208 = vmatpush.msra.mxu0 0.0
        %2209 = vmatpush.msra.mxu0 0.0
        %2210 = vmatpush.msra.mxu0 0.0
        %2211 = vmatpush.msra.mxu0 0.0
        %2212 = vmatpush.msra.mxu0 %v1947
        %2213 = vmatmul.f32.gmra.mxu0 %v2195
        %v2214 = vpop.f32.mrf.mxu0
        %v2215 = vadd.f32 0.0, %v2214
        %2216 = vdwg.mxu0
        %v2217 = vmul.f32 %v2050, 0.35355338
        %v2218 = vmul.f32 %v2105, 0.35355338
        %v2219 = vmul.f32 %v2160, 0.35355338
        %v2220 = vmul.f32 %v2215, 0.35355338
        %v2221 = vmul.f32 %v1890, 0.1
        %v2222 = vadd.f32 %v2217, %v2221
        %v2223 = vadd.f32 %v2218, %v2221
        %v2224 = vadd.f32 %v2219, %v2221
        %v2225 = vadd.f32 %v2220, %v2221
        %v2226 = vsel %vm2028, %v2222, -inf
        %2227 = vmax.xlane.f32.xlu0 %v2226
        %v2228 = vpop.xlane.xlu0 %2227
        %v2229 = vsel %vm2028, %v2223, -inf
        %2230 = vmax.xlane.f32.xlu0 %v2229
        %v2231 = vpop.xlane.xlu0 %2230
        %v2232 = vsel %vm2028, %v2224, -inf
        %2233 = vmax.xlane.f32.xlu0 %v2232
        %v2234 = vpop.xlane.xlu0 %2233
        %v2235 = vsel %vm2028, %v2225, -inf
        %2236 = vmax.xlane.f32.xlu0 %v2235
        %v2237 = vpop.xlane.xlu0 %2236
        %v2238 = vsub.f32 %v2222, %v2228
        %v2239 = vsub.f32 %v2223, %v2231
        %v2240 = vsub.f32 %v2224, %v2234
        %v2241 = vsub.f32 %v2225, %v2237
        %v2242 = vmul.f32 %v2238, 1.442695
        %v2243 = vpow.pop %v2242
        %v2244 = vmul.f32 %v2239, 1.442695
        %v2245 = vpow.pop %v2244
        %v2246 = vmul.f32 %v2240, 1.442695
        %v2247 = vpow.pop %v2246
        %v2248 = vmul.f32 %v2241, 1.442695
        %v2249 = vpow.pop %v2248
        %v2250 = vsel %vm2028, %v2243, 0.0
        %2251 = vadd.xlane.f32.xlu0 %v2250
        %v2252 = vpop.xlane.xlu0 %2251
        %v2253 = vsel %vm2028, %v2245, 0.0
        %2254 = vadd.xlane.f32.xlu0 %v2253
        %v2255 = vpop.xlane.xlu0 %2254
        %v2256 = vsel %vm2028, %v2247, 0.0
        %2257 = vadd.xlane.f32.xlu0 %v2256
        %v2258 = vpop.xlane.xlu0 %2257
        %v2259 = vsel %vm2028, %v2249, 0.0
        %2260 = vadd.xlane.f32.xlu0 %v2259
        %v2261 = vpop.xlane.xlu0 %2260
        %v2262 = vrcp.pop %v2252
        %v2263 = vrcp.pop %v2255
        %v2264 = vrcp.pop %v2258
        %v2265 = vrcp.pop %v2261
        %v2266 = vmul.f32 %v2243, %v2262
        %v2267 = vmul.f32 %v2245, %v2263
        %v2268 = vmul.f32 %v2247, %v2264
        %v2269 = vmul.f32 %v2249, %v2265
        %2270 = vst.msk [vmem:[%s942] sm:$0xff] %vm2028, %v2266
        %2271 = vst.msk [vmem:[%s942 + $0x8] sm:$0xff] %vm2028, %v2267
        %2272 = vst.msk [vmem:[%s942 + $0x10] sm:$0xff] %vm2028, %v2268
        %2273 = vst.msk [vmem:[%s942 + $0x18] sm:$0xff] %vm2028, %v2269
        %v2275 = vsel %vm2028, %v1980, 0
        %v2278 = vsel %vm2028, %v2266, 0
        %2280 = vmatpush.xpose.msra.mxu0 0.0
        %2281 = vmatpush.xpose.msra.mxu0 0.0
        %2282 = vmatpush.xpose.msra.mxu0 0.0
        %2283 = vmatpush.xpose.msra.mxu0 0.0
        %2284 = vmatpush.xpose.msra.mxu0 0.0
        %2285 = vmatpush.xpose.msra.mxu0 0.0
        %2286 = vmatpush.xpose.msra.mxu0 0.0
        %2287 = vmatpush.xpose.msra.mxu0 0.0
        %2288 = vmatpush.xpose.msra.mxu0 0.0
        %2289 = vmatpush.xpose.msra.mxu0 0.0
        %2290 = vmatpush.xpose.msra.mxu0 0.0
        %2291 = vmatpush.xpose.msra.mxu0 0.0
        %2292 = vmatpush.xpose.msra.mxu0 0.0
        %2293 = vmatpush.xpose.msra.mxu0 0.0
        %2294 = vmatpush.xpose.msra.mxu0 0.0
        %2295 = vmatpush.xpose.msra.mxu0 %v2278
        %2296 = vmatmul.f32.gmra.mxu0 %v2275
        %v2297 = vpop.f32.mrf.mxu0
        %v2298 = vadd.f32 0.0, %v2297
        %2299 = vdwg.mxu0
        %v2301 = vsel %vm2028, %v1981, 0
        %v2304 = vsel %vm2028, %v2267, 0
        %2306 = vmatpush.xpose.msra.mxu0 0.0
        %2307 = vmatpush.xpose.msra.mxu0 0.0
        %2308 = vmatpush.xpose.msra.mxu0 0.0
        %2309 = vmatpush.xpose.msra.mxu0 0.0
        %2310 = vmatpush.xpose.msra.mxu0 0.0
        %2311 = vmatpush.xpose.msra.mxu0 0.0
        %2312 = vmatpush.xpose.msra.mxu0 0.0
        %2313 = vmatpush.xpose.msra.mxu0 0.0
        %2314 = vmatpush.xpose.msra.mxu0 0.0
        %2315 = vmatpush.xpose.msra.mxu0 0.0
        %2316 = vmatpush.xpose.msra.mxu0 0.0
        %2317 = vmatpush.xpose.msra.mxu0 0.0
        %2318 = vmatpush.xpose.msra.mxu0 0.0
        %2319 = vmatpush.xpose.msra.mxu0 0.0
        %2320 = vmatpush.xpose.msra.mxu0 0.0
        %2321 = vmatpush.xpose.msra.mxu0 %v2304
        %2322 = vmatmul.f32.gmra.mxu0 %v2301
        %v2323 = vpop.f32.mrf.mxu0
        %v2324 = vadd.f32 0.0, %v2323
        %2325 = vdwg.mxu0
        %v2327 = vsel %vm2028, %v1982, 0
        %v2330 = vsel %vm2028, %v2268, 0
        %2332 = vmatpush.xpose.msra.mxu0 0.0
        %2333 = vmatpush.xpose.msra.mxu0 0.0
        %2334 = vmatpush.xpose.msra.mxu0 0.0
        %2335 = vmatpush.xpose.msra.mxu0 0.0
        %2336 = vmatpush.xpose.msra.mxu0 0.0
        %2337 = vmatpush.xpose.msra.mxu0 0.0
        %2338 = vmatpush.xpose.msra.mxu0 0.0
        %2339 = vmatpush.xpose.msra.mxu0 0.0
        %2340 = vmatpush.xpose.msra.mxu0 0.0
        %2341 = vmatpush.xpose.msra.mxu0 0.0
        %2342 = vmatpush.xpose.msra.mxu0 0.0
        %2343 = vmatpush.xpose.msra.mxu0 0.0
        %2344 = vmatpush.xpose.msra.mxu0 0.0
        %2345 = vmatpush.xpose.msra.mxu0 0.0
        %2346 = vmatpush.xpose.msra.mxu0 0.0
        %2347 = vmatpush.xpose.msra.mxu0 %v2330
        %2348 = vmatmul.f32.gmra.mxu0 %v2327
        %v2349 = vpop.f32.mrf.mxu0
        %v2350 = vadd.f32 0.0, %v2349
        %2351 = vdwg.mxu0
        %v2353 = vsel %vm2028, %v1983, 0
        %v2356 = vsel %vm2028, %v2269, 0
        %2358 = vmatpush.xpose.msra.mxu0 0.0
        %2359 = vmatpush.xpose.msra.mxu0 0.0
        %2360 = vmatpush.xpose.msra.mxu0 0.0
        %2361 = vmatpush.xpose.msra.mxu0 0.0
        %2362 = vmatpush.xpose.msra.mxu0 0.0
        %2363 = vmatpush.xpose.msra.mxu0 0.0
        %2364 = vmatpush.xpose.msra.mxu0 0.0
        %2365 = vmatpush.xpose.msra.mxu0 0.0
        %2366 = vmatpush.xpose.msra.mxu0 0.0
        %2367 = vmatpush.xpose.msra.mxu0 0.0
        %2368 = vmatpush.xpose.msra.mxu0 0.0
        %2369 = vmatpush.xpose.msra.mxu0 0.0
        %2370 = vmatpush.xpose.msra.mxu0 0.0
        %2371 = vmatpush.xpose.msra.mxu0 0.0
        %2372 = vmatpush.xpose.msra.mxu0 0.0
        %2373 = vmatpush.xpose.msra.mxu0 %v2356
        %2374 = vmatmul.f32.gmra.mxu0 %v2353
        %v2375 = vpop.f32.mrf.mxu0
        %v2376 = vadd.f32 0.0, %v2375
        %2377 = vdwg.mxu0
        %2378 = vxpose.xlu0.b32.start [1/16] %v2298, 128
        %2379 = vxpose.xlu0.b32.cont [2/16] %v2324, 128
        %2380 = vxpose.xlu0.b32.cont [3/16] %v2350, 128
        %2381 = vxpose.xlu0.b32.cont [4/16] %v2376, 128
        %2382 = vxpose.xlu0.b32.cont [5/16] 0.0, 128
        %2383 = vxpose.xlu0.b32.cont [6/16] 0.0, 128
        %2384 = vxpose.xlu0.b32.cont [7/16] 0.0, 128
        %2385 = vxpose.xlu0.b32.cont [8/16] 0.0, 128
        %2386 = vxpose.xlu0.b32.cont [9/16] 0.0, 128
        %2387 = vxpose.xlu0.b32.cont [10/16] 0.0, 128
        %2388 = vxpose.xlu0.b32.cont [11/16] 0.0, 128
        %2389 = vxpose.xlu0.b32.cont [12/16] 0.0, 128
        %2390 = vxpose.xlu0.b32.cont [13/16] 0.0, 128
        %2391 = vxpose.xlu0.b32.cont [14/16] 0.0, 128
        %2392 = vxpose.xlu0.b32.cont [15/16] 0.0, 128
        %2393 = vxpose.xlu0.b32.end [16/16] 0.0, 128
        %v2394 = vpop.trf.xlu0
        %v2395 = vpop.trf.xlu0
        %v2396 = vpop.trf.xlu0
        %v2397 = vpop.trf.xlu0
        %v2398 = vpop.trf.xlu0
        %v2399 = vpop.trf.xlu0
        %v2400 = vpop.trf.xlu0
        %v2401 = vpop.trf.xlu0
        %v2402 = vpop.trf.xlu0
        %v2403 = vpop.trf.xlu0
        %v2404 = vpop.trf.xlu0
        %v2405 = vpop.trf.xlu0
        %v2406 = vpop.trf.xlu0
        %v2407 = vpop.trf.xlu0
        %v2408 = vpop.trf.xlu0
        %v2409 = vpop.trf.xlu0
        %v2410 = vld [vmem:[%s994] sm:$0xff]
        %v2411 = vld [vmem:[%s994 + $0x8] sm:$0xff]
        %v2412 = vld [vmem:[%s994 + $0x10] sm:$0xff]
        %v2413 = vld [vmem:[%s994 + $0x18] sm:$0xff]
        %v2414 = vld [vmem:[%s997] sm:$0x1]
        %v2416 = vperm.slane %v2414, 0
        %v2419 = vsel %vm1682, %v2394, 0
        %2421 = vmatpush.msra.mxu0 0.0
        %2422 = vmatpush.msra.mxu0 0.0
        %2423 = vmatpush.msra.mxu0 0.0
        %2424 = vmatpush.msra.mxu0 0.0
        %2425 = vmatpush.msra.mxu0 0.0
        %2426 = vmatpush.msra.mxu0 0.0
        %2427 = vmatpush.msra.mxu0 0.0
        %2428 = vmatpush.msra.mxu0 0.0
        %2429 = vmatpush.msra.mxu0 0.0
        %2430 = vmatpush.msra.mxu0 0.0
        %2431 = vmatpush.msra.mxu0 0.0
        %2432 = vmatpush.msra.mxu0 0.0
        %2433 = vmatpush.msra.mxu0 %v2413
        %2434 = vmatpush.msra.mxu0 %v2412
        %2435 = vmatpush.msra.mxu0 %v2411
        %2436 = vmatpush.msra.mxu0 %v2410
        %2437 = vmatmul.f32.gmra.mxu0 %v2419
        %v2438 = vpop.f32.mrf.mxu0
        %v2439 = vadd.f32 %v2416, %v2438
        %2440 = vdwg.mxu0
        %v2441 = vadd.f32 %v2439, %v1667
        %v2442 = vsel %vm1682, %v2441, 0.0
        %2443 = vadd.xlane.f32.xlu0 %v2442
        %v2444 = vpop.xlane.xlu0 %2443
        %v2445 = vrcp.pop 32.0
        %v2446 = vmul.f32 32.0, %v2445
        %v2447 = vsub.f32 1.0, %v2446
        %v2448 = vmul.f32 %v2445, %v2447
        %v2449 = vadd.f32 %v2445, %v2448
        %vm2450 = vweird.f32 %v2445
        %v2451 = vsel %vm2450, %v2445, %v2449
        %v2452 = vmul.f32 %v2444, %v2451
        %v2453 = vsub.f32 %v2441, %v2452
        %v2454 = vmul.f32 %v2453, %v2453
        %v2455 = vsel %vm1682, %v2454, 0.0
        %2456 = vadd.xlane.f32.xlu0 %v2455
        %v2457 = vpop.xlane.xlu0 %2456
        %v2458 = vmul.f32 %v2457, %v2451
        %v2459 = vadd.f32 %v2458, 1e-05
        %v2460 = vrsqrt.pop %v2459
        %v2461 = vmul.f32 %v2460, %v2459
        %v2462 = vmul.f32 %v2461, %v2460
        %v2463 = vmul.f32 0.5, %v2462
        %v2464 = vsub.f32 1.5, %v2463
        %v2465 = vmul.f32 %v2460, %v2464
        %vm2466 = vweird.f32 %v2459
        %vm2467 = vweird.f32 %v2460
        %vm2468 = vmor %vm2466, %vm2467
        %v2469 = vsel %vm2468, %v2460, %v2465
        %v2470 = vmul.f32 %v2453, %v2469
        %v2471 = vld [vmem:[%s1000] sm:$0x1]
        %v2473 = vperm.slane %v2471, 0
        %v2475 = vmul.f32 %v2470, %v2473
        %v2476 = vld [vmem:[%s1003] sm:$0x1]
        %v2478 = vperm.slane %v2476, 0
        %v2480 = vadd.f32 %v2475, %v2478
        %2481 = vst.msk [vmem:[%s935] sm:$0xff] %vm1682, %v2480
        %p2482 = scmp.eq.s32.totalorder %s54, 1
        // Predicated region
        $region113: #{tpu_custom_call.1} parent=107 // pred_check
          %p2483 = pneg %p2482
        $region114: #{tpu_custom_call.1} parent=107 // pred_check_branch
          %2485 = sbr.rel (%p2483) target = $region116
        $region115: #{tpu_custom_call.1} parent=107 // pred_region
          %v2486 = vsel %vm1682, %v2480, 0.0
          %v2487 = vrot.slane %v2486, 4
          %v2488 = vadd.f32 %v2486, %v2487
          %v2489 = vrot.slane %v2488, 2
          %v2490 = vadd.f32 %v2488, %v2489
          %v2491 = vrot.slane %v2490, 1
          %v2492 = vadd.f32 %v2490, %v2491
          %v2493 = vrcp.pop 8.0
          %v2494 = vmul.f32 8.0, %v2493
          %v2495 = vsub.f32 1.0, %v2494
          %v2496 = vmul.f32 %v2493, %v2495
          %v2497 = vadd.f32 %v2493, %v2496
          %vm2498 = vweird.f32 %v2493
          %v2499 = vsel %vm2498, %v2493, %v2497
          %v2500 = vmul.f32 %v2492, %v2499
          %v2501 = vld [vmem:[%s8] sm:$0xff]
          %v2502 = vld [vmem:[%s8 + $0x8] sm:$0xff]
          %v2503 = vld [vmem:[%s8 + $0x10] sm:$0xff]
          %v2504 = vld [vmem:[%s8 + $0x18] sm:$0xff]
          %v2505 = vld [vmem:[%s9] sm:$0x1]
          %v2507 = vsel %vm1682, %v2500, 0
          %2509 = vmatpush.msra.mxu0 0.0
          %2510 = vmatpush.msra.mxu0 0.0
          %2511 = vmatpush.msra.mxu0 0.0
          %2512 = vmatpush.msra.mxu0 0.0
          %2513 = vmatpush.msra.mxu0 0.0
          %2514 = vmatpush.msra.mxu0 0.0
          %2515 = vmatpush.msra.mxu0 0.0
          %2516 = vmatpush.msra.mxu0 0.0
          %2517 = vmatpush.msra.mxu0 0.0
          %2518 = vmatpush.msra.mxu0 0.0
          %2519 = vmatpush.msra.mxu0 0.0
          %2520 = vmatpush.msra.mxu0 0.0
          %2521 = vmatpush.msra.mxu0 %v2504
          %2522 = vmatpush.msra.mxu0 %v2503
          %2523 = vmatpush.msra.mxu0 %v2502
          %2524 = vmatpush.msra.mxu0 %v2501
          %2525 = vmatmul.f32.gmra.mxu0 %v2507
          %v2526 = vpop.f32.mrf.mxu0
          %v2527 = vadd.f32 %v2505, %v2526
          %2528 = vdwg.mxu0
          %v2529 = vxor.u32 %v2527, 2147483648
          %v2530 = vmul.f32 %v2529, 1.442695
          %v2531 = vpow.pop %v2530
          %v2532 = vadd.f32 %v2531, 1.0
          %v2533 = vrcp.pop %v2532
          %v2534 = vmul.f32 %v2532, %v2533
          %v2535 = vsub.f32 1.0, %v2534
          %v2536 = vmul.f32 %v2533, %v2535
          %v2537 = vadd.f32 %v2533, %v2536
          %vm2538 = vweird.f32 %v2532
          %vm2539 = vweird.f32 %v2533
          %vm2540 = vmor %vm2538, %vm2539
          %v2541 = vsel %vm2540, %v2533, %v2537
          %v2542 = vand.u32 2147483647, %v2532
          %vm2543 = vcmp.eq.f32.partialorder %v2542, 8.507059e+37
          %v2544 = vand.u32 %v2532, 2147483648
          %v2545 = vor.u32 1.1754944e-38, %v2544
          %v2546 = vsel %vm2543, %v2545, %v2541
          %v2547 = vmul.f32 1.0, %v2546
          %vm2548 = vcmask 516096
          %2549 = vst.msk [vmem:[%s948] sm:$0x1] %vm2548, %v2547
          %v2550 = vld [vmem:[%s10] sm:$0xff]
          %v2551 = vld [vmem:[%s10 + $0x8] sm:$0xff]
          %v2552 = vld [vmem:[%s10 + $0x10] sm:$0xff]
          %v2553 = vld [vmem:[%s10 + $0x18] sm:$0xff]
          %v2554 = vld [vmem:[%s11] sm:$0x1]
          %2555 = vmatpush.msra.mxu0 0.0
          %2556 = vmatpush.msra.mxu0 0.0
          %2557 = vmatpush.msra.mxu0 0.0
          %2558 = vmatpush.msra.mxu0 0.0
          %2559 = vmatpush.msra.mxu0 0.0
          %2560 = vmatpush.msra.mxu0 0.0
          %2561 = vmatpush.msra.mxu0 0.0
          %2562 = vmatpush.msra.mxu0 0.0
          %2563 = vmatpush.msra.mxu0 0.0
          %2564 = vmatpush.msra.mxu0 0.0
          %2565 = vmatpush.msra.mxu0 0.0
          %2566 = vmatpush.msra.mxu0 0.0
          %2567 = vmatpush.msra.mxu0 %v2553
          %2568 = vmatpush.msra.mxu0 %v2552
          %2569 = vmatpush.msra.mxu0 %v2551
          %2570 = vmatpush.msra.mxu0 %v2550
          %2571 = vmatmul.f32.gmra.mxu0 %v2507
          %v2572 = vpop.f32.mrf.mxu0
          %v2573 = vadd.f32 %v2554, %v2572
          %2574 = vdwg.mxu0
          %vm2575 = vcmask 32768
          %v2576 = vsel %vm2575, %v2573, -inf
          %2577 = vmax.xlane.f32.xlu0 %v2576
          %v2578 = vpop.xlane.xlu0 %2577
          %v2579 = vsub.f32 %v2573, %v2578
          %v2580 = vmul.f32 %v2579, 1.442695
          %v2581 = vpow.pop %v2580
          %v2582 = vsel %vm2575, %v2581, 0.0
          %2583 = vadd.xlane.f32.xlu0 %v2582
          %v2584 = vpop.xlane.xlu0 %2583
          %v2585 = vrcp.pop %v2584
          %v2586 = vmul.f32 %v2584, %v2585
          %v2587 = vsub.f32 1.0, %v2586
          %v2588 = vmul.f32 %v2585, %v2587
          %v2589 = vadd.f32 %v2585, %v2588
          %vm2590 = vweird.f32 %v2584
          %vm2591 = vweird.f32 %v2585
          %vm2592 = vmor %vm2590, %vm2591
          %v2593 = vsel %vm2592, %v2585, %v2589
          %v2594 = vand.u32 2147483647, %v2584
          %vm2595 = vcmp.eq.f32.partialorder %v2594, 8.507059e+37
          %v2596 = vand.u32 %v2584, 2147483648
          %v2597 = vor.u32 1.1754944e-38, %v2596
          %v2598 = vsel %vm2595, %v2597, %v2593
          %v2599 = vmul.f32 %v2581, %v2598
          %2600 = vst.msk [vmem:[%s954] sm:$0x1] %vm2575, %v2599
          %v2601 = vld [vmem:[%s12] sm:$0xff]
          %v2602 = vld [vmem:[%s12 + $0x8] sm:$0xff]
          %v2603 = vld [vmem:[%s12 + $0x10] sm:$0xff]
          %v2604 = vld [vmem:[%s12 + $0x18] sm:$0xff]
          %v2605 = vld [vmem:[#allocation2] sm:$0x1]
          %2606 = vmatpush.msra.mxu0 0.0
          %2607 = vmatpush.msra.mxu0 0.0
          %2608 = vmatpush.msra.mxu0 0.0
          %2609 = vmatpush.msra.mxu0 0.0
          %2610 = vmatpush.msra.mxu0 0.0
          %2611 = vmatpush.msra.mxu0 0.0
          %2612 = vmatpush.msra.mxu0 0.0
          %2613 = vmatpush.msra.mxu0 0.0
          %2614 = vmatpush.msra.mxu0 0.0
          %2615 = vmatpush.msra.mxu0 0.0
          %2616 = vmatpush.msra.mxu0 0.0
          %2617 = vmatpush.msra.mxu0 0.0
          %2618 = vmatpush.msra.mxu0 %v2604
          %2619 = vmatpush.msra.mxu0 %v2603
          %2620 = vmatpush.msra.mxu0 %v2602
          %2621 = vmatpush.msra.mxu0 %v2601
          %2622 = vmatmul.f32.gmra.mxu0 %v2507
          %v2623 = vpop.f32.mrf.mxu0
          %v2624 = vadd.f32 %v2605, %v2623
          %2625 = vdwg.mxu0
          %v2626 = vxor.u32 %v2624, 2147483648
          %v2627 = vmul.f32 %v2626, 1.442695
          %v2628 = vpow.pop %v2627
          %v2629 = vadd.f32 %v2628, 1.0
          %v2630 = vrcp.pop %v2629
          %v2631 = vmul.f32 %v2629, %v2630
          %v2632 = vsub.f32 1.0, %v2631
          %v2633 = vmul.f32 %v2630, %v2632
          %v2634 = vadd.f32 %v2630, %v2633
          %vm2635 = vweird.f32 %v2629
          %vm2636 = vweird.f32 %v2630
          %vm2637 = vmor %vm2635, %vm2636
          %v2638 = vsel %vm2637, %v2630, %v2634
          %v2639 = vand.u32 2147483647, %v2629
          %vm2640 = vcmp.eq.f32.partialorder %v2639, 8.507059e+37
          %v2641 = vand.u32 %v2629, 2147483648
          %v2642 = vor.u32 1.1754944e-38, %v2641
          %v2643 = vsel %vm2640, %v2642, %v2638
          %v2644 = vmul.f32 1.0, %v2643
          %vm2645 = vcmask 0
          %2646 = vst.msk [vmem:[%s1006] sm:$0x1] %vm2645, %v2644
        $region116: #{tpu_custom_call.1} parent=107 // pred_fallthru
          _
        %s2647 = sand.u32 %s586, 1
        %s2648 = scalar_lea.sflag [#allocation4], %s2647
        %s2649 = sand.u32 %s586, 1
        %s2650 = smul.addr %s2649, 8
        %s2651 = scalar_lea.vmem [#allocation3], %s2650
        %s2652 = sand.u32 %s49, 1
        %s2653 = scalar_lea.sflag [#allocation6], %s2652
        %s2654 = sand.u32 %s614, 1
        %s2655 = smul.addr %s2654, 32
        %s2656 = scalar_lea.vmem [#allocation5], %s2655
        %s2657 = sand.u32 %s49, 1
        %s2658 = scalar_lea.sflag [#allocation6], %s2657
        %s2659 = sand.u32 %s640, 1
        %s2660 = scalar_lea.vmem [#allocation7], %s2659
        %s2661 = sand.u32 %s666, 1
        %s2662 = scalar_lea.sflag [#allocation9], %s2661
        %s2663 = sand.u32 %s666, 1
        %s2664 = scalar_lea.vmem [#allocation8], %s2663
        %p2665 = scmp.lt.s32.totalorder %s53, 1
        %s2666 = scalar_select %p2665, %s53, 1
        %s2667 = scalar_lea.vmem %s26, %s2666
        // Predicated region
        $region117: #{tpu_custom_call.1} parent=107 // pred_check
          %p2668 = pneg %p596
        $region118: #{tpu_custom_call.1} parent=107 // pred_check_branch
          %2670 = sbr.rel (%p2668) target = $region120
        $region119: #{tpu_custom_call.1} parent=107 // pred_region
          %2672 = vsyncadd %s2648, 0
          %s2673 = smul.addr %s53, 8
          %s2674 = scalar_lea.hbm %s22, %s2673
          %s2676 = sshll.u32 %s2651, 4
          %s2677 = int_to_ptr.vmem [resolvable:$true] %s2676
          %s2678 = sshll.u32 %s2674, 4
          %s2679 = int_to_ptr.hbm [resolvable:$true] %s2678
          %2681 = dma.vmem_to_hbm [thread:$0]  %s2677, 128, %s2679, %s2648
        $region120: #{tpu_custom_call.1} parent=107 // pred_fallthru
          _
        // Predicated region
        $region121: #{tpu_custom_call.1} parent=107 // pred_check
          %p2682 = pneg %p624
        $region122: #{tpu_custom_call.1} parent=107 // pred_check_branch
          %2684 = sbr.rel (%p2682) target = $region124
        $region123: #{tpu_custom_call.1} parent=107 // pred_region
          %2686 = vsyncadd %s2653, 0
          %s2687 = smul.addr %s54, 4
          %s2688 = smul.addr %s53, 8
          %s2689 = sadd.s32 %s2687, %s2688
          %s2690 = smul.addr %s2689, 8
          %s2691 = scalar_lea.hbm %s23, %s2690
          %s2692 = sshll.u32 %s2656, 4
          %s2693 = int_to_ptr.vmem [resolvable:$true] %s2692
          %s2694 = sshll.u32 %s2691, 4
          %s2695 = int_to_ptr.hbm [resolvable:$true] %s2694
          %2700 = dma.vmem_to_hbm [thread:$0]  %s2693, 512, %s2695, %s2653, 128, 128, 8
        $region124: #{tpu_custom_call.1} parent=107 // pred_fallthru
          _
        // Predicated region
        $region125: #{tpu_custom_call.1} parent=107 // pred_check
          %p2701 = pneg %p650
        $region126: #{tpu_custom_call.1} parent=107 // pred_check_branch
          %2703 = sbr.rel (%p2701) target = $region128
        $region127: #{tpu_custom_call.1} parent=107 // pred_region
          %2705 = vsyncadd %s2658, 0
          %s2706 = scalar_lea.hbm %s24, %s53
          %s2708 = sshll.u32 %s2660, 4
          %s2709 = int_to_ptr.vmem [resolvable:$true] %s2708
          %s2710 = sshll.u32 %s2706, 4
          %s2711 = int_to_ptr.hbm [resolvable:$true] %s2710
          %2713 = dma.vmem_to_hbm [thread:$0]  %s2709, 16, %s2711, %s2658
        $region128: #{tpu_custom_call.1} parent=107 // pred_fallthru
          _
        // Predicated region
        $region129: #{tpu_custom_call.1} parent=107 // pred_check
          %p2714 = pneg %p676
        $region130: #{tpu_custom_call.1} parent=107 // pred_check_branch
          %2716 = sbr.rel (%p2714) target = $region132
        $region131: #{tpu_custom_call.1} parent=107 // pred_region
          %2718 = vsyncadd %s2662, 0
          %s2719 = scalar_lea.hbm %s25, %s53
          %s2721 = sshll.u32 %s2664, 4
          %s2722 = int_to_ptr.vmem [resolvable:$true] %s2721
          %s2723 = sshll.u32 %s2719, 4
          %s2724 = int_to_ptr.hbm [resolvable:$true] %s2723
          %2726 = dma.vmem_to_hbm [thread:$0]  %s2722, 16, %s2724, %s2662
        $region132: #{tpu_custom_call.1} parent=107 // pred_fallthru
          _
        // Predicated region
        $region133: #{tpu_custom_call.1} parent=107 // pred_check
          %p2727 = pneg %p702
        $region134: #{tpu_custom_call.1} parent=107 // pred_check_branch
          %2729 = sbr.rel (%p2727) target = $region136
        $region135: #{tpu_custom_call.1} parent=107 // pred_region
          _
        $region136: #{tpu_custom_call.1} parent=107 // pred_fallthru
          _
      $region108: #{tpu_custom_call.1} parent=5 // pred_fallthru
        _
      %p2730 = scmp.le.s32.totalorder 2, %s44
      // Predicated region
      $region137: #{tpu_custom_call.1} parent=5 // pred_check
        %p2731 = pneg %p2730
      $region138: #{tpu_custom_call.1} parent=5 // pred_check_branch
        %2733 = sbr.rel (%p2731) target = $region140
      $region139: #{tpu_custom_call.1} parent=5 // pred_region
        %s2734 = ssub.s32 %s44, 2
        // Predicated region
        $region141: #{tpu_custom_call.1} parent=139 // pred_check
          %p2735 = pneg %p602
        $region142: #{tpu_custom_call.1} parent=139 // pred_check_branch
          %2737 = sbr.rel (%p2735) target = $region144
        $region143: #{tpu_custom_call.1} parent=139 // pred_region
          %s2738 = sand.u32 %s587, 1
          %s2739 = scalar_lea.sflag [#allocation4], %s2738
          %s2740 = sand.u32 %s587, 1
          %s2741 = smul.addr %s2740, 8
          %s2742 = scalar_lea.vmem [#allocation3], %s2741
          %2744 = dma.done %s2739, 128
        $region144: #{tpu_custom_call.1} parent=139 // pred_fallthru
          _
        // Predicated region
        $region145: #{tpu_custom_call.1} parent=139 // pred_check
          %p2745 = pneg %p630
        $region146: #{tpu_custom_call.1} parent=139 // pred_check_branch
          %2747 = sbr.rel (%p2745) target = $region148
        $region147: #{tpu_custom_call.1} parent=139 // pred_region
          %s2748 = sand.u32 %s50, 1
          %s2749 = scalar_lea.sflag [#allocation6], %s2748
          %s2750 = sand.u32 %s615, 1
          %s2751 = smul.addr %s2750, 32
          %s2752 = scalar_lea.vmem [#allocation5], %s2751
          %2754 = dma.done %s2749, 512
        $region148: #{tpu_custom_call.1} parent=139 // pred_fallthru
          _
        // Predicated region
        $region149: #{tpu_custom_call.1} parent=139 // pred_check
          %p2755 = pneg %p656
        $region150: #{tpu_custom_call.1} parent=139 // pred_check_branch
          %2757 = sbr.rel (%p2755) target = $region152
        $region151: #{tpu_custom_call.1} parent=139 // pred_region
          %s2758 = sand.u32 %s50, 1
          %s2759 = scalar_lea.sflag [#allocation6], %s2758
          %s2760 = sand.u32 %s641, 1
          %s2761 = scalar_lea.vmem [#allocation7], %s2760
          %2763 = dma.done %s2759, 16
        $region152: #{tpu_custom_call.1} parent=139 // pred_fallthru
          _
        // Predicated region
        $region153: #{tpu_custom_call.1} parent=139 // pred_check
          %p2764 = pneg %p682
        $region154: #{tpu_custom_call.1} parent=139 // pred_check_branch
          %2766 = sbr.rel (%p2764) target = $region156
        $region155: #{tpu_custom_call.1} parent=139 // pred_region
          %s2767 = sand.u32 %s667, 1
          %s2768 = scalar_lea.sflag [#allocation9], %s2767
          %s2769 = sand.u32 %s667, 1
          %s2770 = scalar_lea.vmem [#allocation8], %s2769
          %2772 = dma.done %s2768, 16
        $region156: #{tpu_custom_call.1} parent=139 // pred_fallthru
          _
        // Predicated region
        $region157: #{tpu_custom_call.1} parent=139 // pred_check
          %p2773 = pneg %p708
        $region158: #{tpu_custom_call.1} parent=139 // pred_check_branch
          %2775 = sbr.rel (%p2773) target = $region160
        $region159: #{tpu_custom_call.1} parent=139 // pred_region
          %p2776 = scmp.lt.s32.totalorder %s55, 1
          %s2777 = scalar_select %p2776, %s55, 1
          %s2778 = scalar_lea.vmem %s26, %s2777
        $region160: #{tpu_custom_call.1} parent=139 // pred_fallthru
          _
      $region140: #{tpu_custom_call.1} parent=5 // pred_fallthru
        _
    $region6: #{tpu_custom_call.1} parent=1 // loop_footer
      %s48 = sadd.s32 1, %s44
    $region7: #{tpu_custom_call.1} parent=1 // loop_footer_branch
      %43 = sbr.rel target = $region3
    $region8: #{tpu_custom_call.1} parent=1 // loop_exit
      _
    %2779 = vsyncpa [#allocation4], 1
    %s2780 = scalar_lea.sflag [#allocation4], 1
    %2781 = vsyncpa %s2780, 1
    %2782 = vsyncpa [#allocation6], 1
    %s2783 = scalar_lea.sflag [#allocation6], 1
    %2784 = vsyncpa %s2783, 1
    %2785 = vsyncpa [#allocation9], 1
    %s2786 = scalar_lea.sflag [#allocation9], 1
    %2787 = vsyncpa %s2786, 1

</llo_original>
